<compile_context>
chip_gen: v7x
topology: tpu7x:2x2x1
jax: 0.10.0
libtpu: 0.0.40
codegen_flags: <defaults>
</compile_context>

<pallas_src>
import functools

import jax
import jax.numpy as jnp
from jax import lax
from jax.experimental import pallas as pl
from jax.experimental.pallas import tpu as pltpu

FEATURE_DIM = 64
HIDDEN_DIM = 128
NODES = 8
LN_EPS = 1e-5

# Tunables (per-generation guidance):
#   GRAPHS_PER_BLOCK: graphs per grid step (256 graphs = 2048 MXU rows / step).
#   AGG_ROWS: row size of the block-diagonal aggregation sub-matmuls.
#             256 for v6e/v7x (2x256x256 MXU), 128 for v5e (4x128x128 MXU).
GRAPHS_PER_BLOCK = 256
AGG_ROWS = 256


def _ln(h):
    """LayerNorm over the last dim WITHOUT the affine part (f32 math)."""
    mean = jnp.mean(h, axis=-1, keepdims=True)
    diff = h - mean
    var = jnp.mean(diff * diff, axis=-1, keepdims=True)
    return diff * lax.rsqrt(var + LN_EPS)


def gene_kernel(x_ref, adjbd_ref, w1_ref, w2_ref, prm_ref, out_ref, *,
                num_sub, sub_rows, nodes):
    cdt = w1_ref.dtype                      # matmul compute dtype (bf16 by default)

    prm = prm_ref[...]                      # [8, H] packed f32 param slab (resident)
    b1, g1, be1 = prm[0:1, :], prm[1:2, :], prm[2:3, :]
    b2, g2s, be2s = prm[3:4, :], prm[4:5, :], prm[5:6, :]   # g2s/be2s carry the +/- sign

    x = x_ref[...]                          # [GPB*N, F]  (cdt, streamed)
    w1 = w1_ref[...]                        # [F, H]      (cdt, VMEM-resident)
    w2 = w2_ref[...]                        # [H, H]      (cdt, VMEM-resident)

    # ---- GCNConv1:  (A_hat X) W1 + b1 ---------------------------------------
    # A_hat X as dense block-diagonal sub-matmuls on the MXU (M = K = sub_rows)
    # instead of GPB tiny per-graph [8,8]@[8,F] matmuls.
    ax_parts = []
    for j in range(num_sub):
        xj = x[j * sub_rows:(j + 1) * sub_rows, :]
        ax_parts.append(jnp.dot(adjbd_ref[j], xj,
                                preferred_element_type=jnp.float32))
    ax = jnp.concatenate(ax_parts, axis=0)                       # [GPB*N, F] f32
    h = jnp.dot(ax.astype(cdt), w1,
                preferred_element_type=jnp.float32) + b1         # [GPB*N, H] f32

    # ---- LayerNorm1 + ReLU ---------------------------------------------------
    h = _ln(h) * g1 + be1
    h = jnp.maximum(h, 0.0)

    # ---- GCNConv2:  A_hat (H W2) + b2 ----------------------------------------
    hw = jnp.dot(h.astype(cdt), w2,
                 preferred_element_type=jnp.float32)             # [GPB*N, H] f32
    hwc = hw.astype(cdt)
    h2_parts = []
    for j in range(num_sub):
        h2_parts.append(jnp.dot(adjbd_ref[j],
                                hwc[j * sub_rows:(j + 1) * sub_rows, :],
                                preferred_element_type=jnp.float32))
    h2 = jnp.concatenate(h2_parts, axis=0) + b2                  # [GPB*N, H] f32

    # ---- LayerNorm2 (affine + optional negate folded past the pool) ----------
    normed = _ln(h2)                                             # [GPB*N, H]
    gpb = out_ref.shape[0]
    pooled = jnp.mean(normed.reshape(gpb, nodes, normed.shape[-1]), axis=1)
    out_ref[...] = pooled * g2s + be2s                           # [GPB, H]
    # TODO(synk): global_mean_pool(h, batch) for an explicit `batch` vector
    # (segment mean over one big ragged graph) is not implemented.


def transposable_gene_forward(x, adj_norm, params, *, is_inverted=False,
                              matmul_dtype=jnp.bfloat16,
                              graphs_per_block=GRAPHS_PER_BLOCK,
                              agg_rows=AGG_ROWS,
                              vmem_limit_bytes=32 * 1024 * 1024):
    """x: [B, N, F], adj_norm: [B, N, N]  ->  [B, H] pooled gene output per graph."""
    b, n, f = x.shape
    h = HIDDEN_DIM
    assert agg_rows % n == 0 and agg_rows % 8 == 0
    sbg = agg_rows // n                      # graphs per aggregation sub-block

    # graphs per grid step: a multiple of sbg, shrunk for small batches
    gpb = max(sbg, (graphs_per_block // sbg) * sbg)
    gpb = min(gpb, pl.cdiv(b, sbg) * sbg)
    bp = pl.cdiv(b, gpb) * gpb               # padded batch
    nblk = bp // gpb
    num_sub = gpb // sbg

    pad = bp - b
    if pad:                                   # padded graphs are all-zero, sliced off below
        x = jnp.concatenate([x, jnp.zeros((pad, n, f), x.dtype)], axis=0)
        adj_norm = jnp.concatenate(
            [adj_norm, jnp.zeros((pad, n, n), adj_norm.dtype)], axis=0)

    # streamed inputs cast to the matmul dtype in the wrapper (halves HBM bytes)
    x_flat = x.astype(matmul_dtype).reshape(bp * n, f)

    # block-diagonal A_hat: [bp//sbg, agg_rows, agg_rows], contiguous & lane-dense
    ng = bp // sbg
    a = adj_norm.reshape(ng, sbg, n, n)
    eye = jnp.eye(sbg, dtype=adj_norm.dtype)
    adj_bd = jnp.einsum('gqnm,qr->gqnrm', a, eye).reshape(ng, agg_rows, agg_rows)
    adj_bd = adj_bd.astype(matmul_dtype)

    # resident weights in the matmul dtype
    w1 = params["w1"].astype(matmul_dtype)
    w2 = params["w2"].astype(matmul_dtype)

    # pack six [1,H] params into one sublane-aligned [8,H] slab; fold the
    # is_inverted sign into LN2's gamma/beta (applied after the node mean-pool).
    sign = jnp.float32(-1.0 if is_inverted else 1.0)
    slab = jnp.concatenate(
        [params["b1"], params["g1"], params["be1"], params["b2"],
         sign * params["g2"], sign * params["be2"],
         jnp.zeros((2, h), jnp.float32)], axis=0)

    kernel = functools.partial(gene_kernel, num_sub=num_sub,
                               sub_rows=agg_rows, nodes=n)
    const2 = lambda i: (0, 0)                 # weights stay VMEM-resident across steps

    out = pl.pallas_call(
        kernel,
        out_shape=jax.ShapeDtypeStruct((bp, h), jnp.float32),
        grid_spec=pltpu.PrefetchScalarGridSpec(
            num_scalar_prefetch=0,
            grid=(nblk,),
            in_specs=[
                pl.BlockSpec((gpb * n, f), lambda i: (i, 0)),        # x       (streamed)
                pl.BlockSpec((num_sub, agg_rows, agg_rows),
                             lambda i: (i, 0, 0)),                   # adj_bd  (streamed)
                pl.BlockSpec((f, h), const2),                        # W1      (resident)
                pl.BlockSpec((h, h), const2),                        # W2      (resident)
                pl.BlockSpec((8, h), const2),                        # params  (resident)
            ],
            out_specs=pl.BlockSpec((gpb, h), lambda i: (i, 0)),
        ),
        compiler_params=pltpu.CompilerParams(
            dimension_semantics=("parallel",),      # shard graph blocks across v7x TCs
            vmem_limit_bytes=vmem_limit_bytes),     # v5e default (16 MiB) is too small
    )(x_flat, adj_bd, w1, w2, slab)
    return out[:b]


# ----------------------------- JAX glue / reference -------------------------------

def build_normalized_adjacency(edge_index, num_nodes):
    """Dense  D^{-1/2} (A + I) D^{-1/2}  exactly like PyG GCNConv's default norm."""
    src, dst = edge_index[0], edge_index[1]
    loop = jnp.arange(num_nodes, dtype=src.dtype)
    src = jnp.concatenate([src, loop])
    dst = jnp.concatenate([dst, loop])
    adj = jnp.zeros((num_nodes, num_nodes), jnp.float32).at[dst, src].add(1.0)
    deg = jnp.sum(adj, axis=1)
    dinv = jnp.where(deg > 0, 1.0 / jnp.sqrt(deg), 0.0)
    return dinv[:, None] * adj * dinv[None, :]


def gene_forward_ref(x, adj, params, *, is_inverted=False):
    """Pure-JAX reference (per-graph module forward, batch=None path), vmapped."""
    def one(xg, ag):
        h = ag @ (xg @ params["w1"]) + params["b1"]
        h = _ln(h) * params["g1"] + params["be1"]
        h = jnp.maximum(h, 0.0)
        h = ag @ (h @ params["w2"]) + params["b2"]
        h = _ln(h) * params["g2"] + params["be2"]
        if is_inverted:
            h = -h
        return jnp.mean(h, axis=0)
    return jax.vmap(one)(x, adj)


def init_params(key):
    k1, k2 = jax.random.split(key, 2)
    glorot = lambda k, fan_in, fan_out: jax.random.normal(
        k, (fan_in, fan_out), jnp.float32) * (2.0 / (fan_in + fan_out)) ** 0.5
    return {
        "w1": glorot(k1, FEATURE_DIM, HIDDEN_DIM),
        "b1": jnp.zeros((1, HIDDEN_DIM), jnp.float32),
        "g1": jnp.ones((1, HIDDEN_DIM), jnp.float32),      # LayerNorm default init
        "be1": jnp.zeros((1, HIDDEN_DIM), jnp.float32),
        "w2": glorot(k2, HIDDEN_DIM, HIDDEN_DIM),
        "b2": jnp.zeros((1, HIDDEN_DIM), jnp.float32),
        "g2": jnp.ones((1, HIDDEN_DIM), jnp.float32),
        "be2": jnp.zeros((1, HIDDEN_DIM), jnp.float32),
    }


if __name__ == "__main__":
    key = jax.random.PRNGKey(0)
    k_x, k_p = jax.random.split(key)

    num_graphs = 100         # not a multiple of 32 -> exercises padding
    num_nodes = NODES
    x = jax.random.normal(k_x, (num_graphs, num_nodes, FEATURE_DIM), jnp.float32)

    # two small topologies in PyG [2, E] format: a ring and a chain
    idx = jnp.arange(num_nodes, dtype=jnp.int32)
    ring_src = jnp.concatenate([idx, (idx + 1) % num_nodes])
    ring_dst = jnp.concatenate([(idx + 1) % num_nodes, idx])
    edge_ring = jnp.stack([ring_src, ring_dst], axis=0)
    csrc, cdst = idx[:-1], idx[1:]
    edge_chain = jnp.stack([jnp.concatenate([csrc, cdst]),
                            jnp.concatenate([cdst, csrc])], axis=0)

    adj_ring = build_normalized_adjacency(edge_ring, num_nodes)
    adj_chain = build_normalized_adjacency(edge_chain, num_nodes)
    adj = jnp.stack([adj_ring if i % 2 == 0 else adj_chain
                     for i in range(num_graphs)], axis=0)

    params = init_params(k_p)
    ref = gene_forward_ref(x, adj, params, is_inverted=False)
    ref_inv = gene_forward_ref(x, adj, params, is_inverted=True)

    # f32 path, smaller block so the grid has 2 steps (exercises pipelining + padding)
    out_f32 = jax.block_until_ready(
        transposable_gene_forward(x, adj, params, is_inverted=False,
                                  matmul_dtype=jnp.float32, graphs_per_block=64))
    assert out_f32.shape == (num_graphs, HIDDEN_DIM)
    assert bool(jnp.all(jnp.isfinite(out_f32)))
    assert bool(jnp.allclose(out_f32, ref, atol=1e-4, rtol=1e-4))

    # default path: bf16 matmuls / f32 accumulation, large block
    out_bf16 = jax.block_until_ready(
        transposable_gene_forward(x, adj, params, is_inverted=False))
    assert out_bf16.shape == (num_graphs, HIDDEN_DIM)
    assert bool(jnp.all(jnp.isfinite(out_bf16)))
    assert bool(jnp.allclose(out_bf16, ref, atol=5e-2, rtol=5e-2))

    # inverted variant (sign folded into LN2 gamma/beta after the pool)
    out_inv = jax.block_until_ready(
        transposable_gene_forward(x, adj, params, is_inverted=True))
    assert bool(jnp.allclose(out_inv, ref_inv, atol=5e-2, rtol=5e-2))

    print("KERNEL_OK")
</pallas_src>

<mosaic_0001>
module attributes {stable_mosaic.version = 11 : i64} {
  func.func @gene_kernel(%arg0: i32, %arg1: memref<512x64xf32, #tpu.memory_space<vmem>>, %arg2: memref<2x256x256xf32, #tpu.memory_space<vmem>>, %arg3: memref<64x128xf32, #tpu.memory_space<vmem>>, %arg4: memref<128x128xf32, #tpu.memory_space<vmem>>, %arg5: memref<8x128xf32, #tpu.memory_space<vmem>>, %arg6: memref<64x128xf32, #tpu.memory_space<vmem>>) attributes {dimension_semantics = [#tpu.dimension_semantics<parallel>], iteration_bounds = array<i64: 2>, scalar_prefetch = 0 : i64, scratch_operands = 0 : i64, tpu.core_type = #tpu.core_type<tc>, window_params = [{transform_indices = @transform_0, window_bounds = array<i64: 512, 64>}, {transform_indices = @transform_1, window_bounds = array<i64: 2, 256, 256>}, {pipeline_mode = #tpu.pipeline_mode<synchronous>, transform_indices = @transform_2, window_bounds = array<i64: 64, 128>}, {pipeline_mode = #tpu.pipeline_mode<synchronous>, transform_indices = @transform_3, window_bounds = array<i64: 128, 128>}, {pipeline_mode = #tpu.pipeline_mode<synchronous>, transform_indices = @transform_4, window_bounds = array<i64: 8, 128>}, {transform_indices = @transform_5, window_bounds = array<i64: 64, 128>}]} {
    %c0 = arith.constant 0 : index
    %c0_0 = arith.constant 0 : index
    %0 = vector.load %arg5[%c0, %c0_0] : memref<8x128xf32, #tpu.memory_space<vmem>>, vector<8x128xf32>
    %1 = vector.extract_strided_slice %0 {offsets = [0, 0], sizes = [1, 128], strides = [1, 1]} : vector<8x128xf32> to vector<1x128xf32>
    %2 = vector.extract_strided_slice %0 {offsets = [1, 0], sizes = [1, 128], strides = [1, 1]} : vector<8x128xf32> to vector<1x128xf32>
    %3 = vector.extract_strided_slice %0 {offsets = [2, 0], sizes = [1, 128], strides = [1, 1]} : vector<8x128xf32> to vector<1x128xf32>
    %4 = vector.extract_strided_slice %0 {offsets = [3, 0], sizes = [1, 128], strides = [1, 1]} : vector<8x128xf32> to vector<1x128xf32>
    %5 = vector.extract_strided_slice %0 {offsets = [4, 0], sizes = [1, 128], strides = [1, 1]} : vector<8x128xf32> to vector<1x128xf32>
    %6 = vector.extract_strided_slice %0 {offsets = [5, 0], sizes = [1, 128], strides = [1, 1]} : vector<8x128xf32> to vector<1x128xf32>
    %c0_1 = arith.constant 0 : index
    %c0_2 = arith.constant 0 : index
    %7 = vector.load %arg1[%c0_1, %c0_2] : memref<512x64xf32, #tpu.memory_space<vmem>>, vector<512x64xf32>
    %c0_3 = arith.constant 0 : index
    %c0_4 = arith.constant 0 : index
    %8 = vector.load %arg3[%c0_3, %c0_4] : memref<64x128xf32, #tpu.memory_space<vmem>>, vector<64x128xf32>
    %c0_5 = arith.constant 0 : index
    %c0_6 = arith.constant 0 : index
    %9 = vector.load %arg4[%c0_5, %c0_6] : memref<128x128xf32, #tpu.memory_space<vmem>>, vector<128x128xf32>
    %10 = vector.extract_strided_slice %7 {offsets = [0, 0], sizes = [256, 64], strides = [1, 1]} : vector<512x64xf32> to vector<256x64xf32>
    %c0_7 = arith.constant 0 : index
    %c0_8 = arith.constant 0 : index
    %c0_9 = arith.constant 0 : index
    %11 = vector.load %arg2[%c0_7, %c0_8, %c0_9] : memref<2x256x256xf32, #tpu.memory_space<vmem>>, vector<1x256x256xf32>
    %12 = vector.shape_cast %11 : vector<1x256x256xf32> to vector<256x256xf32>
    %cst = arith.constant dense<0.000000e+00> : vector<256x64xf32>
    %13 = tpu.matmul %12, %10, %cst {dimension_numbers = #tpu.dot_dimension_numbers<[1], [0], [0], [1], [0, 0, 1, 1], [], []>} : vector<256x256xf32>, vector<256x64xf32>, vector<256x64xf32> -> vector<256x64xf32>
    %14 = vector.extract_strided_slice %7 {offsets = [256, 0], sizes = [256, 64], strides = [1, 1]} : vector<512x64xf32> to vector<256x64xf32>
    %c1 = arith.constant 1 : index
    %c0_10 = arith.constant 0 : index
    %c0_11 = arith.constant 0 : index
    %15 = vector.load %arg2[%c1, %c0_10, %c0_11] : memref<2x256x256xf32, #tpu.memory_space<vmem>>, vector<1x256x256xf32>
    %16 = vector.shape_cast %15 : vector<1x256x256xf32> to vector<256x256xf32>
    %cst_12 = arith.constant dense<0.000000e+00> : vector<256x64xf32>
    %17 = tpu.matmul %16, %14, %cst_12 {dimension_numbers = #tpu.dot_dimension_numbers<[1], [0], [0], [1], [0, 0, 1, 1], [], []>} : vector<256x256xf32>, vector<256x64xf32>, vector<256x64xf32> -> vector<256x64xf32>
    %18 = tpu.concatenate %13, %17 in 0 : vector<256x64xf32>, vector<256x64xf32> -> vector<512x64xf32>
    %cst_13 = arith.constant dense<0.000000e+00> : vector<512x128xf32>
    %19 = tpu.matmul %18, %8, %cst_13 {dimension_numbers = #tpu.dot_dimension_numbers<[1], [0], [0], [1], [0, 0, 1, 1], [], []>} : vector<512x64xf32>, vector<64x128xf32>, vector<512x128xf32> -> vector<512x128xf32>
    %20 = vector.broadcast %1 : vector<1x128xf32> to vector<512x128xf32>
    %21 = arith.addf %19, %20 : vector<512x128xf32>
    %cst_14 = arith.constant dense<0.000000e+00> : vector<512xf32>
    %22 = vector.multi_reduction <add>, %21, %cst_14 [1] : vector<512x128xf32> to vector<512xf32>
    %23 = vector.shape_cast %22 : vector<512xf32> to vector<512x1xf32>
    %cst_15 = arith.constant 1.280000e+02 : f32
    %24 = vector.broadcast %cst_15 : f32 to vector<512x1xf32>
    %25 = arith.divf %23, %24 : vector<512x1xf32>
    %26 = vector.broadcast %25 : vector<512x1xf32> to vector<512x128xf32>
    %27 = arith.subf %21, %26 : vector<512x128xf32>
    %28 = arith.mulf %27, %27 : vector<512x128xf32>
    %cst_16 = arith.constant dense<0.000000e+00> : vector<512xf32>
    %29 = vector.multi_reduction <add>, %28, %cst_16 [1] : vector<512x128xf32> to vector<512xf32>
    %30 = vector.shape_cast %29 : vector<512xf32> to vector<512x1xf32>
    %cst_17 = arith.constant 1.280000e+02 : f32
    %31 = vector.broadcast %cst_17 : f32 to vector<512x1xf32>
    %32 = arith.divf %30, %31 : vector<512x1xf32>
    %cst_18 = arith.constant 9.99999974E-6 : f32
    %33 = vector.broadcast %cst_18 : f32 to vector<512x1xf32>
    %34 = arith.addf %32, %33 : vector<512x1xf32>
    %35 = math.rsqrt %34 : vector<512x1xf32>
    %36 = vector.broadcast %35 : vector<512x1xf32> to vector<512x128xf32>
    %37 = arith.mulf %27, %36 : vector<512x128xf32>
    %38 = vector.broadcast %2 : vector<1x128xf32> to vector<512x128xf32>
    %39 = arith.mulf %37, %38 : vector<512x128xf32>
    %40 = vector.broadcast %3 : vector<1x128xf32> to vector<512x128xf32>
    %41 = arith.addf %39, %40 : vector<512x128xf32>
    %cst_19 = arith.constant 0.000000e+00 : f32
    %42 = vector.broadcast %cst_19 : f32 to vector<512x128xf32>
    %43 = arith.maximumf %41, %42 : vector<512x128xf32>
    %cst_20 = arith.constant dense<0.000000e+00> : vector<512x128xf32>
    %44 = tpu.matmul %43, %9, %cst_20 {dimension_numbers = #tpu.dot_dimension_numbers<[1], [0], [0], [1], [0, 0, 1, 1], [], []>} : vector<512x128xf32>, vector<128x128xf32>, vector<512x128xf32> -> vector<512x128xf32>
    %c0_21 = arith.constant 0 : index
    %c0_22 = arith.constant 0 : index
    %c0_23 = arith.constant 0 : index
    %45 = vector.load %arg2[%c0_21, %c0_22, %c0_23] : memref<2x256x256xf32, #tpu.memory_space<vmem>>, vector<1x256x256xf32>
    %46 = vector.shape_cast %45 : vector<1x256x256xf32> to vector<256x256xf32>
    %47 = vector.extract_strided_slice %44 {offsets = [0, 0], sizes = [256, 128], strides = [1, 1]} : vector<512x128xf32> to vector<256x128xf32>
    %cst_24 = arith.constant dense<0.000000e+00> : vector<256x128xf32>
    %48 = tpu.matmul %46, %47, %cst_24 {dimension_numbers = #tpu.dot_dimension_numbers<[1], [0], [0], [1], [0, 0, 1, 1], [], []>} : vector<256x256xf32>, vector<256x128xf32>, vector<256x128xf32> -> vector<256x128xf32>
    %c1_25 = arith.constant 1 : index
    %c0_26 = arith.constant 0 : index
    %c0_27 = arith.constant 0 : index
    %49 = vector.load %arg2[%c1_25, %c0_26, %c0_27] : memref<2x256x256xf32, #tpu.memory_space<vmem>>, vector<1x256x256xf32>
    %50 = vector.shape_cast %49 : vector<1x256x256xf32> to vector<256x256xf32>
    %51 = vector.extract_strided_slice %44 {offsets = [256, 0], sizes = [256, 128], strides = [1, 1]} : vector<512x128xf32> to vector<256x128xf32>
    %cst_28 = arith.constant dense<0.000000e+00> : vector<256x128xf32>
    %52 = tpu.matmul %50, %51, %cst_28 {dimension_numbers = #tpu.dot_dimension_numbers<[1], [0], [0], [1], [0, 0, 1, 1], [], []>} : vector<256x256xf32>, vector<256x128xf32>, vector<256x128xf32> -> vector<256x128xf32>
    %53 = tpu.concatenate %48, %52 in 0 : vector<256x128xf32>, vector<256x128xf32> -> vector<512x128xf32>
    %54 = vector.broadcast %4 : vector<1x128xf32> to vector<512x128xf32>
    %55 = arith.addf %53, %54 : vector<512x128xf32>
    %cst_29 = arith.constant dense<0.000000e+00> : vector<512xf32>
    %56 = vector.multi_reduction <add>, %55, %cst_29 [1] : vector<512x128xf32> to vector<512xf32>
    %57 = vector.shape_cast %56 : vector<512xf32> to vector<512x1xf32>
    %cst_30 = arith.constant 1.280000e+02 : f32
    %58 = vector.broadcast %cst_30 : f32 to vector<512x1xf32>
    %59 = arith.divf %57, %58 : vector<512x1xf32>
    %60 = vector.broadcast %59 : vector<512x1xf32> to vector<512x128xf32>
    %61 = arith.subf %55, %60 : vector<512x128xf32>
    %62 = arith.mulf %61, %61 : vector<512x128xf32>
    %cst_31 = arith.constant dense<0.000000e+00> : vector<512xf32>
    %63 = vector.multi_reduction <add>, %62, %cst_31 [1] : vector<512x128xf32> to vector<512xf32>
    %64 = vector.shape_cast %63 : vector<512xf32> to vector<512x1xf32>
    %cst_32 = arith.constant 1.280000e+02 : f32
    %65 = vector.broadcast %cst_32 : f32 to vector<512x1xf32>
    %66 = arith.divf %64, %65 : vector<512x1xf32>
    %cst_33 = arith.constant 9.99999974E-6 : f32
    %67 = vector.broadcast %cst_33 : f32 to vector<512x1xf32>
    %68 = arith.addf %66, %67 : vector<512x1xf32>
    %69 = math.rsqrt %68 : vector<512x1xf32>
    %70 = vector.broadcast %69 : vector<512x1xf32> to vector<512x128xf32>
    %71 = arith.mulf %61, %70 : vector<512x128xf32>
    %72 = vector.shape_cast %71 : vector<512x128xf32> to vector<64x8x128xf32>
    %cst_34 = arith.constant dense<0.000000e+00> : vector<64x128xf32>
    %73 = vector.multi_reduction <add>, %72, %cst_34 [1] : vector<64x8x128xf32> to vector<64x128xf32>
    %cst_35 = arith.constant 8.000000e+00 : f32
    %74 = vector.broadcast %cst_35 : f32 to vector<64x128xf32>
    %75 = arith.divf %73, %74 : vector<64x128xf32>
    %76 = vector.broadcast %5 : vector<1x128xf32> to vector<64x128xf32>
    %77 = arith.mulf %75, %76 : vector<64x128xf32>
    %78 = vector.broadcast %6 : vector<1x128xf32> to vector<64x128xf32>
    %79 = arith.addf %77, %78 : vector<64x128xf32>
    %c0_36 = arith.constant 0 : index
    %c0_37 = arith.constant 0 : index
    %80 = vector.load %arg6[%c0_36, %c0_37] : memref<64x128xf32, #tpu.memory_space<vmem>>, vector<64x128xf32>
    tpu.vector_store %arg6[%c0_36, %c0_37], %79 {strides = array<i32>} : memref<64x128xf32, #tpu.memory_space<vmem>>, vector<64x128xf32>,
    return
  }
  func.func @transform_0(%arg0: i32) -> (i32, i32) {
    %c0_i32 = arith.constant 0 : i32
    %c0_i32_0 = arith.constant 0 : i32
    return %arg0, %c0_i32 : i32, i32
  }
  func.func @transform_1(%arg0: i32) -> (i32, i32, i32) {
    %c0_i32 = arith.constant 0 : i32
    %c0_i32_0 = arith.constant 0 : i32
    %c0_i32_1 = arith.constant 0 : i32
    return %arg0, %c0_i32, %c0_i32_0 : i32, i32, i32
  }
  func.func @transform_2(%arg0: i32) -> (i32, i32) {
    %c0_i32 = arith.constant 0 : i32
    %c0_i32_0 = arith.constant 0 : i32
    %c0_i32_1 = arith.constant 0 : i32
    return %c0_i32, %c0_i32_0 : i32, i32
  }
  func.func @transform_3(%arg0: i32) -> (i32, i32) {
    %c0_i32 = arith.constant 0 : i32
    %c0_i32_0 = arith.constant 0 : i32
    %c0_i32_1 = arith.constant 0 : i32
    return %c0_i32, %c0_i32_0 : i32, i32
  }
  func.func @transform_4(%arg0: i32) -> (i32, i32) {
    %c0_i32 = arith.constant 0 : i32
    %c0_i32_0 = arith.constant 0 : i32
    %c0_i32_1 = arith.constant 0 : i32
    return %c0_i32, %c0_i32_0 : i32, i32
  }
  func.func @transform_5(%arg0: i32) -> (i32, i32) {
    %c0_i32 = arith.constant 0 : i32
    %c0_i32_0 = arith.constant 0 : i32
    return %arg0, %c0_i32 : i32, i32
  }
}

</mosaic_0001>

<llo_original>
// kernel: tpu_custom_call.1
$region0: #{tpu_custom_call.1}
  #allocation0 [shape = 'u32[]', space=smem, size = 0x4, offset = 0x4, fixed_abs, tag = 'smem constant byte address 0x4 - core index']
  #allocation1 [shape = 'u32[144,128]{1,0:T(1,128)}', space=vmem, size = 0x12000, scoped, tag = 'internal scratch']
  %s0 = inlined_call_operand.vmem [shape: f32[1024,64], index: 0, kind: input, shape index: {}]
  %s1 = inlined_call_operand.hbm [shape: f32[4,256,256], index: 1, kind: input, shape index: {}]
  %s2 = inlined_call_operand.vmem [shape: f32[64,128], index: 2, kind: input, shape index: {}]
  %s3 = inlined_call_operand.vmem [shape: f32[128,128], index: 3, kind: input, shape index: {}]
  %s4 = inlined_call_operand.vmem [shape: f32[8,128], index: 4, kind: input, shape index: {}]
  %s5 = inlined_call_operand.hbm [shape: f32[128,128], index: 5, kind: output, shape index: {}]
  %s6 = sld [smem:[#allocation0]]
  $region57: #{tpu_custom_call.1} parent=0
    _
  %s8 = ssub.s32 1, %s6
  %s9 = scalar_select 0, %s8, %s6
  $region1: #{tpu_custom_call.1} parent=0
    #allocation2 [shape = 'u8[1048576]{0}', space=vmem, size = 0x100000, scoped, tag = 'input window, operand 1']
    #allocation3 [shape = 's32[2]{0}', space=sflag, size = 0x8, scoped, tag = 'scoped memory for tpu_custom_call.1']
    #allocation4 [shape = 's32[2]{0}', space=sflag, size = 0x8, scoped, tag = 'scoped memory for tpu_custom_call.1']
    #allocation5 [shape = 'u8[65536]{0}', space=vmem, size = 0x10000, scoped, tag = 'output window, operand 0']
    %10 = vsyncpa [#allocation3], 0
    %s11 = scalar_lea.sflag [#allocation3], 1
    %12 = vsyncpa %s11, 0
    %13 = vsyncpa [#allocation4], 0
    %s14 = scalar_lea.sflag [#allocation4], 1
    %15 = vsyncpa %s14, 0
    loop: start=0, step=1, limit=4
    $region2: #{tpu_custom_call.1} parent=1 // loop_pre_header
      _
    $region3: #{tpu_custom_call.1} parent=1 // loop_header
      %s17 = sphi 0, %s21
      %p18 = scmp.ge.s32.totalorder %s17, 4
      %s27 = sphi 0, %s29
      %s30 = sphi 0, %s27
      %s31 = sphi 0, %s30
      %s47 = sphi 0, %s31
      %s53 = sphi 0, %s55
      %s56 = sphi 0, %s53
      %s57 = sphi 0, %s56
      %s73 = sphi 0, %s57
      %s77 = sphi 0, %s77
      %s79 = sphi 0, %s77
      %s80 = sphi 0, %s79
      %s94 = sphi 0, %s80
      %s98 = sphi 0, %s98
      %s100 = sphi 0, %s98
      %s101 = sphi 0, %s100
      %s115 = sphi 0, %s101
      %s119 = sphi 0, %s119
      %s121 = sphi 0, %s119
      %s122 = sphi 0, %s121
      %s136 = sphi 0, %s122
      %s142 = sphi 0, %s144
      %s145 = sphi 0, %s142
      %s146 = sphi 0, %s145
      %s162 = sphi 0, %s146
    $region4: #{tpu_custom_call.1} parent=1 // loop_header_branch
      %20 = sbr.rel (%p18) target = $region8
    $region5: #{tpu_custom_call.1} parent=1 // loop_body
      %s22 = ssub.s32 %s17, 1
      %s23 = ssub.s32 %s17, 2
      %s24 = sadd.s32 %s17, 1
      %s25 = ssub.s32 %s17, %s24
      %p26 = scmp.eq.s32.totalorder %s25, 0
      %s28 = sadd.s32 %s27, 1
      %s29 = scalar_select %p26, %s27, %s28
      %p32 = pneg %p26
      %p33 = scmp.eq.s32.totalorder %s17, 1
      %p34 = por %p32, %p33
      %p35 = scmp.ne.s32.totalorder %s27, %s30
      %p36 = scmp.eq.s32.totalorder %s17, 0
      %p37 = por %p35, %p36
      %p38 = scmp.ne.s32.totalorder %s27, %s30
      %p39 = scmp.eq.s32.totalorder %s22, 1
      %p40 = por %p38, %p39
      %p41 = scmp.ne.s32.totalorder %s30, %s31
      %p42 = scmp.eq.s32.totalorder %s22, 0
      %p43 = por %p41, %p42
      %p44 = scmp.ne.s32.totalorder %s30, %s31
      %p45 = scmp.eq.s32.totalorder %s23, 1
      %p46 = por %p44, %p45
      %p48 = scmp.ne.s32.totalorder %s31, %s47
      %p49 = scmp.eq.s32.totalorder %s23, 0
      %p50 = por %p48, %p49
      %s51 = ssub.s32 %s17, %s24
      %p52 = scmp.eq.s32.totalorder %s51, 0
      %s54 = sadd.s32 %s53, 1
      %s55 = scalar_select %p52, %s53, %s54
      %p58 = pneg %p52
      %p59 = scmp.eq.s32.totalorder %s17, 1
      %p60 = por %p58, %p59
      %p61 = scmp.ne.s32.totalorder %s53, %s56
      %p62 = scmp.eq.s32.totalorder %s17, 0
      %p63 = por %p61, %p62
      %p64 = scmp.ne.s32.totalorder %s53, %s56
      %p65 = scmp.eq.s32.totalorder %s22, 1
      %p66 = por %p64, %p65
      %p67 = scmp.ne.s32.totalorder %s56, %s57
      %p68 = scmp.eq.s32.totalorder %s22, 0
      %p69 = por %p67, %p68
      %p70 = scmp.ne.s32.totalorder %s56, %s57
      %p71 = scmp.eq.s32.totalorder %s23, 1
      %p72 = por %p70, %p71
      %p74 = scmp.ne.s32.totalorder %s57, %s73
      %p75 = scmp.eq.s32.totalorder %s23, 0
      %p76 = por %p74, %p75
      %s78 = sadd.s32 %s77, 1
      %p81 = scmp.eq.s32.totalorder %s17, 1
      %p82 = scmp.ne.s32.totalorder %s77, %s79
      %p83 = scmp.eq.s32.totalorder %s17, 0
      %p84 = por %p82, %p83
      %p85 = scmp.ne.s32.totalorder %s77, %s79
      %p86 = scmp.eq.s32.totalorder %s22, 1
      %p87 = por %p85, %p86
      %p88 = scmp.ne.s32.totalorder %s79, %s80
      %p89 = scmp.eq.s32.totalorder %s22, 0
      %p90 = por %p88, %p89
      %p91 = scmp.ne.s32.totalorder %s79, %s80
      %p92 = scmp.eq.s32.totalorder %s23, 1
      %p93 = por %p91, %p92
      %p95 = scmp.ne.s32.totalorder %s80, %s94
      %p96 = scmp.eq.s32.totalorder %s23, 0
      %p97 = por %p95, %p96
      %s99 = sadd.s32 %s98, 1
      %p102 = scmp.eq.s32.totalorder %s17, 1
      %p103 = scmp.ne.s32.totalorder %s98, %s100
      %p104 = scmp.eq.s32.totalorder %s17, 0
      %p105 = por %p103, %p104
      %p106 = scmp.ne.s32.totalorder %s98, %s100
      %p107 = scmp.eq.s32.totalorder %s22, 1
      %p108 = por %p106, %p107
      %p109 = scmp.ne.s32.totalorder %s100, %s101
      %p110 = scmp.eq.s32.totalorder %s22, 0
      %p111 = por %p109, %p110
      %p112 = scmp.ne.s32.totalorder %s100, %s101
      %p113 = scmp.eq.s32.totalorder %s23, 1
      %p114 = por %p112, %p113
      %p116 = scmp.ne.s32.totalorder %s101, %s115
      %p117 = scmp.eq.s32.totalorder %s23, 0
      %p118 = por %p116, %p117
      %s120 = sadd.s32 %s119, 1
      %p123 = scmp.eq.s32.totalorder %s17, 1
      %p124 = scmp.ne.s32.totalorder %s119, %s121
      %p125 = scmp.eq.s32.totalorder %s17, 0
      %p126 = por %p124, %p125
      %p127 = scmp.ne.s32.totalorder %s119, %s121
      %p128 = scmp.eq.s32.totalorder %s22, 1
      %p129 = por %p127, %p128
      %p130 = scmp.ne.s32.totalorder %s121, %s122
      %p131 = scmp.eq.s32.totalorder %s22, 0
      %p132 = por %p130, %p131
      %p133 = scmp.ne.s32.totalorder %s121, %s122
      %p134 = scmp.eq.s32.totalorder %s23, 1
      %p135 = por %p133, %p134
      %p137 = scmp.ne.s32.totalorder %s122, %s136
      %p138 = scmp.eq.s32.totalorder %s23, 0
      %p139 = por %p137, %p138
      %s140 = ssub.s32 %s17, %s24
      %p141 = scmp.eq.s32.totalorder %s140, 0
      %s143 = sadd.s32 %s142, 1
      %s144 = scalar_select %p141, %s142, %s143
      %p147 = pneg %p141
      %p148 = scmp.eq.s32.totalorder %s17, 1
      %p149 = por %p147, %p148
      %p150 = scmp.ne.s32.totalorder %s142, %s145
      %p151 = scmp.eq.s32.totalorder %s17, 0
      %p152 = por %p150, %p151
      %p153 = scmp.ne.s32.totalorder %s142, %s145
      %p154 = scmp.eq.s32.totalorder %s22, 1
      %p155 = por %p153, %p154
      %p156 = scmp.ne.s32.totalorder %s145, %s146
      %p157 = scmp.eq.s32.totalorder %s22, 0
      %p158 = por %p156, %p157
      %p159 = scmp.ne.s32.totalorder %s145, %s146
      %p160 = scmp.eq.s32.totalorder %s23, 1
      %p161 = por %p159, %p160
      %p163 = scmp.ne.s32.totalorder %s146, %s162
      %p164 = scmp.eq.s32.totalorder %s23, 0
      %p165 = por %p163, %p164
      %p166 = scmp.le.s32.totalorder 1, %s17
      %p167 = scmp.lt.s32.totalorder %s17, 3
      %p168 = pnand %p166, %p167
      %p169 = pneg %p168
      // Predicated region
      $region9: #{tpu_custom_call.1} parent=5 // pred_check
        _
      $region10: #{tpu_custom_call.1} parent=5 // pred_check_branch
        %171 = sbr.rel (%p168) target = $region12
      $region11: #{tpu_custom_call.1} parent=5 // pred_region
        %s172 = ssub.s32 %s17, 1
        // Predicated region
        $region13: #{tpu_custom_call.1} parent=11 // pred_check
          %p173 = pneg %p90
        $region14: #{tpu_custom_call.1} parent=11 // pred_check_branch
          %175 = sbr.rel (%p173) target = $region16
        $region15: #{tpu_custom_call.1} parent=11 // pred_region
          _
        $region16: #{tpu_custom_call.1} parent=11 // pred_fallthru
          _
        // Predicated region
        $region17: #{tpu_custom_call.1} parent=11 // pred_check
          %p176 = pneg %p111
        $region18: #{tpu_custom_call.1} parent=11 // pred_check_branch
          %178 = sbr.rel (%p176) target = $region20
        $region19: #{tpu_custom_call.1} parent=11 // pred_region
          _
        $region20: #{tpu_custom_call.1} parent=11 // pred_fallthru
          _
        // Predicated region
        $region21: #{tpu_custom_call.1} parent=11 // pred_check
          %p179 = pneg %p132
        $region22: #{tpu_custom_call.1} parent=11 // pred_check_branch
          %181 = sbr.rel (%p179) target = $region24
        $region23: #{tpu_custom_call.1} parent=11 // pred_region
          _
        $region24: #{tpu_custom_call.1} parent=11 // pred_fallthru
          _
      $region12: #{tpu_custom_call.1} parent=5 // pred_fallthru
        _
      %p182 = scmp.lt.s32.totalorder %s17, 2
      // Predicated region
      $region25: #{tpu_custom_call.1} parent=5 // pred_check
        %p183 = pneg %p182
      $region26: #{tpu_custom_call.1} parent=5 // pred_check_branch
        %185 = sbr.rel (%p183) target = $region28
      $region27: #{tpu_custom_call.1} parent=5 // pred_region
        // Predicated region
        $region29: #{tpu_custom_call.1} parent=27 // pred_check
          %p186 = pneg %p37
        $region30: #{tpu_custom_call.1} parent=27 // pred_check_branch
          %188 = sbr.rel (%p186) target = $region32
        $region31: #{tpu_custom_call.1} parent=27 // pred_region
          %s189 = smul.u32 64, %s17
          %p190 = scmp.lt.s32.totalorder %s189, 127
          %s191 = scalar_select %p190, %s189, 127
          %s192 = smul.addr %s191, 8
          %s193 = scalar_lea.vmem %s0, %s192
          %s194 = smul.u32 64, %s17
        $region32: #{tpu_custom_call.1} parent=27 // pred_fallthru
          _
        // Predicated region
        $region33: #{tpu_custom_call.1} parent=27 // pred_check
          %p195 = pneg %p63
        $region34: #{tpu_custom_call.1} parent=27 // pred_check_branch
          %197 = sbr.rel (%p195) target = $region36
        $region35: #{tpu_custom_call.1} parent=27 // pred_region
          %s198 = sand.u32 %s53, 1
          %s199 = scalar_lea.sflag [#allocation3], %s198
          %s200 = sand.u32 %s53, 1
          %s201 = smul.addr %s200, 1024
          %s202 = scalar_lea.vmem [#allocation2], %s201
          %s203 = smul.u32 2, %s17
          %s205 = ssub.s32 16384, 16384
          %206 = vsyncadd %s199, %s205
          %s207 = smul.addr %s203, 64
          %s208 = smul.addr %s207, 128
          %s209 = scalar_lea.hbm %s1, %s208
          %s210 = sshll.u32 %s202, 4
          %s211 = int_to_ptr.vmem [resolvable:$true] %s210
          %216 = dma.hbm_to_vmem [thread:$0]  %s209, 16384, %s211, %s199, 256, 256, 16
        $region36: #{tpu_custom_call.1} parent=27 // pred_fallthru
          _
      $region28: #{tpu_custom_call.1} parent=5 // pred_fallthru
        _
      %p217 = scmp.le.s32.totalorder 1, %s17
      %p218 = scmp.lt.s32.totalorder %s17, 3
      %p219 = pnand %p217, %p218
      %p220 = pneg %p219
      // Predicated region
      $region37: #{tpu_custom_call.1} parent=5 // pred_check
        _
      $region38: #{tpu_custom_call.1} parent=5 // pred_check_branch
        %222 = sbr.rel (%p219) target = $region40
      $region39: #{tpu_custom_call.1} parent=5 // pred_region
        %s223 = ssub.s32 %s17, 1
        %s224 = sand.u32 %s56, 1
        %s225 = scalar_lea.sflag [#allocation3], %s224
        %s226 = sand.u32 %s56, 1
        %s227 = smul.addr %s226, 1024
        %s228 = scalar_lea.vmem [#allocation2], %s227
        // Predicated region
        $region41: #{tpu_custom_call.1} parent=39 // pred_check
          %p229 = pneg %p69
        $region42: #{tpu_custom_call.1} parent=39 // pred_check_branch
          %231 = sbr.rel (%p229) target = $region44
        $region43: #{tpu_custom_call.1} parent=39 // pred_region
          %232 = dma.done %s225, 16384
        $region44: #{tpu_custom_call.1} parent=39 // pred_fallthru
          _
        %s233 = smul.u32 64, %s22
        %p234 = scmp.lt.s32.totalorder %s233, 127
        %s235 = scalar_select %p234, %s233, 127
        %s236 = smul.addr %s235, 8
        %s237 = scalar_lea.vmem %s0, %s236
        %p238 = pneg %p43
        %p239 = pneg %p40
        %s240 = sand.u32 %s56, 1
        %s241 = scalar_lea.sflag [#allocation3], %s240
        %s242 = sand.u32 %s56, 1
        %s243 = smul.addr %s242, 1024
        %s244 = scalar_lea.vmem [#allocation2], %s243
        %p245 = pneg %p69
        %p246 = pneg %p66
        %p247 = pneg %p90
        %p248 = pneg %p87
        %p249 = pneg %p111
        %p250 = pneg %p108
        %p251 = pneg %p132
        %p252 = pneg %p129
        %p253 = pneg %p158
        %p254 = pneg %p155
        %s255 = sand.u32 %s145, 1
        %s256 = scalar_lea.sflag [#allocation4], %s255
        %s257 = sand.u32 %s145, 1
        %s258 = smul.addr %s257, 64
        %s259 = scalar_lea.vmem [#allocation5], %s258
        %s260 = smul.u32 64, %s22
        %p261 = scmp.lt.s32.totalorder %s260, 127
        %s262 = scalar_select %p261, %s260, 127
        %s263 = smul.addr %s262, 8
        %s264 = scalar_lea.vmem %s0, %s263
        %s265 = smul.u32 64, %s22
        %s266 = smul.u32 2, %s22
        %s267 = smul.u32 8, %s22
        %v268 = vld [vmem:[%s4] sm:$0xff]
        %v269 = vld [vmem:[%s264] sm:$0xff]
        %v270 = vld [vmem:[%s264 + $0x8] sm:$0xff]
        %v271 = vld [vmem:[%s264 + $0x10] sm:$0xff]
        %v272 = vld [vmem:[%s264 + $0x18] sm:$0xff]
        %v273 = vld [vmem:[%s264 + $0x20] sm:$0xff]
        %v274 = vld [vmem:[%s264 + $0x28] sm:$0xff]
        %v275 = vld [vmem:[%s264 + $0x30] sm:$0xff]
        %v276 = vld [vmem:[%s264 + $0x38] sm:$0xff]
        %v277 = vld [vmem:[%s264 + $0x40] sm:$0xff]
        %v278 = vld [vmem:[%s264 + $0x48] sm:$0xff]
        %v279 = vld [vmem:[%s264 + $0x50] sm:$0xff]
        %v280 = vld [vmem:[%s264 + $0x58] sm:$0xff]
        %v281 = vld [vmem:[%s264 + $0x60] sm:$0xff]
        %v282 = vld [vmem:[%s264 + $0x68] sm:$0xff]
        %v283 = vld [vmem:[%s264 + $0x70] sm:$0xff]
        %v284 = vld [vmem:[%s264 + $0x78] sm:$0xff]
        %v285 = vld [vmem:[%s264 + $0x80] sm:$0xff]
        %v286 = vld [vmem:[%s264 + $0x88] sm:$0xff]
        %v287 = vld [vmem:[%s264 + $0x90] sm:$0xff]
        %v288 = vld [vmem:[%s264 + $0x98] sm:$0xff]
        %v289 = vld [vmem:[%s264 + $0xa0] sm:$0xff]
        %v290 = vld [vmem:[%s264 + $0xa8] sm:$0xff]
        %v291 = vld [vmem:[%s264 + $0xb0] sm:$0xff]
        %v292 = vld [vmem:[%s264 + $0xb8] sm:$0xff]
        %v293 = vld [vmem:[%s264 + $0xc0] sm:$0xff]
        %v294 = vld [vmem:[%s264 + $0xc8] sm:$0xff]
        %v295 = vld [vmem:[%s264 + $0xd0] sm:$0xff]
        %v296 = vld [vmem:[%s264 + $0xd8] sm:$0xff]
        %v297 = vld [vmem:[%s264 + $0xe0] sm:$0xff]
        %v298 = vld [vmem:[%s264 + $0xe8] sm:$0xff]
        %v299 = vld [vmem:[%s264 + $0xf0] sm:$0xff]
        %v300 = vld [vmem:[%s264 + $0xf8] sm:$0xff]
        %v301 = vld [vmem:[%s264 + $0x100] sm:$0xff]
        %v302 = vld [vmem:[%s264 + $0x108] sm:$0xff]
        %v303 = vld [vmem:[%s264 + $0x110] sm:$0xff]
        %v304 = vld [vmem:[%s264 + $0x118] sm:$0xff]
        %v305 = vld [vmem:[%s264 + $0x120] sm:$0xff]
        %v306 = vld [vmem:[%s264 + $0x128] sm:$0xff]
        %v307 = vld [vmem:[%s264 + $0x130] sm:$0xff]
        %v308 = vld [vmem:[%s264 + $0x138] sm:$0xff]
        %v309 = vld [vmem:[%s264 + $0x140] sm:$0xff]
        %v310 = vld [vmem:[%s264 + $0x148] sm:$0xff]
        %v311 = vld [vmem:[%s264 + $0x150] sm:$0xff]
        %v312 = vld [vmem:[%s264 + $0x158] sm:$0xff]
        %v313 = vld [vmem:[%s264 + $0x160] sm:$0xff]
        %v314 = vld [vmem:[%s264 + $0x168] sm:$0xff]
        %v315 = vld [vmem:[%s264 + $0x170] sm:$0xff]
        %v316 = vld [vmem:[%s264 + $0x178] sm:$0xff]
        %v317 = vld [vmem:[%s264 + $0x180] sm:$0xff]
        %v318 = vld [vmem:[%s264 + $0x188] sm:$0xff]
        %v319 = vld [vmem:[%s264 + $0x190] sm:$0xff]
        %v320 = vld [vmem:[%s264 + $0x198] sm:$0xff]
        %v321 = vld [vmem:[%s264 + $0x1a0] sm:$0xff]
        %v322 = vld [vmem:[%s264 + $0x1a8] sm:$0xff]
        %v323 = vld [vmem:[%s264 + $0x1b0] sm:$0xff]
        %v324 = vld [vmem:[%s264 + $0x1b8] sm:$0xff]
        %v325 = vld [vmem:[%s264 + $0x1c0] sm:$0xff]
        %v326 = vld [vmem:[%s264 + $0x1c8] sm:$0xff]
        %v327 = vld [vmem:[%s264 + $0x1d0] sm:$0xff]
        %v328 = vld [vmem:[%s264 + $0x1d8] sm:$0xff]
        %v329 = vld [vmem:[%s264 + $0x1e0] sm:$0xff]
        %v330 = vld [vmem:[%s264 + $0x1e8] sm:$0xff]
        %v331 = vld [vmem:[%s264 + $0x1f0] sm:$0xff]
        %v332 = vld [vmem:[%s264 + $0x1f8] sm:$0xff]
        %v333 = vld [vmem:[%s2] sm:$0xff]
        %v334 = vld [vmem:[%s2 + $0x8] sm:$0xff]
        %v335 = vld [vmem:[%s2 + $0x10] sm:$0xff]
        %v336 = vld [vmem:[%s2 + $0x18] sm:$0xff]
        %v337 = vld [vmem:[%s2 + $0x20] sm:$0xff]
        %v338 = vld [vmem:[%s2 + $0x28] sm:$0xff]
        %v339 = vld [vmem:[%s2 + $0x30] sm:$0xff]
        %v340 = vld [vmem:[%s2 + $0x38] sm:$0xff]
        %v341 = vld [vmem:[%s3] sm:$0xff]
        %v342 = vld [vmem:[%s3 + $0x8] sm:$0xff]
        %v343 = vld [vmem:[%s3 + $0x10] sm:$0xff]
        %v344 = vld [vmem:[%s3 + $0x18] sm:$0xff]
        %v345 = vld [vmem:[%s3 + $0x20] sm:$0xff]
        %v346 = vld [vmem:[%s3 + $0x28] sm:$0xff]
        %v347 = vld [vmem:[%s3 + $0x30] sm:$0xff]
        %v348 = vld [vmem:[%s3 + $0x38] sm:$0xff]
        %v349 = vld [vmem:[%s3 + $0x40] sm:$0xff]
        %v350 = vld [vmem:[%s3 + $0x48] sm:$0xff]
        %v351 = vld [vmem:[%s3 + $0x50] sm:$0xff]
        %v352 = vld [vmem:[%s3 + $0x58] sm:$0xff]
        %v353 = vld [vmem:[%s3 + $0x60] sm:$0xff]
        %v354 = vld [vmem:[%s3 + $0x68] sm:$0xff]
        %v355 = vld [vmem:[%s3 + $0x70] sm:$0xff]
        %v356 = vld [vmem:[%s3 + $0x78] sm:$0xff]
        %v357 = vld [vmem:[%s228] sm:$0xff]
        %v358 = vld [vmem:[%s228 + $0x8] sm:$0xff]
        %v359 = vld [vmem:[%s228 + $0x10] sm:$0xff]
        %v360 = vld [vmem:[%s228 + $0x18] sm:$0xff]
        %v361 = vld [vmem:[%s228 + $0x20] sm:$0xff]
        %v362 = vld [vmem:[%s228 + $0x28] sm:$0xff]
        %v363 = vld [vmem:[%s228 + $0x30] sm:$0xff]
        %v364 = vld [vmem:[%s228 + $0x38] sm:$0xff]
        %v365 = vld [vmem:[%s228 + $0x40] sm:$0xff]
        %v366 = vld [vmem:[%s228 + $0x48] sm:$0xff]
        %v367 = vld [vmem:[%s228 + $0x50] sm:$0xff]
        %v368 = vld [vmem:[%s228 + $0x58] sm:$0xff]
        %v369 = vld [vmem:[%s228 + $0x60] sm:$0xff]
        %v370 = vld [vmem:[%s228 + $0x68] sm:$0xff]
        %v371 = vld [vmem:[%s228 + $0x70] sm:$0xff]
        %v372 = vld [vmem:[%s228 + $0x78] sm:$0xff]
        %v373 = vld [vmem:[%s228 + $0x80] sm:$0xff]
        %v374 = vld [vmem:[%s228 + $0x88] sm:$0xff]
        %v375 = vld [vmem:[%s228 + $0x90] sm:$0xff]
        %v376 = vld [vmem:[%s228 + $0x98] sm:$0xff]
        %v377 = vld [vmem:[%s228 + $0xa0] sm:$0xff]
        %v378 = vld [vmem:[%s228 + $0xa8] sm:$0xff]
        %v379 = vld [vmem:[%s228 + $0xb0] sm:$0xff]
        %v380 = vld [vmem:[%s228 + $0xb8] sm:$0xff]
        %v381 = vld [vmem:[%s228 + $0xc0] sm:$0xff]
        %v382 = vld [vmem:[%s228 + $0xc8] sm:$0xff]
        %v383 = vld [vmem:[%s228 + $0xd0] sm:$0xff]
        %v384 = vld [vmem:[%s228 + $0xd8] sm:$0xff]
        %v385 = vld [vmem:[%s228 + $0xe0] sm:$0xff]
        %v386 = vld [vmem:[%s228 + $0xe8] sm:$0xff]
        %v387 = vld [vmem:[%s228 + $0xf0] sm:$0xff]
        %v388 = vld [vmem:[%s228 + $0xf8] sm:$0xff]
        %v389 = vld [vmem:[%s228 + $0x100] sm:$0xff]
        %v390 = vld [vmem:[%s228 + $0x108] sm:$0xff]
        %v391 = vld [vmem:[%s228 + $0x110] sm:$0xff]
        %v392 = vld [vmem:[%s228 + $0x118] sm:$0xff]
        %v393 = vld [vmem:[%s228 + $0x120] sm:$0xff]
        %v394 = vld [vmem:[%s228 + $0x128] sm:$0xff]
        %v395 = vld [vmem:[%s228 + $0x130] sm:$0xff]
        %v396 = vld [vmem:[%s228 + $0x138] sm:$0xff]
        %v397 = vld [vmem:[%s228 + $0x140] sm:$0xff]
        %v398 = vld [vmem:[%s228 + $0x148] sm:$0xff]
        %v399 = vld [vmem:[%s228 + $0x150] sm:$0xff]
        %v400 = vld [vmem:[%s228 + $0x158] sm:$0xff]
        %v401 = vld [vmem:[%s228 + $0x160] sm:$0xff]
        %v402 = vld [vmem:[%s228 + $0x168] sm:$0xff]
        %v403 = vld [vmem:[%s228 + $0x170] sm:$0xff]
        %v404 = vld [vmem:[%s228 + $0x178] sm:$0xff]
        %v405 = vld [vmem:[%s228 + $0x180] sm:$0xff]
        %v406 = vld [vmem:[%s228 + $0x188] sm:$0xff]
        %v407 = vld [vmem:[%s228 + $0x190] sm:$0xff]
        %v408 = vld [vmem:[%s228 + $0x198] sm:$0xff]
        %v409 = vld [vmem:[%s228 + $0x1a0] sm:$0xff]
        %v410 = vld [vmem:[%s228 + $0x1a8] sm:$0xff]
        %v411 = vld [vmem:[%s228 + $0x1b0] sm:$0xff]
        %v412 = vld [vmem:[%s228 + $0x1b8] sm:$0xff]
        %v413 = vld [vmem:[%s228 + $0x1c0] sm:$0xff]
        %v414 = vld [vmem:[%s228 + $0x1c8] sm:$0xff]
        %v415 = vld [vmem:[%s228 + $0x1d0] sm:$0xff]
        %v416 = vld [vmem:[%s228 + $0x1d8] sm:$0xff]
        %v417 = vld [vmem:[%s228 + $0x1e0] sm:$0xff]
        %v418 = vld [vmem:[%s228 + $0x1e8] sm:$0xff]
        %v419 = vld [vmem:[%s228 + $0x1f0] sm:$0xff]
        %v420 = vld [vmem:[%s228 + $0x1f8] sm:$0xff]
        %421 = vmatprep.subr.mxu0 0.0
        %422 = vmatpush1.msra.mxu0 %v269
        %423 = vmatprep.subr.mxu0 0.0
        %424 = vmatpush1.msra.mxu0 %v270
        %425 = vmatprep.subr.mxu0 0.0
        %426 = vmatpush1.msra.mxu0 %v271
        %427 = vmatprep.subr.mxu0 0.0
        %428 = vmatpush1.msra.mxu0 %v272
        %429 = vmatprep.subr.mxu0 0.0
        %430 = vmatpush1.msra.mxu0 %v273
        %431 = vmatprep.subr.mxu0 0.0
        %432 = vmatpush1.msra.mxu0 %v274
        %433 = vmatprep.subr.mxu0 0.0
        %434 = vmatpush1.msra.mxu0 %v275
        %435 = vmatprep.subr.mxu0 0.0
        %436 = vmatpush1.msra.mxu0 %v276
        %437 = vmatprep.subr.mxu0 0.0
        %438 = vmatpush1.msra.mxu0 %v277
        %439 = vmatprep.subr.mxu0 0.0
        %440 = vmatpush1.msra.mxu0 %v278
        %441 = vmatprep.subr.mxu0 0.0
        %442 = vmatpush1.msra.mxu0 %v279
        %443 = vmatprep.subr.mxu0 0.0
        %444 = vmatpush1.msra.mxu0 %v280
        %445 = vmatprep.subr.mxu0 0.0
        %446 = vmatpush1.msra.mxu0 %v281
        %447 = vmatprep.subr.mxu0 0.0
        %448 = vmatpush1.msra.mxu0 %v282
        %449 = vmatprep.subr.mxu0 0.0
        %450 = vmatpush1.msra.mxu0 %v283
        %451 = vmatprep.subr.mxu0 0.0
        %452 = vmatpush1.msra.mxu0 %v284
        %453 = vmatprep.subr.mxu0 0.0
        %454 = vmatpush1.msra.mxu0 %v285
        %455 = vmatprep.subr.mxu0 0.0
        %456 = vmatpush1.msra.mxu0 %v286
        %457 = vmatprep.subr.mxu0 0.0
        %458 = vmatpush1.msra.mxu0 %v287
        %459 = vmatprep.subr.mxu0 0.0
        %460 = vmatpush1.msra.mxu0 %v288
        %461 = vmatprep.subr.mxu0 0.0
        %462 = vmatpush1.msra.mxu0 %v289
        %463 = vmatprep.subr.mxu0 0.0
        %464 = vmatpush1.msra.mxu0 %v290
        %465 = vmatprep.subr.mxu0 0.0
        %466 = vmatpush1.msra.mxu0 %v291
        %467 = vmatprep.subr.mxu0 0.0
        %468 = vmatpush1.msra.mxu0 %v292
        %469 = vmatprep.subr.mxu0 0.0
        %470 = vmatpush1.msra.mxu0 %v293
        %471 = vmatprep.subr.mxu0 0.0
        %472 = vmatpush1.msra.mxu0 %v294
        %473 = vmatprep.subr.mxu0 0.0
        %474 = vmatpush1.msra.mxu0 %v295
        %475 = vmatprep.subr.mxu0 0.0
        %476 = vmatpush1.msra.mxu0 %v296
        %477 = vmatprep.subr.mxu0 0.0
        %478 = vmatpush1.msra.mxu0 %v297
        %479 = vmatprep.subr.mxu0 0.0
        %480 = vmatpush1.msra.mxu0 %v298
        %481 = vmatprep.subr.mxu0 0.0
        %482 = vmatpush1.msra.mxu0 %v299
        %483 = vmatprep.subr.mxu0 0.0
        %484 = vmatpush1.msra.mxu0 %v300
        %485 = vmatprep.mubr.f32.mxu0 %v358
        %486 = vmatmul.mubr.f32.gmra.mrb[0].mxu0 %v357
        %v487 = vpop.f32.mrb[0].mxu0
        %v488 = vadd.f32 0.0, %v487
        %v489 = vpop.f32.mrb[0].mxu0
        %490 = vmatprep.mubr.f32.mxu0 %v360
        %491 = vmatmul.mubr.f32.gmra.mrb[0].mxu0 %v359
        %v492 = vpop.f32.mrb[0].mxu0
        %v493 = vadd.f32 0.0, %v492
        %v494 = vpop.f32.mrb[0].mxu0
        %495 = vmatprep.mubr.f32.mxu0 %v362
        %496 = vmatmul.mubr.f32.gmra.mrb[0].mxu0 %v361
        %v497 = vpop.f32.mrb[0].mxu0
        %v498 = vadd.f32 0.0, %v497
        %v499 = vpop.f32.mrb[0].mxu0
        %500 = vmatprep.mubr.f32.mxu0 %v364
        %501 = vmatmul.mubr.f32.gmra.mrb[0].mxu0 %v363
        %v502 = vpop.f32.mrb[0].mxu0
        %v503 = vadd.f32 0.0, %v502
        %v504 = vpop.f32.mrb[0].mxu0
        %505 = vmatprep.mubr.f32.mxu0 %v366
        %506 = vmatmul.mubr.f32.gmra.mrb[0].mxu0 %v365
        %v507 = vpop.f32.mrb[0].mxu0
        %v508 = vadd.f32 0.0, %v507
        %v509 = vpop.f32.mrb[0].mxu0
        %510 = vmatprep.mubr.f32.mxu0 %v368
        %511 = vmatmul.mubr.f32.gmra.mrb[0].mxu0 %v367
        %v512 = vpop.f32.mrb[0].mxu0
        %v513 = vadd.f32 0.0, %v512
        %v514 = vpop.f32.mrb[0].mxu0
        %515 = vmatprep.mubr.f32.mxu0 %v370
        %516 = vmatmul.mubr.f32.gmra.mrb[0].mxu0 %v369
        %v517 = vpop.f32.mrb[0].mxu0
        %v518 = vadd.f32 0.0, %v517
        %v519 = vpop.f32.mrb[0].mxu0
        %520 = vmatprep.mubr.f32.mxu0 %v372
        %521 = vmatmul.mubr.f32.gmra.mrb[0].mxu0 %v371
        %v522 = vpop.f32.mrb[0].mxu0
        %v523 = vadd.f32 0.0, %v522
        %v524 = vpop.f32.mrb[0].mxu0
        %525 = vmatprep.mubr.f32.mxu0 %v374
        %526 = vmatmul.mubr.f32.gmra.mrb[0].mxu0 %v373
        %v527 = vpop.f32.mrb[0].mxu0
        %v528 = vadd.f32 0.0, %v527
        %v529 = vpop.f32.mrb[0].mxu0
        %530 = vmatprep.mubr.f32.mxu0 %v376
        %531 = vmatmul.mubr.f32.gmra.mrb[0].mxu0 %v375
        %v532 = vpop.f32.mrb[0].mxu0
        %v533 = vadd.f32 0.0, %v532
        %v534 = vpop.f32.mrb[0].mxu0
        %535 = vmatprep.mubr.f32.mxu0 %v378
        %536 = vmatmul.mubr.f32.gmra.mrb[0].mxu0 %v377
        %v537 = vpop.f32.mrb[0].mxu0
        %v538 = vadd.f32 0.0, %v537
        %v539 = vpop.f32.mrb[0].mxu0
        %540 = vmatprep.mubr.f32.mxu0 %v380
        %541 = vmatmul.mubr.f32.gmra.mrb[0].mxu0 %v379
        %v542 = vpop.f32.mrb[0].mxu0
        %v543 = vadd.f32 0.0, %v542
        %v544 = vpop.f32.mrb[0].mxu0
        %545 = vmatprep.mubr.f32.mxu0 %v382
        %546 = vmatmul.mubr.f32.gmra.mrb[0].mxu0 %v381
        %v547 = vpop.f32.mrb[0].mxu0
        %v548 = vadd.f32 0.0, %v547
        %v549 = vpop.f32.mrb[0].mxu0
        %550 = vmatprep.mubr.f32.mxu0 %v384
        %551 = vmatmul.mubr.f32.gmra.mrb[0].mxu0 %v383
        %v552 = vpop.f32.mrb[0].mxu0
        %v553 = vadd.f32 0.0, %v552
        %v554 = vpop.f32.mrb[0].mxu0
        %555 = vmatprep.mubr.f32.mxu0 %v386
        %556 = vmatmul.mubr.f32.gmra.mrb[0].mxu0 %v385
        %v557 = vpop.f32.mrb[0].mxu0
        %v558 = vadd.f32 0.0, %v557
        %v559 = vpop.f32.mrb[0].mxu0
        %560 = vmatprep.mubr.f32.mxu0 %v388
        %561 = vmatmul.mubr.f32.gmra.mrb[0].mxu0 %v387
        %v562 = vpop.f32.mrb[0].mxu0
        %v563 = vadd.f32 0.0, %v562
        %v564 = vpop.f32.mrb[0].mxu0
        %565 = vmatprep.mubr.f32.mxu0 %v390
        %566 = vmatmul.mubr.f32.gmra.mrb[0].mxu0 %v389
        %v567 = vpop.f32.mrb[0].mxu0
        %v568 = vadd.f32 0.0, %v567
        %v569 = vpop.f32.mrb[0].mxu0
        %570 = vmatprep.mubr.f32.mxu0 %v392
        %571 = vmatmul.mubr.f32.gmra.mrb[0].mxu0 %v391
        %v572 = vpop.f32.mrb[0].mxu0
        %v573 = vadd.f32 0.0, %v572
        %v574 = vpop.f32.mrb[0].mxu0
        %575 = vmatprep.mubr.f32.mxu0 %v394
        %576 = vmatmul.mubr.f32.gmra.mrb[0].mxu0 %v393
        %v577 = vpop.f32.mrb[0].mxu0
        %v578 = vadd.f32 0.0, %v577
        %v579 = vpop.f32.mrb[0].mxu0
        %580 = vmatprep.mubr.f32.mxu0 %v396
        %581 = vmatmul.mubr.f32.gmra.mrb[0].mxu0 %v395
        %v582 = vpop.f32.mrb[0].mxu0
        %v583 = vadd.f32 0.0, %v582
        %v584 = vpop.f32.mrb[0].mxu0
        %585 = vmatprep.mubr.f32.mxu0 %v398
        %586 = vmatmul.mubr.f32.gmra.mrb[0].mxu0 %v397
        %v587 = vpop.f32.mrb[0].mxu0
        %v588 = vadd.f32 0.0, %v587
        %v589 = vpop.f32.mrb[0].mxu0
        %590 = vmatprep.mubr.f32.mxu0 %v400
        %591 = vmatmul.mubr.f32.gmra.mrb[0].mxu0 %v399
        %v592 = vpop.f32.mrb[0].mxu0
        %v593 = vadd.f32 0.0, %v592
        %v594 = vpop.f32.mrb[0].mxu0
        %595 = vmatprep.mubr.f32.mxu0 %v402
        %596 = vmatmul.mubr.f32.gmra.mrb[0].mxu0 %v401
        %v597 = vpop.f32.mrb[0].mxu0
        %v598 = vadd.f32 0.0, %v597
        %v599 = vpop.f32.mrb[0].mxu0
        %600 = vmatprep.mubr.f32.mxu0 %v404
        %601 = vmatmul.mubr.f32.gmra.mrb[0].mxu0 %v403
        %v602 = vpop.f32.mrb[0].mxu0
        %v603 = vadd.f32 0.0, %v602
        %v604 = vpop.f32.mrb[0].mxu0
        %605 = vmatprep.mubr.f32.mxu0 %v406
        %606 = vmatmul.mubr.f32.gmra.mrb[0].mxu0 %v405
        %v607 = vpop.f32.mrb[0].mxu0
        %v608 = vadd.f32 0.0, %v607
        %v609 = vpop.f32.mrb[0].mxu0
        %610 = vmatprep.mubr.f32.mxu0 %v408
        %611 = vmatmul.mubr.f32.gmra.mrb[0].mxu0 %v407
        %v612 = vpop.f32.mrb[0].mxu0
        %v613 = vadd.f32 0.0, %v612
        %v614 = vpop.f32.mrb[0].mxu0
        %615 = vmatprep.mubr.f32.mxu0 %v410
        %616 = vmatmul.mubr.f32.gmra.mrb[0].mxu0 %v409
        %v617 = vpop.f32.mrb[0].mxu0
        %v618 = vadd.f32 0.0, %v617
        %v619 = vpop.f32.mrb[0].mxu0
        %620 = vmatprep.mubr.f32.mxu0 %v412
        %621 = vmatmul.mubr.f32.gmra.mrb[0].mxu0 %v411
        %v622 = vpop.f32.mrb[0].mxu0
        %v623 = vadd.f32 0.0, %v622
        %v624 = vpop.f32.mrb[0].mxu0
        %625 = vmatprep.mubr.f32.mxu0 %v414
        %626 = vmatmul.mubr.f32.gmra.mrb[0].mxu0 %v413
        %v627 = vpop.f32.mrb[0].mxu0
        %v628 = vadd.f32 0.0, %v627
        %v629 = vpop.f32.mrb[0].mxu0
        %630 = vmatprep.mubr.f32.mxu0 %v416
        %631 = vmatmul.mubr.f32.gmra.mrb[0].mxu0 %v415
        %v632 = vpop.f32.mrb[0].mxu0
        %v633 = vadd.f32 0.0, %v632
        %v634 = vpop.f32.mrb[0].mxu0
        %635 = vmatprep.mubr.f32.mxu0 %v418
        %636 = vmatmul.mubr.f32.gmra.mrb[0].mxu0 %v417
        %v637 = vpop.f32.mrb[0].mxu0
        %v638 = vadd.f32 0.0, %v637
        %v639 = vpop.f32.mrb[0].mxu0
        %640 = vmatprep.mubr.f32.mxu0 %v420
        %641 = vmatmul.mubr.f32.gmra.mrb[0].mxu0 %v419
        %v642 = vpop.f32.mrb[0].mxu0
        %v643 = vadd.f32 0.0, %v642
        %v644 = vpop.f32.mrb[0].mxu0
        %645 = vdwg.mxu0
        %s646 = scalar_lea.vmem %s228, 512 [#allocation2]
        %v647 = vld [vmem:[%s646] sm:$0xff]
        %v648 = vld [vmem:[%s646 + $0x8] sm:$0xff]
        %v649 = vld [vmem:[%s646 + $0x10] sm:$0xff]
        %v650 = vld [vmem:[%s646 + $0x18] sm:$0xff]
        %v651 = vld [vmem:[%s646 + $0x20] sm:$0xff]
        %v652 = vld [vmem:[%s646 + $0x28] sm:$0xff]
        %v653 = vld [vmem:[%s646 + $0x30] sm:$0xff]
        %v654 = vld [vmem:[%s646 + $0x38] sm:$0xff]
        %v655 = vld [vmem:[%s646 + $0x40] sm:$0xff]
        %v656 = vld [vmem:[%s646 + $0x48] sm:$0xff]
        %v657 = vld [vmem:[%s646 + $0x50] sm:$0xff]
        %v658 = vld [vmem:[%s646 + $0x58] sm:$0xff]
        %v659 = vld [vmem:[%s646 + $0x60] sm:$0xff]
        %v660 = vld [vmem:[%s646 + $0x68] sm:$0xff]
        %v661 = vld [vmem:[%s646 + $0x70] sm:$0xff]
        %v662 = vld [vmem:[%s646 + $0x78] sm:$0xff]
        %v663 = vld [vmem:[%s646 + $0x80] sm:$0xff]
        %v664 = vld [vmem:[%s646 + $0x88] sm:$0xff]
        %v665 = vld [vmem:[%s646 + $0x90] sm:$0xff]
        %v666 = vld [vmem:[%s646 + $0x98] sm:$0xff]
        %v667 = vld [vmem:[%s646 + $0xa0] sm:$0xff]
        %v668 = vld [vmem:[%s646 + $0xa8] sm:$0xff]
        %v669 = vld [vmem:[%s646 + $0xb0] sm:$0xff]
        %v670 = vld [vmem:[%s646 + $0xb8] sm:$0xff]
        %v671 = vld [vmem:[%s646 + $0xc0] sm:$0xff]
        %v672 = vld [vmem:[%s646 + $0xc8] sm:$0xff]
        %v673 = vld [vmem:[%s646 + $0xd0] sm:$0xff]
        %v674 = vld [vmem:[%s646 + $0xd8] sm:$0xff]
        %v675 = vld [vmem:[%s646 + $0xe0] sm:$0xff]
        %v676 = vld [vmem:[%s646 + $0xe8] sm:$0xff]
        %v677 = vld [vmem:[%s646 + $0xf0] sm:$0xff]
        %v678 = vld [vmem:[%s646 + $0xf8] sm:$0xff]
        %v679 = vld [vmem:[%s646 + $0x100] sm:$0xff]
        %v680 = vld [vmem:[%s646 + $0x108] sm:$0xff]
        %v681 = vld [vmem:[%s646 + $0x110] sm:$0xff]
        %v682 = vld [vmem:[%s646 + $0x118] sm:$0xff]
        %v683 = vld [vmem:[%s646 + $0x120] sm:$0xff]
        %v684 = vld [vmem:[%s646 + $0x128] sm:$0xff]
        %v685 = vld [vmem:[%s646 + $0x130] sm:$0xff]
        %v686 = vld [vmem:[%s646 + $0x138] sm:$0xff]
        %v687 = vld [vmem:[%s646 + $0x140] sm:$0xff]
        %v688 = vld [vmem:[%s646 + $0x148] sm:$0xff]
        %v689 = vld [vmem:[%s646 + $0x150] sm:$0xff]
        %v690 = vld [vmem:[%s646 + $0x158] sm:$0xff]
        %v691 = vld [vmem:[%s646 + $0x160] sm:$0xff]
        %v692 = vld [vmem:[%s646 + $0x168] sm:$0xff]
        %v693 = vld [vmem:[%s646 + $0x170] sm:$0xff]
        %v694 = vld [vmem:[%s646 + $0x178] sm:$0xff]
        %v695 = vld [vmem:[%s646 + $0x180] sm:$0xff]
        %v696 = vld [vmem:[%s646 + $0x188] sm:$0xff]
        %v697 = vld [vmem:[%s646 + $0x190] sm:$0xff]
        %v698 = vld [vmem:[%s646 + $0x198] sm:$0xff]
        %v699 = vld [vmem:[%s646 + $0x1a0] sm:$0xff]
        %v700 = vld [vmem:[%s646 + $0x1a8] sm:$0xff]
        %v701 = vld [vmem:[%s646 + $0x1b0] sm:$0xff]
        %v702 = vld [vmem:[%s646 + $0x1b8] sm:$0xff]
        %v703 = vld [vmem:[%s646 + $0x1c0] sm:$0xff]
        %v704 = vld [vmem:[%s646 + $0x1c8] sm:$0xff]
        %v705 = vld [vmem:[%s646 + $0x1d0] sm:$0xff]
        %v706 = vld [vmem:[%s646 + $0x1d8] sm:$0xff]
        %v707 = vld [vmem:[%s646 + $0x1e0] sm:$0xff]
        %v708 = vld [vmem:[%s646 + $0x1e8] sm:$0xff]
        %v709 = vld [vmem:[%s646 + $0x1f0] sm:$0xff]
        %v710 = vld [vmem:[%s646 + $0x1f8] sm:$0xff]
        %711 = vmatprep.subr.mxu0 0.0
        %712 = vmatpush1.msra.mxu0 %v301
        %713 = vmatprep.subr.mxu0 0.0
        %714 = vmatpush1.msra.mxu0 %v302
        %715 = vmatprep.subr.mxu0 0.0
        %716 = vmatpush1.msra.mxu0 %v303
        %717 = vmatprep.subr.mxu0 0.0
        %718 = vmatpush1.msra.mxu0 %v304
        %719 = vmatprep.subr.mxu0 0.0
        %720 = vmatpush1.msra.mxu0 %v305
        %721 = vmatprep.subr.mxu0 0.0
        %722 = vmatpush1.msra.mxu0 %v306
        %723 = vmatprep.subr.mxu0 0.0
        %724 = vmatpush1.msra.mxu0 %v307
        %725 = vmatprep.subr.mxu0 0.0
        %726 = vmatpush1.msra.mxu0 %v308
        %727 = vmatprep.subr.mxu0 0.0
        %728 = vmatpush1.msra.mxu0 %v309
        %729 = vmatprep.subr.mxu0 0.0
        %730 = vmatpush1.msra.mxu0 %v310
        %731 = vmatprep.subr.mxu0 0.0
        %732 = vmatpush1.msra.mxu0 %v311
        %733 = vmatprep.subr.mxu0 0.0
        %734 = vmatpush1.msra.mxu0 %v312
        %735 = vmatprep.subr.mxu0 0.0
        %736 = vmatpush1.msra.mxu0 %v313
        %737 = vmatprep.subr.mxu0 0.0
        %738 = vmatpush1.msra.mxu0 %v314
        %739 = vmatprep.subr.mxu0 0.0
        %740 = vmatpush1.msra.mxu0 %v315
        %741 = vmatprep.subr.mxu0 0.0
        %742 = vmatpush1.msra.mxu0 %v316
        %743 = vmatprep.subr.mxu0 0.0
        %744 = vmatpush1.msra.mxu0 %v317
        %745 = vmatprep.subr.mxu0 0.0
        %746 = vmatpush1.msra.mxu0 %v318
        %747 = vmatprep.subr.mxu0 0.0
        %748 = vmatpush1.msra.mxu0 %v319
        %749 = vmatprep.subr.mxu0 0.0
        %750 = vmatpush1.msra.mxu0 %v320
        %751 = vmatprep.subr.mxu0 0.0
        %752 = vmatpush1.msra.mxu0 %v321
        %753 = vmatprep.subr.mxu0 0.0
        %754 = vmatpush1.msra.mxu0 %v322
        %755 = vmatprep.subr.mxu0 0.0
        %756 = vmatpush1.msra.mxu0 %v323
        %757 = vmatprep.subr.mxu0 0.0
        %758 = vmatpush1.msra.mxu0 %v324
        %759 = vmatprep.subr.mxu0 0.0
        %760 = vmatpush1.msra.mxu0 %v325
        %761 = vmatprep.subr.mxu0 0.0
        %762 = vmatpush1.msra.mxu0 %v326
        %763 = vmatprep.subr.mxu0 0.0
        %764 = vmatpush1.msra.mxu0 %v327
        %765 = vmatprep.subr.mxu0 0.0
        %766 = vmatpush1.msra.mxu0 %v328
        %767 = vmatprep.subr.mxu0 0.0
        %768 = vmatpush1.msra.mxu0 %v329
        %769 = vmatprep.subr.mxu0 0.0
        %770 = vmatpush1.msra.mxu0 %v330
        %771 = vmatprep.subr.mxu0 0.0
        %772 = vmatpush1.msra.mxu0 %v331
        %773 = vmatprep.subr.mxu0 0.0
        %774 = vmatpush1.msra.mxu0 %v332
        %775 = vmatprep.mubr.f32.mxu0 %v648
        %776 = vmatmul.mubr.f32.gmra.mrb[0].mxu0 %v647
        %v777 = vpop.f32.mrb[0].mxu0
        %v778 = vadd.f32 0.0, %v777
        %v779 = vpop.f32.mrb[0].mxu0
        %780 = vmatprep.mubr.f32.mxu0 %v650
        %781 = vmatmul.mubr.f32.gmra.mrb[0].mxu0 %v649
        %v782 = vpop.f32.mrb[0].mxu0
        %v783 = vadd.f32 0.0, %v782
        %v784 = vpop.f32.mrb[0].mxu0
        %785 = vmatprep.mubr.f32.mxu0 %v652
        %786 = vmatmul.mubr.f32.gmra.mrb[0].mxu0 %v651
        %v787 = vpop.f32.mrb[0].mxu0
        %v788 = vadd.f32 0.0, %v787
        %v789 = vpop.f32.mrb[0].mxu0
        %790 = vmatprep.mubr.f32.mxu0 %v654
        %791 = vmatmul.mubr.f32.gmra.mrb[0].mxu0 %v653
        %v792 = vpop.f32.mrb[0].mxu0
        %v793 = vadd.f32 0.0, %v792
        %v794 = vpop.f32.mrb[0].mxu0
        %795 = vmatprep.mubr.f32.mxu0 %v656
        %796 = vmatmul.mubr.f32.gmra.mrb[0].mxu0 %v655
        %v797 = vpop.f32.mrb[0].mxu0
        %v798 = vadd.f32 0.0, %v797
        %v799 = vpop.f32.mrb[0].mxu0
        %800 = vmatprep.mubr.f32.mxu0 %v658
        %801 = vmatmul.mubr.f32.gmra.mrb[0].mxu0 %v657
        %v802 = vpop.f32.mrb[0].mxu0
        %v803 = vadd.f32 0.0, %v802
        %v804 = vpop.f32.mrb[0].mxu0
        %805 = vmatprep.mubr.f32.mxu0 %v660
        %806 = vmatmul.mubr.f32.gmra.mrb[0].mxu0 %v659
        %v807 = vpop.f32.mrb[0].mxu0
        %v808 = vadd.f32 0.0, %v807
        %v809 = vpop.f32.mrb[0].mxu0
        %810 = vmatprep.mubr.f32.mxu0 %v662
        %811 = vmatmul.mubr.f32.gmra.mrb[0].mxu0 %v661
        %v812 = vpop.f32.mrb[0].mxu0
        %v813 = vadd.f32 0.0, %v812
        %v814 = vpop.f32.mrb[0].mxu0
        %815 = vmatprep.mubr.f32.mxu0 %v664
        %816 = vmatmul.mubr.f32.gmra.mrb[0].mxu0 %v663
        %v817 = vpop.f32.mrb[0].mxu0
        %v818 = vadd.f32 0.0, %v817
        %v819 = vpop.f32.mrb[0].mxu0
        %820 = vmatprep.mubr.f32.mxu0 %v666
        %821 = vmatmul.mubr.f32.gmra.mrb[0].mxu0 %v665
        %v822 = vpop.f32.mrb[0].mxu0
        %v823 = vadd.f32 0.0, %v822
        %v824 = vpop.f32.mrb[0].mxu0
        %825 = vmatprep.mubr.f32.mxu0 %v668
        %826 = vmatmul.mubr.f32.gmra.mrb[0].mxu0 %v667
        %v827 = vpop.f32.mrb[0].mxu0
        %v828 = vadd.f32 0.0, %v827
        %v829 = vpop.f32.mrb[0].mxu0
        %830 = vmatprep.mubr.f32.mxu0 %v670
        %831 = vmatmul.mubr.f32.gmra.mrb[0].mxu0 %v669
        %v832 = vpop.f32.mrb[0].mxu0
        %v833 = vadd.f32 0.0, %v832
        %v834 = vpop.f32.mrb[0].mxu0
        %835 = vmatprep.mubr.f32.mxu0 %v672
        %836 = vmatmul.mubr.f32.gmra.mrb[0].mxu0 %v671
        %v837 = vpop.f32.mrb[0].mxu0
        %v838 = vadd.f32 0.0, %v837
        %v839 = vpop.f32.mrb[0].mxu0
        %840 = vmatprep.mubr.f32.mxu0 %v674
        %841 = vmatmul.mubr.f32.gmra.mrb[0].mxu0 %v673
        %v842 = vpop.f32.mrb[0].mxu0
        %v843 = vadd.f32 0.0, %v842
        %v844 = vpop.f32.mrb[0].mxu0
        %845 = vmatprep.mubr.f32.mxu0 %v676
        %846 = vmatmul.mubr.f32.gmra.mrb[0].mxu0 %v675
        %v847 = vpop.f32.mrb[0].mxu0
        %v848 = vadd.f32 0.0, %v847
        %v849 = vpop.f32.mrb[0].mxu0
        %850 = vmatprep.mubr.f32.mxu0 %v678
        %851 = vmatmul.mubr.f32.gmra.mrb[0].mxu0 %v677
        %v852 = vpop.f32.mrb[0].mxu0
        %v853 = vadd.f32 0.0, %v852
        %v854 = vpop.f32.mrb[0].mxu0
        %855 = vmatprep.mubr.f32.mxu0 %v680
        %856 = vmatmul.mubr.f32.gmra.mrb[0].mxu0 %v679
        %v857 = vpop.f32.mrb[0].mxu0
        %v858 = vadd.f32 0.0, %v857
        %v859 = vpop.f32.mrb[0].mxu0
        %860 = vmatprep.mubr.f32.mxu0 %v682
        %861 = vmatmul.mubr.f32.gmra.mrb[0].mxu0 %v681
        %v862 = vpop.f32.mrb[0].mxu0
        %v863 = vadd.f32 0.0, %v862
        %v864 = vpop.f32.mrb[0].mxu0
        %865 = vmatprep.mubr.f32.mxu0 %v684
        %866 = vmatmul.mubr.f32.gmra.mrb[0].mxu0 %v683
        %v867 = vpop.f32.mrb[0].mxu0
        %v868 = vadd.f32 0.0, %v867
        %v869 = vpop.f32.mrb[0].mxu0
        %870 = vmatprep.mubr.f32.mxu0 %v686
        %871 = vmatmul.mubr.f32.gmra.mrb[0].mxu0 %v685
        %v872 = vpop.f32.mrb[0].mxu0
        %v873 = vadd.f32 0.0, %v872
        %v874 = vpop.f32.mrb[0].mxu0
        %875 = vmatprep.mubr.f32.mxu0 %v688
        %876 = vmatmul.mubr.f32.gmra.mrb[0].mxu0 %v687
        %v877 = vpop.f32.mrb[0].mxu0
        %v878 = vadd.f32 0.0, %v877
        %v879 = vpop.f32.mrb[0].mxu0
        %880 = vmatprep.mubr.f32.mxu0 %v690
        %881 = vmatmul.mubr.f32.gmra.mrb[0].mxu0 %v689
        %v882 = vpop.f32.mrb[0].mxu0
        %v883 = vadd.f32 0.0, %v882
        %v884 = vpop.f32.mrb[0].mxu0
        %885 = vmatprep.mubr.f32.mxu0 %v692
        %886 = vmatmul.mubr.f32.gmra.mrb[0].mxu0 %v691
        %v887 = vpop.f32.mrb[0].mxu0
        %v888 = vadd.f32 0.0, %v887
        %v889 = vpop.f32.mrb[0].mxu0
        %890 = vmatprep.mubr.f32.mxu0 %v694
        %891 = vmatmul.mubr.f32.gmra.mrb[0].mxu0 %v693
        %v892 = vpop.f32.mrb[0].mxu0
        %v893 = vadd.f32 0.0, %v892
        %v894 = vpop.f32.mrb[0].mxu0
        %895 = vmatprep.mubr.f32.mxu0 %v696
        %896 = vmatmul.mubr.f32.gmra.mrb[0].mxu0 %v695
        %v897 = vpop.f32.mrb[0].mxu0
        %v898 = vadd.f32 0.0, %v897
        %v899 = vpop.f32.mrb[0].mxu0
        %900 = vmatprep.mubr.f32.mxu0 %v698
        %901 = vmatmul.mubr.f32.gmra.mrb[0].mxu0 %v697
        %v902 = vpop.f32.mrb[0].mxu0
        %v903 = vadd.f32 0.0, %v902
        %v904 = vpop.f32.mrb[0].mxu0
        %905 = vmatprep.mubr.f32.mxu0 %v700
        %906 = vmatmul.mubr.f32.gmra.mrb[0].mxu0 %v699
        %v907 = vpop.f32.mrb[0].mxu0
        %v908 = vadd.f32 0.0, %v907
        %v909 = vpop.f32.mrb[0].mxu0
        %910 = vmatprep.mubr.f32.mxu0 %v702
        %911 = vmatmul.mubr.f32.gmra.mrb[0].mxu0 %v701
        %v912 = vpop.f32.mrb[0].mxu0
        %v913 = vadd.f32 0.0, %v912
        %v914 = vpop.f32.mrb[0].mxu0
        %915 = vmatprep.mubr.f32.mxu0 %v704
        %916 = vmatmul.mubr.f32.gmra.mrb[0].mxu0 %v703
        %v917 = vpop.f32.mrb[0].mxu0
        %v918 = vadd.f32 0.0, %v917
        %v919 = vpop.f32.mrb[0].mxu0
        %920 = vmatprep.mubr.f32.mxu0 %v706
        %921 = vmatmul.mubr.f32.gmra.mrb[0].mxu0 %v705
        %v922 = vpop.f32.mrb[0].mxu0
        %v923 = vadd.f32 0.0, %v922
        %v924 = vpop.f32.mrb[0].mxu0
        %925 = vmatprep.mubr.f32.mxu0 %v708
        %926 = vmatmul.mubr.f32.gmra.mrb[0].mxu0 %v707
        %v927 = vpop.f32.mrb[0].mxu0
        %v928 = vadd.f32 0.0, %v927
        %v929 = vpop.f32.mrb[0].mxu0
        %930 = vmatprep.mubr.f32.mxu0 %v710
        %931 = vmatmul.mubr.f32.gmra.mrb[0].mxu0 %v709
        %v932 = vpop.f32.mrb[0].mxu0
        %v933 = vadd.f32 0.0, %v932
        %v934 = vpop.f32.mrb[0].mxu0
        %935 = vdwg.mxu0
        %v936 = vlaneseq
        %v937 = vshrl.u32 %v936, 7
        %v938 = vsub.s32 0, %v937
        %v939 = vrot.slane %v268, %v938
        %vm940 = vcmask 523264
        %v942 = vsel %vm940, %v488, 0
        %v945 = vsel %vm940, %v493, 0
        %v948 = vsel %vm940, %v498, 0
        %v951 = vsel %vm940, %v503, 0
        %v954 = vsel %vm940, %v508, 0
        %v957 = vsel %vm940, %v513, 0
        %v960 = vsel %vm940, %v518, 0
        %v963 = vsel %vm940, %v523, 0
        %v966 = vsel %vm940, %v528, 0
        %v969 = vsel %vm940, %v533, 0
        %v972 = vsel %vm940, %v538, 0
        %v975 = vsel %vm940, %v543, 0
        %v978 = vsel %vm940, %v548, 0
        %v981 = vsel %vm940, %v553, 0
        %v984 = vsel %vm940, %v558, 0
        %v987 = vsel %vm940, %v563, 0
        %v990 = vsel %vm940, %v568, 0
        %v993 = vsel %vm940, %v573, 0
        %v996 = vsel %vm940, %v578, 0
        %v999 = vsel %vm940, %v583, 0
        %v1002 = vsel %vm940, %v588, 0
        %v1005 = vsel %vm940, %v593, 0
        %v1008 = vsel %vm940, %v598, 0
        %v1011 = vsel %vm940, %v603, 0
        %v1014 = vsel %vm940, %v608, 0
        %v1017 = vsel %vm940, %v613, 0
        %v1020 = vsel %vm940, %v618, 0
        %v1023 = vsel %vm940, %v623, 0
        %v1026 = vsel %vm940, %v628, 0
        %v1029 = vsel %vm940, %v633, 0
        %v1032 = vsel %vm940, %v638, 0
        %v1035 = vsel %vm940, %v643, 0
        %v1038 = vsel %vm940, %v778, 0
        %v1041 = vsel %vm940, %v783, 0
        %v1044 = vsel %vm940, %v788, 0
        %v1047 = vsel %vm940, %v793, 0
        %v1050 = vsel %vm940, %v798, 0
        %v1053 = vsel %vm940, %v803, 0
        %v1056 = vsel %vm940, %v808, 0
        %v1059 = vsel %vm940, %v813, 0
        %v1062 = vsel %vm940, %v818, 0
        %v1065 = vsel %vm940, %v823, 0
        %v1068 = vsel %vm940, %v828, 0
        %v1071 = vsel %vm940, %v833, 0
        %v1074 = vsel %vm940, %v838, 0
        %v1077 = vsel %vm940, %v843, 0
        %v1080 = vsel %vm940, %v848, 0
        %v1083 = vsel %vm940, %v853, 0
        %v1086 = vsel %vm940, %v858, 0
        %v1089 = vsel %vm940, %v863, 0
        %v1092 = vsel %vm940, %v868, 0
        %v1095 = vsel %vm940, %v873, 0
        %v1098 = vsel %vm940, %v878, 0
        %v1101 = vsel %vm940, %v883, 0
        %v1104 = vsel %vm940, %v888, 0
        %v1107 = vsel %vm940, %v893, 0
        %v1110 = vsel %vm940, %v898, 0
        %v1113 = vsel %vm940, %v903, 0
        %v1116 = vsel %vm940, %v908, 0
        %v1119 = vsel %vm940, %v913, 0
        %v1122 = vsel %vm940, %v918, 0
        %v1125 = vsel %vm940, %v923, 0
        %v1128 = vsel %vm940, %v928, 0
        %v1131 = vsel %vm940, %v933, 0
        %1133 = vmatprep.subr.mxu0 0.0
        %1134 = vmatpush1.msra.mxu0 %v333
        %1135 = vmatprep.subr.mxu0 0.0
        %1136 = vmatpush1.msra.mxu0 %v334
        %1137 = vmatprep.subr.mxu0 0.0
        %1138 = vmatpush1.msra.mxu0 %v335
        %1139 = vmatprep.subr.mxu0 0.0
        %1140 = vmatpush1.msra.mxu0 %v336
        %1141 = vmatprep.subr.mxu0 0.0
        %1142 = vmatpush1.msra.mxu0 %v337
        %1143 = vmatprep.subr.mxu0 0.0
        %1144 = vmatpush1.msra.mxu0 %v338
        %1145 = vmatprep.subr.mxu0 0.0
        %1146 = vmatpush1.msra.mxu0 %v339
        %1147 = vmatprep.subr.mxu0 0.0
        %1148 = vmatpush1.msra.mxu0 %v340
        %1149 = vmatprep.subr.mxu0 0.0
        %1150 = vmatpush1.msra.mxu0 0.0
        %1151 = vmatprep.subr.mxu0 0.0
        %1152 = vmatpush1.msra.mxu0 0.0
        %1153 = vmatprep.subr.mxu0 0.0
        %1154 = vmatpush1.msra.mxu0 0.0
        %1155 = vmatprep.subr.mxu0 0.0
        %1156 = vmatpush1.msra.mxu0 0.0
        %1157 = vmatprep.subr.mxu0 0.0
        %1158 = vmatpush1.msra.mxu0 0.0
        %1159 = vmatprep.subr.mxu0 0.0
        %1160 = vmatpush1.msra.mxu0 0.0
        %1161 = vmatprep.subr.mxu0 0.0
        %1162 = vmatpush1.msra.mxu0 0.0
        %1163 = vmatprep.subr.mxu0 0.0
        %1164 = vmatpush1.msra.mxu0 0.0
        %1165 = vmatprep.subr.mxu0 0.0
        %1166 = vmatpush1.msra.mxu0 0.0
        %1167 = vmatprep.subr.mxu0 0.0
        %1168 = vmatpush1.msra.mxu0 0.0
        %1169 = vmatprep.subr.mxu0 0.0
        %1170 = vmatpush1.msra.mxu0 0.0
        %1171 = vmatprep.subr.mxu0 0.0
        %1172 = vmatpush1.msra.mxu0 0.0
        %1173 = vmatprep.subr.mxu0 0.0
        %1174 = vmatpush1.msra.mxu0 0.0
        %1175 = vmatprep.subr.mxu0 0.0
        %1176 = vmatpush1.msra.mxu0 0.0
        %1177 = vmatprep.subr.mxu0 0.0
        %1178 = vmatpush1.msra.mxu0 0.0
        %1179 = vmatprep.subr.mxu0 0.0
        %1180 = vmatpush1.msra.mxu0 0.0
        %1181 = vmatprep.subr.mxu0 0.0
        %1182 = vmatpush1.msra.mxu0 0.0
        %1183 = vmatprep.subr.mxu0 0.0
        %1184 = vmatpush1.msra.mxu0 0.0
        %1185 = vmatprep.subr.mxu0 0.0
        %1186 = vmatpush1.msra.mxu0 0.0
        %1187 = vmatprep.subr.mxu0 0.0
        %1188 = vmatpush1.msra.mxu0 0.0
        %1189 = vmatprep.subr.mxu0 0.0
        %1190 = vmatpush1.msra.mxu0 0.0
        %1191 = vmatprep.subr.mxu0 0.0
        %1192 = vmatpush1.msra.mxu0 0.0
        %1193 = vmatprep.subr.mxu0 0.0
        %1194 = vmatpush1.msra.mxu0 0.0
        %1195 = vmatprep.subr.mxu0 0.0
        %1196 = vmatpush1.msra.mxu0 0.0
        %1197 = vmatprep.mubr.f32.mxu0 0.0
        %1198 = vmatmul.mubr.f32.gmra.mrb[0].mxu0 %v942
        %v1199 = vpop.f32.mrb[0].mxu0
        %v1200 = vadd.f32 %v939, %v1199
        %v1201 = vpop.f32.mrb[0].mxu0
        %1202 = vmatprep.mubr.f32.mxu0 0.0
        %1203 = vmatmul.mubr.f32.gmra.mrb[0].mxu0 %v945
        %v1204 = vpop.f32.mrb[0].mxu0
        %v1205 = vadd.f32 %v939, %v1204
        %v1206 = vpop.f32.mrb[0].mxu0
        %1207 = vmatprep.mubr.f32.mxu0 0.0
        %1208 = vmatmul.mubr.f32.gmra.mrb[0].mxu0 %v948
        %v1209 = vpop.f32.mrb[0].mxu0
        %v1210 = vadd.f32 %v939, %v1209
        %v1211 = vpop.f32.mrb[0].mxu0
        %1212 = vmatprep.mubr.f32.mxu0 0.0
        %1213 = vmatmul.mubr.f32.gmra.mrb[0].mxu0 %v951
        %v1214 = vpop.f32.mrb[0].mxu0
        %v1215 = vadd.f32 %v939, %v1214
        %v1216 = vpop.f32.mrb[0].mxu0
        %1217 = vmatprep.mubr.f32.mxu0 0.0
        %1218 = vmatmul.mubr.f32.gmra.mrb[0].mxu0 %v954
        %v1219 = vpop.f32.mrb[0].mxu0
        %v1220 = vadd.f32 %v939, %v1219
        %v1221 = vpop.f32.mrb[0].mxu0
        %1222 = vmatprep.mubr.f32.mxu0 0.0
        %1223 = vmatmul.mubr.f32.gmra.mrb[0].mxu0 %v957
        %v1224 = vpop.f32.mrb[0].mxu0
        %v1225 = vadd.f32 %v939, %v1224
        %v1226 = vpop.f32.mrb[0].mxu0
        %1227 = vmatprep.mubr.f32.mxu0 0.0
        %1228 = vmatmul.mubr.f32.gmra.mrb[0].mxu0 %v960
        %v1229 = vpop.f32.mrb[0].mxu0
        %v1230 = vadd.f32 %v939, %v1229
        %v1231 = vpop.f32.mrb[0].mxu0
        %1232 = vmatprep.mubr.f32.mxu0 0.0
        %1233 = vmatmul.mubr.f32.gmra.mrb[0].mxu0 %v963
        %v1234 = vpop.f32.mrb[0].mxu0
        %v1235 = vadd.f32 %v939, %v1234
        %v1236 = vpop.f32.mrb[0].mxu0
        %1237 = vmatprep.mubr.f32.mxu0 0.0
        %1238 = vmatmul.mubr.f32.gmra.mrb[0].mxu0 %v966
        %v1239 = vpop.f32.mrb[0].mxu0
        %v1240 = vadd.f32 %v939, %v1239
        %v1241 = vpop.f32.mrb[0].mxu0
        %1242 = vmatprep.mubr.f32.mxu0 0.0
        %1243 = vmatmul.mubr.f32.gmra.mrb[0].mxu0 %v969
        %v1244 = vpop.f32.mrb[0].mxu0
        %v1245 = vadd.f32 %v939, %v1244
        %v1246 = vpop.f32.mrb[0].mxu0
        %1247 = vmatprep.mubr.f32.mxu0 0.0
        %1248 = vmatmul.mubr.f32.gmra.mrb[0].mxu0 %v972
        %v1249 = vpop.f32.mrb[0].mxu0
        %v1250 = vadd.f32 %v939, %v1249
        %v1251 = vpop.f32.mrb[0].mxu0
        %1252 = vmatprep.mubr.f32.mxu0 0.0
        %1253 = vmatmul.mubr.f32.gmra.mrb[0].mxu0 %v975
        %v1254 = vpop.f32.mrb[0].mxu0
        %v1255 = vadd.f32 %v939, %v1254
        %v1256 = vpop.f32.mrb[0].mxu0
        %1257 = vmatprep.mubr.f32.mxu0 0.0
        %1258 = vmatmul.mubr.f32.gmra.mrb[0].mxu0 %v978
        %v1259 = vpop.f32.mrb[0].mxu0
        %v1260 = vadd.f32 %v939, %v1259
        %v1261 = vpop.f32.mrb[0].mxu0
        %1262 = vmatprep.mubr.f32.mxu0 0.0
        %1263 = vmatmul.mubr.f32.gmra.mrb[0].mxu0 %v981
        %v1264 = vpop.f32.mrb[0].mxu0
        %v1265 = vadd.f32 %v939, %v1264
        %v1266 = vpop.f32.mrb[0].mxu0
        %1267 = vmatprep.mubr.f32.mxu0 0.0
        %1268 = vmatmul.mubr.f32.gmra.mrb[0].mxu0 %v984
        %v1269 = vpop.f32.mrb[0].mxu0
        %v1270 = vadd.f32 %v939, %v1269
        %v1271 = vpop.f32.mrb[0].mxu0
        %1272 = vmatprep.mubr.f32.mxu0 0.0
        %1273 = vmatmul.mubr.f32.gmra.mrb[0].mxu0 %v987
        %v1274 = vpop.f32.mrb[0].mxu0
        %v1275 = vadd.f32 %v939, %v1274
        %v1276 = vpop.f32.mrb[0].mxu0
        %1277 = vmatprep.mubr.f32.mxu0 0.0
        %1278 = vmatmul.mubr.f32.gmra.mrb[0].mxu0 %v990
        %v1279 = vpop.f32.mrb[0].mxu0
        %v1280 = vadd.f32 %v939, %v1279
        %v1281 = vpop.f32.mrb[0].mxu0
        %1282 = vmatprep.mubr.f32.mxu0 0.0
        %1283 = vmatmul.mubr.f32.gmra.mrb[0].mxu0 %v993
        %v1284 = vpop.f32.mrb[0].mxu0
        %v1285 = vadd.f32 %v939, %v1284
        %v1286 = vpop.f32.mrb[0].mxu0
        %1287 = vmatprep.mubr.f32.mxu0 0.0
        %1288 = vmatmul.mubr.f32.gmra.mrb[0].mxu0 %v996
        %v1289 = vpop.f32.mrb[0].mxu0
        %v1290 = vadd.f32 %v939, %v1289
        %v1291 = vpop.f32.mrb[0].mxu0
        %1292 = vmatprep.mubr.f32.mxu0 0.0
        %1293 = vmatmul.mubr.f32.gmra.mrb[0].mxu0 %v999
        %v1294 = vpop.f32.mrb[0].mxu0
        %v1295 = vadd.f32 %v939, %v1294
        %v1296 = vpop.f32.mrb[0].mxu0
        %1297 = vmatprep.mubr.f32.mxu0 0.0
        %1298 = vmatmul.mubr.f32.gmra.mrb[0].mxu0 %v1002
        %v1299 = vpop.f32.mrb[0].mxu0
        %v1300 = vadd.f32 %v939, %v1299
        %v1301 = vpop.f32.mrb[0].mxu0
        %1302 = vmatprep.mubr.f32.mxu0 0.0
        %1303 = vmatmul.mubr.f32.gmra.mrb[0].mxu0 %v1005
        %v1304 = vpop.f32.mrb[0].mxu0
        %v1305 = vadd.f32 %v939, %v1304
        %v1306 = vpop.f32.mrb[0].mxu0
        %1307 = vmatprep.mubr.f32.mxu0 0.0
        %1308 = vmatmul.mubr.f32.gmra.mrb[0].mxu0 %v1008
        %v1309 = vpop.f32.mrb[0].mxu0
        %v1310 = vadd.f32 %v939, %v1309
        %v1311 = vpop.f32.mrb[0].mxu0
        %1312 = vmatprep.mubr.f32.mxu0 0.0
        %1313 = vmatmul.mubr.f32.gmra.mrb[0].mxu0 %v1011
        %v1314 = vpop.f32.mrb[0].mxu0
        %v1315 = vadd.f32 %v939, %v1314
        %v1316 = vpop.f32.mrb[0].mxu0
        %1317 = vmatprep.mubr.f32.mxu0 0.0
        %1318 = vmatmul.mubr.f32.gmra.mrb[0].mxu0 %v1014
        %v1319 = vpop.f32.mrb[0].mxu0
        %v1320 = vadd.f32 %v939, %v1319
        %v1321 = vpop.f32.mrb[0].mxu0
        %1322 = vmatprep.mubr.f32.mxu0 0.0
        %1323 = vmatmul.mubr.f32.gmra.mrb[0].mxu0 %v1017
        %v1324 = vpop.f32.mrb[0].mxu0
        %v1325 = vadd.f32 %v939, %v1324
        %v1326 = vpop.f32.mrb[0].mxu0
        %1327 = vmatprep.mubr.f32.mxu0 0.0
        %1328 = vmatmul.mubr.f32.gmra.mrb[0].mxu0 %v1020
        %v1329 = vpop.f32.mrb[0].mxu0
        %v1330 = vadd.f32 %v939, %v1329
        %v1331 = vpop.f32.mrb[0].mxu0
        %1332 = vmatprep.mubr.f32.mxu0 0.0
        %1333 = vmatmul.mubr.f32.gmra.mrb[0].mxu0 %v1023
        %v1334 = vpop.f32.mrb[0].mxu0
        %v1335 = vadd.f32 %v939, %v1334
        %v1336 = vpop.f32.mrb[0].mxu0
        %1337 = vmatprep.mubr.f32.mxu0 0.0
        %1338 = vmatmul.mubr.f32.gmra.mrb[0].mxu0 %v1026
        %v1339 = vpop.f32.mrb[0].mxu0
        %v1340 = vadd.f32 %v939, %v1339
        %v1341 = vpop.f32.mrb[0].mxu0
        %1342 = vmatprep.mubr.f32.mxu0 0.0
        %1343 = vmatmul.mubr.f32.gmra.mrb[0].mxu0 %v1029
        %v1344 = vpop.f32.mrb[0].mxu0
        %v1345 = vadd.f32 %v939, %v1344
        %v1346 = vpop.f32.mrb[0].mxu0
        %1347 = vmatprep.mubr.f32.mxu0 0.0
        %1348 = vmatmul.mubr.f32.gmra.mrb[0].mxu0 %v1032
        %v1349 = vpop.f32.mrb[0].mxu0
        %v1350 = vadd.f32 %v939, %v1349
        %v1351 = vpop.f32.mrb[0].mxu0
        %1352 = vmatprep.mubr.f32.mxu0 0.0
        %1353 = vmatmul.mubr.f32.gmra.mrb[0].mxu0 %v1035
        %v1354 = vpop.f32.mrb[0].mxu0
        %v1355 = vadd.f32 %v939, %v1354
        %v1356 = vpop.f32.mrb[0].mxu0
        %1357 = vmatprep.mubr.f32.mxu0 0.0
        %1358 = vmatmul.mubr.f32.gmra.mrb[0].mxu0 %v1038
        %v1359 = vpop.f32.mrb[0].mxu0
        %v1360 = vadd.f32 %v939, %v1359
        %v1361 = vpop.f32.mrb[0].mxu0
        %1362 = vmatprep.mubr.f32.mxu0 0.0
        %1363 = vmatmul.mubr.f32.gmra.mrb[0].mxu0 %v1041
        %v1364 = vpop.f32.mrb[0].mxu0
        %v1365 = vadd.f32 %v939, %v1364
        %v1366 = vpop.f32.mrb[0].mxu0
        %1367 = vmatprep.mubr.f32.mxu0 0.0
        %1368 = vmatmul.mubr.f32.gmra.mrb[0].mxu0 %v1044
        %v1369 = vpop.f32.mrb[0].mxu0
        %v1370 = vadd.f32 %v939, %v1369
        %v1371 = vpop.f32.mrb[0].mxu0
        %1372 = vmatprep.mubr.f32.mxu0 0.0
        %1373 = vmatmul.mubr.f32.gmra.mrb[0].mxu0 %v1047
        %v1374 = vpop.f32.mrb[0].mxu0
        %v1375 = vadd.f32 %v939, %v1374
        %v1376 = vpop.f32.mrb[0].mxu0
        %1377 = vmatprep.mubr.f32.mxu0 0.0
        %1378 = vmatmul.mubr.f32.gmra.mrb[0].mxu0 %v1050
        %v1379 = vpop.f32.mrb[0].mxu0
        %v1380 = vadd.f32 %v939, %v1379
        %v1381 = vpop.f32.mrb[0].mxu0
        %1382 = vmatprep.mubr.f32.mxu0 0.0
        %1383 = vmatmul.mubr.f32.gmra.mrb[0].mxu0 %v1053
        %v1384 = vpop.f32.mrb[0].mxu0
        %v1385 = vadd.f32 %v939, %v1384
        %v1386 = vpop.f32.mrb[0].mxu0
        %1387 = vmatprep.mubr.f32.mxu0 0.0
        %1388 = vmatmul.mubr.f32.gmra.mrb[0].mxu0 %v1056
        %v1389 = vpop.f32.mrb[0].mxu0
        %v1390 = vadd.f32 %v939, %v1389
        %v1391 = vpop.f32.mrb[0].mxu0
        %1392 = vmatprep.mubr.f32.mxu0 0.0
        %1393 = vmatmul.mubr.f32.gmra.mrb[0].mxu0 %v1059
        %v1394 = vpop.f32.mrb[0].mxu0
        %v1395 = vadd.f32 %v939, %v1394
        %v1396 = vpop.f32.mrb[0].mxu0
        %1397 = vmatprep.mubr.f32.mxu0 0.0
        %1398 = vmatmul.mubr.f32.gmra.mrb[0].mxu0 %v1062
        %v1399 = vpop.f32.mrb[0].mxu0
        %v1400 = vadd.f32 %v939, %v1399
        %v1401 = vpop.f32.mrb[0].mxu0
        %1402 = vmatprep.mubr.f32.mxu0 0.0
        %1403 = vmatmul.mubr.f32.gmra.mrb[0].mxu0 %v1065
        %v1404 = vpop.f32.mrb[0].mxu0
        %v1405 = vadd.f32 %v939, %v1404
        %v1406 = vpop.f32.mrb[0].mxu0
        %1407 = vmatprep.mubr.f32.mxu0 0.0
        %1408 = vmatmul.mubr.f32.gmra.mrb[0].mxu0 %v1068
        %v1409 = vpop.f32.mrb[0].mxu0
        %v1410 = vadd.f32 %v939, %v1409
        %v1411 = vpop.f32.mrb[0].mxu0
        %1412 = vmatprep.mubr.f32.mxu0 0.0
        %1413 = vmatmul.mubr.f32.gmra.mrb[0].mxu0 %v1071
        %v1414 = vpop.f32.mrb[0].mxu0
        %v1415 = vadd.f32 %v939, %v1414
        %v1416 = vpop.f32.mrb[0].mxu0
        %1417 = vmatprep.mubr.f32.mxu0 0.0
        %1418 = vmatmul.mubr.f32.gmra.mrb[0].mxu0 %v1074
        %v1419 = vpop.f32.mrb[0].mxu0
        %v1420 = vadd.f32 %v939, %v1419
        %v1421 = vpop.f32.mrb[0].mxu0
        %1422 = vmatprep.mubr.f32.mxu0 0.0
        %1423 = vmatmul.mubr.f32.gmra.mrb[0].mxu0 %v1077
        %v1424 = vpop.f32.mrb[0].mxu0
        %v1425 = vadd.f32 %v939, %v1424
        %v1426 = vpop.f32.mrb[0].mxu0
        %1427 = vmatprep.mubr.f32.mxu0 0.0
        %1428 = vmatmul.mubr.f32.gmra.mrb[0].mxu0 %v1080
        %v1429 = vpop.f32.mrb[0].mxu0
        %v1430 = vadd.f32 %v939, %v1429
        %v1431 = vpop.f32.mrb[0].mxu0
        %1432 = vmatprep.mubr.f32.mxu0 0.0
        %1433 = vmatmul.mubr.f32.gmra.mrb[0].mxu0 %v1083
        %v1434 = vpop.f32.mrb[0].mxu0
        %v1435 = vadd.f32 %v939, %v1434
        %v1436 = vpop.f32.mrb[0].mxu0
        %1437 = vmatprep.mubr.f32.mxu0 0.0
        %1438 = vmatmul.mubr.f32.gmra.mrb[0].mxu0 %v1086
        %v1439 = vpop.f32.mrb[0].mxu0
        %v1440 = vadd.f32 %v939, %v1439
        %v1441 = vpop.f32.mrb[0].mxu0
        %1442 = vmatprep.mubr.f32.mxu0 0.0
        %1443 = vmatmul.mubr.f32.gmra.mrb[0].mxu0 %v1089
        %v1444 = vpop.f32.mrb[0].mxu0
        %v1445 = vadd.f32 %v939, %v1444
        %v1446 = vpop.f32.mrb[0].mxu0
        %1447 = vmatprep.mubr.f32.mxu0 0.0
        %1448 = vmatmul.mubr.f32.gmra.mrb[0].mxu0 %v1092
        %v1449 = vpop.f32.mrb[0].mxu0
        %v1450 = vadd.f32 %v939, %v1449
        %v1451 = vpop.f32.mrb[0].mxu0
        %1452 = vmatprep.mubr.f32.mxu0 0.0
        %1453 = vmatmul.mubr.f32.gmra.mrb[0].mxu0 %v1095
        %v1454 = vpop.f32.mrb[0].mxu0
        %v1455 = vadd.f32 %v939, %v1454
        %v1456 = vpop.f32.mrb[0].mxu0
        %1457 = vmatprep.mubr.f32.mxu0 0.0
        %1458 = vmatmul.mubr.f32.gmra.mrb[0].mxu0 %v1098
        %v1459 = vpop.f32.mrb[0].mxu0
        %v1460 = vadd.f32 %v939, %v1459
        %v1461 = vpop.f32.mrb[0].mxu0
        %1462 = vmatprep.mubr.f32.mxu0 0.0
        %1463 = vmatmul.mubr.f32.gmra.mrb[0].mxu0 %v1101
        %v1464 = vpop.f32.mrb[0].mxu0
        %v1465 = vadd.f32 %v939, %v1464
        %v1466 = vpop.f32.mrb[0].mxu0
        %1467 = vmatprep.mubr.f32.mxu0 0.0
        %1468 = vmatmul.mubr.f32.gmra.mrb[0].mxu0 %v1104
        %v1469 = vpop.f32.mrb[0].mxu0
        %v1470 = vadd.f32 %v939, %v1469
        %v1471 = vpop.f32.mrb[0].mxu0
        %1472 = vmatprep.mubr.f32.mxu0 0.0
        %1473 = vmatmul.mubr.f32.gmra.mrb[0].mxu0 %v1107
        %v1474 = vpop.f32.mrb[0].mxu0
        %v1475 = vadd.f32 %v939, %v1474
        %v1476 = vpop.f32.mrb[0].mxu0
        %1477 = vmatprep.mubr.f32.mxu0 0.0
        %1478 = vmatmul.mubr.f32.gmra.mrb[0].mxu0 %v1110
        %v1479 = vpop.f32.mrb[0].mxu0
        %v1480 = vadd.f32 %v939, %v1479
        %v1481 = vpop.f32.mrb[0].mxu0
        %1482 = vmatprep.mubr.f32.mxu0 0.0
        %1483 = vmatmul.mubr.f32.gmra.mrb[0].mxu0 %v1113
        %v1484 = vpop.f32.mrb[0].mxu0
        %v1485 = vadd.f32 %v939, %v1484
        %v1486 = vpop.f32.mrb[0].mxu0
        %1487 = vmatprep.mubr.f32.mxu0 0.0
        %1488 = vmatmul.mubr.f32.gmra.mrb[0].mxu0 %v1116
        %v1489 = vpop.f32.mrb[0].mxu0
        %v1490 = vadd.f32 %v939, %v1489
        %v1491 = vpop.f32.mrb[0].mxu0
        %1492 = vmatprep.mubr.f32.mxu0 0.0
        %1493 = vmatmul.mubr.f32.gmra.mrb[0].mxu0 %v1119
        %v1494 = vpop.f32.mrb[0].mxu0
        %v1495 = vadd.f32 %v939, %v1494
        %v1496 = vpop.f32.mrb[0].mxu0
        %1497 = vmatprep.mubr.f32.mxu0 0.0
        %1498 = vmatmul.mubr.f32.gmra.mrb[0].mxu0 %v1122
        %v1499 = vpop.f32.mrb[0].mxu0
        %v1500 = vadd.f32 %v939, %v1499
        %v1501 = vpop.f32.mrb[0].mxu0
        %1502 = vmatprep.mubr.f32.mxu0 0.0
        %1503 = vmatmul.mubr.f32.gmra.mrb[0].mxu0 %v1125
        %v1504 = vpop.f32.mrb[0].mxu0
        %v1505 = vadd.f32 %v939, %v1504
        %v1506 = vpop.f32.mrb[0].mxu0
        %1507 = vmatprep.mubr.f32.mxu0 0.0
        %1508 = vmatmul.mubr.f32.gmra.mrb[0].mxu0 %v1128
        %v1509 = vpop.f32.mrb[0].mxu0
        %v1510 = vadd.f32 %v939, %v1509
        %v1511 = vpop.f32.mrb[0].mxu0
        %1512 = vmatprep.mubr.f32.mxu0 0.0
        %1513 = vmatmul.mubr.f32.gmra.mrb[0].mxu0 %v1131
        %v1514 = vpop.f32.mrb[0].mxu0
        %v1515 = vadd.f32 %v939, %v1514
        %v1516 = vpop.f32.mrb[0].mxu0
        %1517 = vdwg.mxu0
        %1518 = vadd.xlane.f32.xlu0 %v1200
        %v1519 = vpop.xlane.xlu0 %1518
        %1520 = vadd.xlane.f32.xlu0 %v1205
        %v1521 = vpop.xlane.xlu0 %1520
        %1522 = vadd.xlane.f32.xlu0 %v1210
        %v1523 = vpop.xlane.xlu0 %1522
        %1524 = vadd.xlane.f32.xlu0 %v1215
        %v1525 = vpop.xlane.xlu0 %1524
        %1526 = vadd.xlane.f32.xlu0 %v1220
        %v1527 = vpop.xlane.xlu0 %1526
        %1528 = vadd.xlane.f32.xlu0 %v1225
        %v1529 = vpop.xlane.xlu0 %1528
        %1530 = vadd.xlane.f32.xlu0 %v1230
        %v1531 = vpop.xlane.xlu0 %1530
        %1532 = vadd.xlane.f32.xlu0 %v1235
        %v1533 = vpop.xlane.xlu0 %1532
        %1534 = vadd.xlane.f32.xlu0 %v1240
        %v1535 = vpop.xlane.xlu0 %1534
        %1536 = vadd.xlane.f32.xlu0 %v1245
        %v1537 = vpop.xlane.xlu0 %1536
        %1538 = vadd.xlane.f32.xlu0 %v1250
        %v1539 = vpop.xlane.xlu0 %1538
        %1540 = vadd.xlane.f32.xlu0 %v1255
        %v1541 = vpop.xlane.xlu0 %1540
        %1542 = vadd.xlane.f32.xlu0 %v1260
        %v1543 = vpop.xlane.xlu0 %1542
        %1544 = vadd.xlane.f32.xlu0 %v1265
        %v1545 = vpop.xlane.xlu0 %1544
        %1546 = vadd.xlane.f32.xlu0 %v1270
        %v1547 = vpop.xlane.xlu0 %1546
        %1548 = vadd.xlane.f32.xlu0 %v1275
        %v1549 = vpop.xlane.xlu0 %1548
        %1550 = vadd.xlane.f32.xlu0 %v1280
        %v1551 = vpop.xlane.xlu0 %1550
        %1552 = vadd.xlane.f32.xlu0 %v1285
        %v1553 = vpop.xlane.xlu0 %1552
        %1554 = vadd.xlane.f32.xlu0 %v1290
        %v1555 = vpop.xlane.xlu0 %1554
        %1556 = vadd.xlane.f32.xlu0 %v1295
        %v1557 = vpop.xlane.xlu0 %1556
        %1558 = vadd.xlane.f32.xlu0 %v1300
        %v1559 = vpop.xlane.xlu0 %1558
        %1560 = vadd.xlane.f32.xlu0 %v1305
        %v1561 = vpop.xlane.xlu0 %1560
        %1562 = vadd.xlane.f32.xlu0 %v1310
        %v1563 = vpop.xlane.xlu0 %1562
        %1564 = vadd.xlane.f32.xlu0 %v1315
        %v1565 = vpop.xlane.xlu0 %1564
        %1566 = vadd.xlane.f32.xlu0 %v1320
        %v1567 = vpop.xlane.xlu0 %1566
        %1568 = vadd.xlane.f32.xlu0 %v1325
        %v1569 = vpop.xlane.xlu0 %1568
        %1570 = vadd.xlane.f32.xlu0 %v1330
        %v1571 = vpop.xlane.xlu0 %1570
        %1572 = vadd.xlane.f32.xlu0 %v1335
        %v1573 = vpop.xlane.xlu0 %1572
        %1574 = vadd.xlane.f32.xlu0 %v1340
        %v1575 = vpop.xlane.xlu0 %1574
        %1576 = vadd.xlane.f32.xlu0 %v1345
        %v1577 = vpop.xlane.xlu0 %1576
        %1578 = vadd.xlane.f32.xlu0 %v1350
        %v1579 = vpop.xlane.xlu0 %1578
        %1580 = vadd.xlane.f32.xlu0 %v1355
        %v1581 = vpop.xlane.xlu0 %1580
        %1582 = vadd.xlane.f32.xlu0 %v1360
        %v1583 = vpop.xlane.xlu0 %1582
        %1584 = vadd.xlane.f32.xlu0 %v1365
        %v1585 = vpop.xlane.xlu0 %1584
        %1586 = vadd.xlane.f32.xlu0 %v1370
        %v1587 = vpop.xlane.xlu0 %1586
        %1588 = vadd.xlane.f32.xlu0 %v1375
        %v1589 = vpop.xlane.xlu0 %1588
        %1590 = vadd.xlane.f32.xlu0 %v1380
        %v1591 = vpop.xlane.xlu0 %1590
        %1592 = vadd.xlane.f32.xlu0 %v1385
        %v1593 = vpop.xlane.xlu0 %1592
        %1594 = vadd.xlane.f32.xlu0 %v1390
        %v1595 = vpop.xlane.xlu0 %1594
        %1596 = vadd.xlane.f32.xlu0 %v1395
        %v1597 = vpop.xlane.xlu0 %1596
        %1598 = vadd.xlane.f32.xlu0 %v1400
        %v1599 = vpop.xlane.xlu0 %1598
        %1600 = vadd.xlane.f32.xlu0 %v1405
        %v1601 = vpop.xlane.xlu0 %1600
        %1602 = vadd.xlane.f32.xlu0 %v1410
        %v1603 = vpop.xlane.xlu0 %1602
        %1604 = vadd.xlane.f32.xlu0 %v1415
        %v1605 = vpop.xlane.xlu0 %1604
        %1606 = vadd.xlane.f32.xlu0 %v1420
        %v1607 = vpop.xlane.xlu0 %1606
        %1608 = vadd.xlane.f32.xlu0 %v1425
        %v1609 = vpop.xlane.xlu0 %1608
        %1610 = vadd.xlane.f32.xlu0 %v1430
        %v1611 = vpop.xlane.xlu0 %1610
        %1612 = vadd.xlane.f32.xlu0 %v1435
        %v1613 = vpop.xlane.xlu0 %1612
        %1614 = vadd.xlane.f32.xlu0 %v1440
        %v1615 = vpop.xlane.xlu0 %1614
        %1616 = vadd.xlane.f32.xlu0 %v1445
        %v1617 = vpop.xlane.xlu0 %1616
        %1618 = vadd.xlane.f32.xlu0 %v1450
        %v1619 = vpop.xlane.xlu0 %1618
        %1620 = vadd.xlane.f32.xlu0 %v1455
        %v1621 = vpop.xlane.xlu0 %1620
        %1622 = vadd.xlane.f32.xlu0 %v1460
        %v1623 = vpop.xlane.xlu0 %1622
        %1624 = vadd.xlane.f32.xlu0 %v1465
        %v1625 = vpop.xlane.xlu0 %1624
        %1626 = vadd.xlane.f32.xlu0 %v1470
        %v1627 = vpop.xlane.xlu0 %1626
        %1628 = vadd.xlane.f32.xlu0 %v1475
        %v1629 = vpop.xlane.xlu0 %1628
        %1630 = vadd.xlane.f32.xlu0 %v1480
        %v1631 = vpop.xlane.xlu0 %1630
        %1632 = vadd.xlane.f32.xlu0 %v1485
        %v1633 = vpop.xlane.xlu0 %1632
        %1634 = vadd.xlane.f32.xlu0 %v1490
        %v1635 = vpop.xlane.xlu0 %1634
        %1636 = vadd.xlane.f32.xlu0 %v1495
        %v1637 = vpop.xlane.xlu0 %1636
        %1638 = vadd.xlane.f32.xlu0 %v1500
        %v1639 = vpop.xlane.xlu0 %1638
        %1640 = vadd.xlane.f32.xlu0 %v1505
        %v1641 = vpop.xlane.xlu0 %1640
        %1642 = vadd.xlane.f32.xlu0 %v1510
        %v1643 = vpop.xlane.xlu0 %1642
        %1644 = vadd.xlane.f32.xlu0 %v1515
        %v1645 = vpop.xlane.xlu0 %1644
        %v1646 = vrcp.pop 128.0
        %v1647 = vmul.f32 %v1519, %v1646
        %v1648 = vmul.f32 %v1521, %v1646
        %v1649 = vmul.f32 %v1523, %v1646
        %v1650 = vmul.f32 %v1525, %v1646
        %v1651 = vmul.f32 %v1527, %v1646
        %v1652 = vmul.f32 %v1529, %v1646
        %v1653 = vmul.f32 %v1531, %v1646
        %v1654 = vmul.f32 %v1533, %v1646
        %v1655 = vmul.f32 %v1535, %v1646
        %v1656 = vmul.f32 %v1537, %v1646
        %v1657 = vmul.f32 %v1539, %v1646
        %v1658 = vmul.f32 %v1541, %v1646
        %v1659 = vmul.f32 %v1543, %v1646
        %v1660 = vmul.f32 %v1545, %v1646
        %v1661 = vmul.f32 %v1547, %v1646
        %v1662 = vmul.f32 %v1549, %v1646
        %v1663 = vmul.f32 %v1551, %v1646
        %v1664 = vmul.f32 %v1553, %v1646
        %v1665 = vmul.f32 %v1555, %v1646
        %v1666 = vmul.f32 %v1557, %v1646
        %v1667 = vmul.f32 %v1559, %v1646
        %v1668 = vmul.f32 %v1561, %v1646
        %v1669 = vmul.f32 %v1563, %v1646
        %v1670 = vmul.f32 %v1565, %v1646
        %v1671 = vmul.f32 %v1567, %v1646
        %v1672 = vmul.f32 %v1569, %v1646
        %v1673 = vmul.f32 %v1571, %v1646
        %v1674 = vmul.f32 %v1573, %v1646
        %v1675 = vmul.f32 %v1575, %v1646
        %v1676 = vmul.f32 %v1577, %v1646
        %v1677 = vmul.f32 %v1579, %v1646
        %v1678 = vmul.f32 %v1581, %v1646
        %v1679 = vmul.f32 %v1583, %v1646
        %v1680 = vmul.f32 %v1585, %v1646
        %v1681 = vmul.f32 %v1587, %v1646
        %v1682 = vmul.f32 %v1589, %v1646
        %v1683 = vmul.f32 %v1591, %v1646
        %v1684 = vmul.f32 %v1593, %v1646
        %v1685 = vmul.f32 %v1595, %v1646
        %v1686 = vmul.f32 %v1597, %v1646
        %v1687 = vmul.f32 %v1599, %v1646
        %v1688 = vmul.f32 %v1601, %v1646
        %v1689 = vmul.f32 %v1603, %v1646
        %v1690 = vmul.f32 %v1605, %v1646
        %v1691 = vmul.f32 %v1607, %v1646
        %v1692 = vmul.f32 %v1609, %v1646
        %v1693 = vmul.f32 %v1611, %v1646
        %v1694 = vmul.f32 %v1613, %v1646
        %v1695 = vmul.f32 %v1615, %v1646
        %v1696 = vmul.f32 %v1617, %v1646
        %v1697 = vmul.f32 %v1619, %v1646
        %v1698 = vmul.f32 %v1621, %v1646
        %v1699 = vmul.f32 %v1623, %v1646
        %v1700 = vmul.f32 %v1625, %v1646
        %v1701 = vmul.f32 %v1627, %v1646
        %v1702 = vmul.f32 %v1629, %v1646
        %v1703 = vmul.f32 %v1631, %v1646
        %v1704 = vmul.f32 %v1633, %v1646
        %v1705 = vmul.f32 %v1635, %v1646
        %v1706 = vmul.f32 %v1637, %v1646
        %v1707 = vmul.f32 %v1639, %v1646
        %v1708 = vmul.f32 %v1641, %v1646
        %v1709 = vmul.f32 %v1643, %v1646
        %v1710 = vmul.f32 %v1645, %v1646
        %v1711 = vsub.f32 %v1200, %v1647
        %v1712 = vsub.f32 %v1205, %v1648
        %v1713 = vsub.f32 %v1210, %v1649
        %v1714 = vsub.f32 %v1215, %v1650
        %v1715 = vsub.f32 %v1220, %v1651
        %v1716 = vsub.f32 %v1225, %v1652
        %v1717 = vsub.f32 %v1230, %v1653
        %v1718 = vsub.f32 %v1235, %v1654
        %v1719 = vsub.f32 %v1240, %v1655
        %v1720 = vsub.f32 %v1245, %v1656
        %v1721 = vsub.f32 %v1250, %v1657
        %v1722 = vsub.f32 %v1255, %v1658
        %v1723 = vsub.f32 %v1260, %v1659
        %v1724 = vsub.f32 %v1265, %v1660
        %v1725 = vsub.f32 %v1270, %v1661
        %v1726 = vsub.f32 %v1275, %v1662
        %v1727 = vsub.f32 %v1280, %v1663
        %v1728 = vsub.f32 %v1285, %v1664
        %v1729 = vsub.f32 %v1290, %v1665
        %v1730 = vsub.f32 %v1295, %v1666
        %v1731 = vsub.f32 %v1300, %v1667
        %v1732 = vsub.f32 %v1305, %v1668
        %v1733 = vsub.f32 %v1310, %v1669
        %v1734 = vsub.f32 %v1315, %v1670
        %v1735 = vsub.f32 %v1320, %v1671
        %v1736 = vsub.f32 %v1325, %v1672
        %v1737 = vsub.f32 %v1330, %v1673
        %v1738 = vsub.f32 %v1335, %v1674
        %v1739 = vsub.f32 %v1340, %v1675
        %v1740 = vsub.f32 %v1345, %v1676
        %v1741 = vsub.f32 %v1350, %v1677
        %v1742 = vsub.f32 %v1355, %v1678
        %v1743 = vsub.f32 %v1360, %v1679
        %v1744 = vsub.f32 %v1365, %v1680
        %v1745 = vsub.f32 %v1370, %v1681
        %v1746 = vsub.f32 %v1375, %v1682
        %v1747 = vsub.f32 %v1380, %v1683
        %v1748 = vsub.f32 %v1385, %v1684
        %v1749 = vsub.f32 %v1390, %v1685
        %v1750 = vsub.f32 %v1395, %v1686
        %v1751 = vsub.f32 %v1400, %v1687
        %v1752 = vsub.f32 %v1405, %v1688
        %v1753 = vsub.f32 %v1410, %v1689
        %v1754 = vsub.f32 %v1415, %v1690
        %v1755 = vsub.f32 %v1420, %v1691
        %v1756 = vsub.f32 %v1425, %v1692
        %v1757 = vsub.f32 %v1430, %v1693
        %v1758 = vsub.f32 %v1435, %v1694
        %v1759 = vsub.f32 %v1440, %v1695
        %v1760 = vsub.f32 %v1445, %v1696
        %v1761 = vsub.f32 %v1450, %v1697
        %v1762 = vsub.f32 %v1455, %v1698
        %v1763 = vsub.f32 %v1460, %v1699
        %v1764 = vsub.f32 %v1465, %v1700
        %v1765 = vsub.f32 %v1470, %v1701
        %v1766 = vsub.f32 %v1475, %v1702
        %v1767 = vsub.f32 %v1480, %v1703
        %v1768 = vsub.f32 %v1485, %v1704
        %v1769 = vsub.f32 %v1490, %v1705
        %v1770 = vsub.f32 %v1495, %v1706
        %v1771 = vsub.f32 %v1500, %v1707
        %v1772 = vsub.f32 %v1505, %v1708
        %v1773 = vsub.f32 %v1510, %v1709
        %v1774 = vsub.f32 %v1515, %v1710
        %v1775 = vmul.f32 %v1711, %v1711
        %v1776 = vmul.f32 %v1712, %v1712
        %v1777 = vmul.f32 %v1713, %v1713
        %v1778 = vmul.f32 %v1714, %v1714
        %v1779 = vmul.f32 %v1715, %v1715
        %v1780 = vmul.f32 %v1716, %v1716
        %v1781 = vmul.f32 %v1717, %v1717
        %v1782 = vmul.f32 %v1718, %v1718
        %v1783 = vmul.f32 %v1719, %v1719
        %v1784 = vmul.f32 %v1720, %v1720
        %v1785 = vmul.f32 %v1721, %v1721
        %v1786 = vmul.f32 %v1722, %v1722
        %v1787 = vmul.f32 %v1723, %v1723
        %v1788 = vmul.f32 %v1724, %v1724
        %v1789 = vmul.f32 %v1725, %v1725
        %v1790 = vmul.f32 %v1726, %v1726
        %v1791 = vmul.f32 %v1727, %v1727
        %v1792 = vmul.f32 %v1728, %v1728
        %v1793 = vmul.f32 %v1729, %v1729
        %v1794 = vmul.f32 %v1730, %v1730
        %v1795 = vmul.f32 %v1731, %v1731
        %v1796 = vmul.f32 %v1732, %v1732
        %v1797 = vmul.f32 %v1733, %v1733
        %v1798 = vmul.f32 %v1734, %v1734
        %v1799 = vmul.f32 %v1735, %v1735
        %v1800 = vmul.f32 %v1736, %v1736
        %v1801 = vmul.f32 %v1737, %v1737
        %v1802 = vmul.f32 %v1738, %v1738
        %v1803 = vmul.f32 %v1739, %v1739
        %v1804 = vmul.f32 %v1740, %v1740
        %v1805 = vmul.f32 %v1741, %v1741
        %v1806 = vmul.f32 %v1742, %v1742
        %v1807 = vmul.f32 %v1743, %v1743
        %v1808 = vmul.f32 %v1744, %v1744
        %v1809 = vmul.f32 %v1745, %v1745
        %v1810 = vmul.f32 %v1746, %v1746
        %v1811 = vmul.f32 %v1747, %v1747
        %v1812 = vmul.f32 %v1748, %v1748
        %v1813 = vmul.f32 %v1749, %v1749
        %v1814 = vmul.f32 %v1750, %v1750
        %v1815 = vmul.f32 %v1751, %v1751
        %v1816 = vmul.f32 %v1752, %v1752
        %v1817 = vmul.f32 %v1753, %v1753
        %v1818 = vmul.f32 %v1754, %v1754
        %v1819 = vmul.f32 %v1755, %v1755
        %v1820 = vmul.f32 %v1756, %v1756
        %v1821 = vmul.f32 %v1757, %v1757
        %v1822 = vmul.f32 %v1758, %v1758
        %v1823 = vmul.f32 %v1759, %v1759
        %v1824 = vmul.f32 %v1760, %v1760
        %v1825 = vmul.f32 %v1761, %v1761
        %v1826 = vmul.f32 %v1762, %v1762
        %v1827 = vmul.f32 %v1763, %v1763
        %v1828 = vmul.f32 %v1764, %v1764
        %v1829 = vmul.f32 %v1765, %v1765
        %v1830 = vmul.f32 %v1766, %v1766
        %v1831 = vmul.f32 %v1767, %v1767
        %v1832 = vmul.f32 %v1768, %v1768
        %v1833 = vmul.f32 %v1769, %v1769
        %v1834 = vmul.f32 %v1770, %v1770
        %v1835 = vmul.f32 %v1771, %v1771
        %v1836 = vmul.f32 %v1772, %v1772
        %v1837 = vmul.f32 %v1773, %v1773
        %v1838 = vmul.f32 %v1774, %v1774
        %1839 = vadd.xlane.f32.xlu0 %v1775
        %v1840 = vpop.xlane.xlu0 %1839
        %1841 = vadd.xlane.f32.xlu0 %v1776
        %v1842 = vpop.xlane.xlu0 %1841
        %1843 = vadd.xlane.f32.xlu0 %v1777
        %v1844 = vpop.xlane.xlu0 %1843
        %1845 = vadd.xlane.f32.xlu0 %v1778
        %v1846 = vpop.xlane.xlu0 %1845
        %1847 = vadd.xlane.f32.xlu0 %v1779
        %v1848 = vpop.xlane.xlu0 %1847
        %1849 = vadd.xlane.f32.xlu0 %v1780
        %v1850 = vpop.xlane.xlu0 %1849
        %1851 = vadd.xlane.f32.xlu0 %v1781
        %v1852 = vpop.xlane.xlu0 %1851
        %1853 = vadd.xlane.f32.xlu0 %v1782
        %v1854 = vpop.xlane.xlu0 %1853
        %1855 = vadd.xlane.f32.xlu0 %v1783
        %v1856 = vpop.xlane.xlu0 %1855
        %1857 = vadd.xlane.f32.xlu0 %v1784
        %v1858 = vpop.xlane.xlu0 %1857
        %1859 = vadd.xlane.f32.xlu0 %v1785
        %v1860 = vpop.xlane.xlu0 %1859
        %1861 = vadd.xlane.f32.xlu0 %v1786
        %v1862 = vpop.xlane.xlu0 %1861
        %1863 = vadd.xlane.f32.xlu0 %v1787
        %v1864 = vpop.xlane.xlu0 %1863
        %1865 = vadd.xlane.f32.xlu0 %v1788
        %v1866 = vpop.xlane.xlu0 %1865
        %1867 = vadd.xlane.f32.xlu0 %v1789
        %v1868 = vpop.xlane.xlu0 %1867
        %1869 = vadd.xlane.f32.xlu0 %v1790
        %v1870 = vpop.xlane.xlu0 %1869
        %1871 = vadd.xlane.f32.xlu0 %v1791
        %v1872 = vpop.xlane.xlu0 %1871
        %1873 = vadd.xlane.f32.xlu0 %v1792
        %v1874 = vpop.xlane.xlu0 %1873
        %1875 = vadd.xlane.f32.xlu0 %v1793
        %v1876 = vpop.xlane.xlu0 %1875
        %1877 = vadd.xlane.f32.xlu0 %v1794
        %v1878 = vpop.xlane.xlu0 %1877
        %1879 = vadd.xlane.f32.xlu0 %v1795
        %v1880 = vpop.xlane.xlu0 %1879
        %1881 = vadd.xlane.f32.xlu0 %v1796
        %v1882 = vpop.xlane.xlu0 %1881
        %1883 = vadd.xlane.f32.xlu0 %v1797
        %v1884 = vpop.xlane.xlu0 %1883
        %1885 = vadd.xlane.f32.xlu0 %v1798
        %v1886 = vpop.xlane.xlu0 %1885
        %1887 = vadd.xlane.f32.xlu0 %v1799
        %v1888 = vpop.xlane.xlu0 %1887
        %1889 = vadd.xlane.f32.xlu0 %v1800
        %v1890 = vpop.xlane.xlu0 %1889
        %1891 = vadd.xlane.f32.xlu0 %v1801
        %v1892 = vpop.xlane.xlu0 %1891
        %1893 = vadd.xlane.f32.xlu0 %v1802
        %v1894 = vpop.xlane.xlu0 %1893
        %1895 = vadd.xlane.f32.xlu0 %v1803
        %v1896 = vpop.xlane.xlu0 %1895
        %1897 = vadd.xlane.f32.xlu0 %v1804
        %v1898 = vpop.xlane.xlu0 %1897
        %1899 = vadd.xlane.f32.xlu0 %v1805
        %v1900 = vpop.xlane.xlu0 %1899
        %1901 = vadd.xlane.f32.xlu0 %v1806
        %v1902 = vpop.xlane.xlu0 %1901
        %1903 = vadd.xlane.f32.xlu0 %v1807
        %v1904 = vpop.xlane.xlu0 %1903
        %1905 = vadd.xlane.f32.xlu0 %v1808
        %v1906 = vpop.xlane.xlu0 %1905
        %1907 = vadd.xlane.f32.xlu0 %v1809
        %v1908 = vpop.xlane.xlu0 %1907
        %1909 = vadd.xlane.f32.xlu0 %v1810
        %v1910 = vpop.xlane.xlu0 %1909
        %1911 = vadd.xlane.f32.xlu0 %v1811
        %v1912 = vpop.xlane.xlu0 %1911
        %1913 = vadd.xlane.f32.xlu0 %v1812
        %v1914 = vpop.xlane.xlu0 %1913
        %1915 = vadd.xlane.f32.xlu0 %v1813
        %v1916 = vpop.xlane.xlu0 %1915
        %1917 = vadd.xlane.f32.xlu0 %v1814
        %v1918 = vpop.xlane.xlu0 %1917
        %1919 = vadd.xlane.f32.xlu0 %v1815
        %v1920 = vpop.xlane.xlu0 %1919
        %1921 = vadd.xlane.f32.xlu0 %v1816
        %v1922 = vpop.xlane.xlu0 %1921
        %1923 = vadd.xlane.f32.xlu0 %v1817
        %v1924 = vpop.xlane.xlu0 %1923
        %1925 = vadd.xlane.f32.xlu0 %v1818
        %v1926 = vpop.xlane.xlu0 %1925
        %1927 = vadd.xlane.f32.xlu0 %v1819
        %v1928 = vpop.xlane.xlu0 %1927
        %1929 = vadd.xlane.f32.xlu0 %v1820
        %v1930 = vpop.xlane.xlu0 %1929
        %1931 = vadd.xlane.f32.xlu0 %v1821
        %v1932 = vpop.xlane.xlu0 %1931
        %1933 = vadd.xlane.f32.xlu0 %v1822
        %v1934 = vpop.xlane.xlu0 %1933
        %1935 = vadd.xlane.f32.xlu0 %v1823
        %v1936 = vpop.xlane.xlu0 %1935
        %1937 = vadd.xlane.f32.xlu0 %v1824
        %v1938 = vpop.xlane.xlu0 %1937
        %1939 = vadd.xlane.f32.xlu0 %v1825
        %v1940 = vpop.xlane.xlu0 %1939
        %1941 = vadd.xlane.f32.xlu0 %v1826
        %v1942 = vpop.xlane.xlu0 %1941
        %1943 = vadd.xlane.f32.xlu0 %v1827
        %v1944 = vpop.xlane.xlu0 %1943
        %1945 = vadd.xlane.f32.xlu0 %v1828
        %v1946 = vpop.xlane.xlu0 %1945
        %1947 = vadd.xlane.f32.xlu0 %v1829
        %v1948 = vpop.xlane.xlu0 %1947
        %1949 = vadd.xlane.f32.xlu0 %v1830
        %v1950 = vpop.xlane.xlu0 %1949
        %1951 = vadd.xlane.f32.xlu0 %v1831
        %v1952 = vpop.xlane.xlu0 %1951
        %1953 = vadd.xlane.f32.xlu0 %v1832
        %v1954 = vpop.xlane.xlu0 %1953
        %1955 = vadd.xlane.f32.xlu0 %v1833
        %v1956 = vpop.xlane.xlu0 %1955
        %1957 = vadd.xlane.f32.xlu0 %v1834
        %v1958 = vpop.xlane.xlu0 %1957
        %1959 = vadd.xlane.f32.xlu0 %v1835
        %v1960 = vpop.xlane.xlu0 %1959
        %1961 = vadd.xlane.f32.xlu0 %v1836
        %v1962 = vpop.xlane.xlu0 %1961
        %1963 = vadd.xlane.f32.xlu0 %v1837
        %v1964 = vpop.xlane.xlu0 %1963
        %1965 = vadd.xlane.f32.xlu0 %v1838
        %v1966 = vpop.xlane.xlu0 %1965
        %v1967 = vmul.f32 %v1840, %v1646
        %v1968 = vmul.f32 %v1842, %v1646
        %v1969 = vmul.f32 %v1844, %v1646
        %v1970 = vmul.f32 %v1846, %v1646
        %v1971 = vmul.f32 %v1848, %v1646
        %v1972 = vmul.f32 %v1850, %v1646
        %v1973 = vmul.f32 %v1852, %v1646
        %v1974 = vmul.f32 %v1854, %v1646
        %v1975 = vmul.f32 %v1856, %v1646
        %v1976 = vmul.f32 %v1858, %v1646
        %v1977 = vmul.f32 %v1860, %v1646
        %v1978 = vmul.f32 %v1862, %v1646
        %v1979 = vmul.f32 %v1864, %v1646
        %v1980 = vmul.f32 %v1866, %v1646
        %v1981 = vmul.f32 %v1868, %v1646
        %v1982 = vmul.f32 %v1870, %v1646
        %v1983 = vmul.f32 %v1872, %v1646
        %v1984 = vmul.f32 %v1874, %v1646
        %v1985 = vmul.f32 %v1876, %v1646
        %v1986 = vmul.f32 %v1878, %v1646
        %v1987 = vmul.f32 %v1880, %v1646
        %v1988 = vmul.f32 %v1882, %v1646
        %v1989 = vmul.f32 %v1884, %v1646
        %v1990 = vmul.f32 %v1886, %v1646
        %v1991 = vmul.f32 %v1888, %v1646
        %v1992 = vmul.f32 %v1890, %v1646
        %v1993 = vmul.f32 %v1892, %v1646
        %v1994 = vmul.f32 %v1894, %v1646
        %v1995 = vmul.f32 %v1896, %v1646
        %v1996 = vmul.f32 %v1898, %v1646
        %v1997 = vmul.f32 %v1900, %v1646
        %v1998 = vmul.f32 %v1902, %v1646
        %v1999 = vmul.f32 %v1904, %v1646
        %v2000 = vmul.f32 %v1906, %v1646
        %v2001 = vmul.f32 %v1908, %v1646
        %v2002 = vmul.f32 %v1910, %v1646
        %v2003 = vmul.f32 %v1912, %v1646
        %v2004 = vmul.f32 %v1914, %v1646
        %v2005 = vmul.f32 %v1916, %v1646
        %v2006 = vmul.f32 %v1918, %v1646
        %v2007 = vmul.f32 %v1920, %v1646
        %v2008 = vmul.f32 %v1922, %v1646
        %v2009 = vmul.f32 %v1924, %v1646
        %v2010 = vmul.f32 %v1926, %v1646
        %v2011 = vmul.f32 %v1928, %v1646
        %v2012 = vmul.f32 %v1930, %v1646
        %v2013 = vmul.f32 %v1932, %v1646
        %v2014 = vmul.f32 %v1934, %v1646
        %v2015 = vmul.f32 %v1936, %v1646
        %v2016 = vmul.f32 %v1938, %v1646
        %v2017 = vmul.f32 %v1940, %v1646
        %v2018 = vmul.f32 %v1942, %v1646
        %v2019 = vmul.f32 %v1944, %v1646
        %v2020 = vmul.f32 %v1946, %v1646
        %v2021 = vmul.f32 %v1948, %v1646
        %v2022 = vmul.f32 %v1950, %v1646
        %v2023 = vmul.f32 %v1952, %v1646
        %v2024 = vmul.f32 %v1954, %v1646
        %v2025 = vmul.f32 %v1956, %v1646
        %v2026 = vmul.f32 %v1958, %v1646
        %v2027 = vmul.f32 %v1960, %v1646
        %v2028 = vmul.f32 %v1962, %v1646
        %v2029 = vmul.f32 %v1964, %v1646
        %v2030 = vmul.f32 %v1966, %v1646
        %v2031 = vadd.f32 %v1967, 1e-05
        %v2032 = vadd.f32 %v1968, 1e-05
        %v2033 = vadd.f32 %v1969, 1e-05
        %v2034 = vadd.f32 %v1970, 1e-05
        %v2035 = vadd.f32 %v1971, 1e-05
        %v2036 = vadd.f32 %v1972, 1e-05
        %v2037 = vadd.f32 %v1973, 1e-05
        %v2038 = vadd.f32 %v1974, 1e-05
        %v2039 = vadd.f32 %v1975, 1e-05
        %v2040 = vadd.f32 %v1976, 1e-05
        %v2041 = vadd.f32 %v1977, 1e-05
        %v2042 = vadd.f32 %v1978, 1e-05
        %v2043 = vadd.f32 %v1979, 1e-05
        %v2044 = vadd.f32 %v1980, 1e-05
        %v2045 = vadd.f32 %v1981, 1e-05
        %v2046 = vadd.f32 %v1982, 1e-05
        %v2047 = vadd.f32 %v1983, 1e-05
        %v2048 = vadd.f32 %v1984, 1e-05
        %v2049 = vadd.f32 %v1985, 1e-05
        %v2050 = vadd.f32 %v1986, 1e-05
        %v2051 = vadd.f32 %v1987, 1e-05
        %v2052 = vadd.f32 %v1988, 1e-05
        %v2053 = vadd.f32 %v1989, 1e-05
        %v2054 = vadd.f32 %v1990, 1e-05
        %v2055 = vadd.f32 %v1991, 1e-05
        %v2056 = vadd.f32 %v1992, 1e-05
        %v2057 = vadd.f32 %v1993, 1e-05
        %v2058 = vadd.f32 %v1994, 1e-05
        %v2059 = vadd.f32 %v1995, 1e-05
        %v2060 = vadd.f32 %v1996, 1e-05
        %v2061 = vadd.f32 %v1997, 1e-05
        %v2062 = vadd.f32 %v1998, 1e-05
        %v2063 = vadd.f32 %v1999, 1e-05
        %v2064 = vadd.f32 %v2000, 1e-05
        %v2065 = vadd.f32 %v2001, 1e-05
        %v2066 = vadd.f32 %v2002, 1e-05
        %v2067 = vadd.f32 %v2003, 1e-05
        %v2068 = vadd.f32 %v2004, 1e-05
        %v2069 = vadd.f32 %v2005, 1e-05
        %v2070 = vadd.f32 %v2006, 1e-05
        %v2071 = vadd.f32 %v2007, 1e-05
        %v2072 = vadd.f32 %v2008, 1e-05
        %v2073 = vadd.f32 %v2009, 1e-05
        %v2074 = vadd.f32 %v2010, 1e-05
        %v2075 = vadd.f32 %v2011, 1e-05
        %v2076 = vadd.f32 %v2012, 1e-05
        %v2077 = vadd.f32 %v2013, 1e-05
        %v2078 = vadd.f32 %v2014, 1e-05
        %v2079 = vadd.f32 %v2015, 1e-05
        %v2080 = vadd.f32 %v2016, 1e-05
        %v2081 = vadd.f32 %v2017, 1e-05
        %v2082 = vadd.f32 %v2018, 1e-05
        %v2083 = vadd.f32 %v2019, 1e-05
        %v2084 = vadd.f32 %v2020, 1e-05
        %v2085 = vadd.f32 %v2021, 1e-05
        %v2086 = vadd.f32 %v2022, 1e-05
        %v2087 = vadd.f32 %v2023, 1e-05
        %v2088 = vadd.f32 %v2024, 1e-05
        %v2089 = vadd.f32 %v2025, 1e-05
        %v2090 = vadd.f32 %v2026, 1e-05
        %v2091 = vadd.f32 %v2027, 1e-05
        %v2092 = vadd.f32 %v2028, 1e-05
        %v2093 = vadd.f32 %v2029, 1e-05
        %v2094 = vadd.f32 %v2030, 1e-05
        %v2095 = vrsqrt.pop %v2031
        %v2096 = vrsqrt.pop %v2032
        %v2097 = vrsqrt.pop %v2033
        %v2098 = vrsqrt.pop %v2034
        %v2099 = vrsqrt.pop %v2035
        %v2100 = vrsqrt.pop %v2036
        %v2101 = vrsqrt.pop %v2037
        %v2102 = vrsqrt.pop %v2038
        %v2103 = vrsqrt.pop %v2039
        %v2104 = vrsqrt.pop %v2040
        %v2105 = vrsqrt.pop %v2041
        %v2106 = vrsqrt.pop %v2042
        %v2107 = vrsqrt.pop %v2043
        %v2108 = vrsqrt.pop %v2044
        %v2109 = vrsqrt.pop %v2045
        %v2110 = vrsqrt.pop %v2046
        %v2111 = vrsqrt.pop %v2047
        %v2112 = vrsqrt.pop %v2048
        %v2113 = vrsqrt.pop %v2049
        %v2114 = vrsqrt.pop %v2050
        %v2115 = vrsqrt.pop %v2051
        %v2116 = vrsqrt.pop %v2052
        %v2117 = vrsqrt.pop %v2053
        %v2118 = vrsqrt.pop %v2054
        %v2119 = vrsqrt.pop %v2055
        %v2120 = vrsqrt.pop %v2056
        %v2121 = vrsqrt.pop %v2057
        %v2122 = vrsqrt.pop %v2058
        %v2123 = vrsqrt.pop %v2059
        %v2124 = vrsqrt.pop %v2060
        %v2125 = vrsqrt.pop %v2061
        %v2126 = vrsqrt.pop %v2062
        %v2127 = vrsqrt.pop %v2063
        %v2128 = vrsqrt.pop %v2064
        %v2129 = vrsqrt.pop %v2065
        %v2130 = vrsqrt.pop %v2066
        %v2131 = vrsqrt.pop %v2067
        %v2132 = vrsqrt.pop %v2068
        %v2133 = vrsqrt.pop %v2069
        %v2134 = vrsqrt.pop %v2070
        %v2135 = vrsqrt.pop %v2071
        %v2136 = vrsqrt.pop %v2072
        %v2137 = vrsqrt.pop %v2073
        %v2138 = vrsqrt.pop %v2074
        %v2139 = vrsqrt.pop %v2075
        %v2140 = vrsqrt.pop %v2076
        %v2141 = vrsqrt.pop %v2077
        %v2142 = vrsqrt.pop %v2078
        %v2143 = vrsqrt.pop %v2079
        %v2144 = vrsqrt.pop %v2080
        %v2145 = vrsqrt.pop %v2081
        %v2146 = vrsqrt.pop %v2082
        %v2147 = vrsqrt.pop %v2083
        %v2148 = vrsqrt.pop %v2084
        %v2149 = vrsqrt.pop %v2085
        %v2150 = vrsqrt.pop %v2086
        %v2151 = vrsqrt.pop %v2087
        %v2152 = vrsqrt.pop %v2088
        %v2153 = vrsqrt.pop %v2089
        %v2154 = vrsqrt.pop %v2090
        %v2155 = vrsqrt.pop %v2091
        %v2156 = vrsqrt.pop %v2092
        %v2157 = vrsqrt.pop %v2093
        %v2158 = vrsqrt.pop %v2094
        %v2159 = vmul.f32 %v1711, %v2095
        %v2160 = vmul.f32 %v1712, %v2096
        %v2161 = vmul.f32 %v1713, %v2097
        %v2162 = vmul.f32 %v1714, %v2098
        %v2163 = vmul.f32 %v1715, %v2099
        %v2164 = vmul.f32 %v1716, %v2100
        %v2165 = vmul.f32 %v1717, %v2101
        %v2166 = vmul.f32 %v1718, %v2102
        %v2167 = vmul.f32 %v1719, %v2103
        %v2168 = vmul.f32 %v1720, %v2104
        %v2169 = vmul.f32 %v1721, %v2105
        %v2170 = vmul.f32 %v1722, %v2106
        %v2171 = vmul.f32 %v1723, %v2107
        %v2172 = vmul.f32 %v1724, %v2108
        %v2173 = vmul.f32 %v1725, %v2109
        %v2174 = vmul.f32 %v1726, %v2110
        %v2175 = vmul.f32 %v1727, %v2111
        %v2176 = vmul.f32 %v1728, %v2112
        %v2177 = vmul.f32 %v1729, %v2113
        %v2178 = vmul.f32 %v1730, %v2114
        %v2179 = vmul.f32 %v1731, %v2115
        %v2180 = vmul.f32 %v1732, %v2116
        %v2181 = vmul.f32 %v1733, %v2117
        %v2182 = vmul.f32 %v1734, %v2118
        %v2183 = vmul.f32 %v1735, %v2119
        %v2184 = vmul.f32 %v1736, %v2120
        %v2185 = vmul.f32 %v1737, %v2121
        %v2186 = vmul.f32 %v1738, %v2122
        %v2187 = vmul.f32 %v1739, %v2123
        %v2188 = vmul.f32 %v1740, %v2124
        %v2189 = vmul.f32 %v1741, %v2125
        %v2190 = vmul.f32 %v1742, %v2126
        %v2191 = vmul.f32 %v1743, %v2127
        %v2192 = vmul.f32 %v1744, %v2128
        %v2193 = vmul.f32 %v1745, %v2129
        %v2194 = vmul.f32 %v1746, %v2130
        %v2195 = vmul.f32 %v1747, %v2131
        %v2196 = vmul.f32 %v1748, %v2132
        %v2197 = vmul.f32 %v1749, %v2133
        %v2198 = vmul.f32 %v1750, %v2134
        %v2199 = vmul.f32 %v1751, %v2135
        %v2200 = vmul.f32 %v1752, %v2136
        %v2201 = vmul.f32 %v1753, %v2137
        %v2202 = vmul.f32 %v1754, %v2138
        %v2203 = vmul.f32 %v1755, %v2139
        %v2204 = vmul.f32 %v1756, %v2140
        %v2205 = vmul.f32 %v1757, %v2141
        %v2206 = vmul.f32 %v1758, %v2142
        %v2207 = vmul.f32 %v1759, %v2143
        %v2208 = vmul.f32 %v1760, %v2144
        %v2209 = vmul.f32 %v1761, %v2145
        %v2210 = vmul.f32 %v1762, %v2146
        %v2211 = vmul.f32 %v1763, %v2147
        %v2212 = vmul.f32 %v1764, %v2148
        %v2213 = vmul.f32 %v1765, %v2149
        %v2214 = vmul.f32 %v1766, %v2150
        %v2215 = vmul.f32 %v1767, %v2151
        %v2216 = vmul.f32 %v1768, %v2152
        %v2217 = vmul.f32 %v1769, %v2153
        %v2218 = vmul.f32 %v1770, %v2154
        %v2219 = vmul.f32 %v1771, %v2155
        %v2220 = vmul.f32 %v1772, %v2156
        %v2221 = vmul.f32 %v1773, %v2157
        %v2222 = vmul.f32 %v1774, %v2158
        %v2223 = vlaneseq
        %v2224 = vshrl.u32 %v2223, 7
        %v2225 = vsub.s32 1, %v2224
        %v2226 = vrot.slane %v268, %v2225
        %v2227 = vmul.f32 %v2159, %v2226
        %v2228 = vmul.f32 %v2160, %v2226
        %v2229 = vmul.f32 %v2161, %v2226
        %v2230 = vmul.f32 %v2162, %v2226
        %v2231 = vmul.f32 %v2163, %v2226
        %v2232 = vmul.f32 %v2164, %v2226
        %v2233 = vmul.f32 %v2165, %v2226
        %v2234 = vmul.f32 %v2166, %v2226
        %v2235 = vmul.f32 %v2167, %v2226
        %v2236 = vmul.f32 %v2168, %v2226
        %v2237 = vmul.f32 %v2169, %v2226
        %v2238 = vmul.f32 %v2170, %v2226
        %v2239 = vmul.f32 %v2171, %v2226
        %v2240 = vmul.f32 %v2172, %v2226
        %v2241 = vmul.f32 %v2173, %v2226
        %v2242 = vmul.f32 %v2174, %v2226
        %v2243 = vmul.f32 %v2175, %v2226
        %v2244 = vmul.f32 %v2176, %v2226
        %v2245 = vmul.f32 %v2177, %v2226
        %v2246 = vmul.f32 %v2178, %v2226
        %v2247 = vmul.f32 %v2179, %v2226
        %v2248 = vmul.f32 %v2180, %v2226
        %v2249 = vmul.f32 %v2181, %v2226
        %v2250 = vmul.f32 %v2182, %v2226
        %v2251 = vmul.f32 %v2183, %v2226
        %v2252 = vmul.f32 %v2184, %v2226
        %v2253 = vmul.f32 %v2185, %v2226
        %v2254 = vmul.f32 %v2186, %v2226
        %v2255 = vmul.f32 %v2187, %v2226
        %v2256 = vmul.f32 %v2188, %v2226
        %v2257 = vmul.f32 %v2189, %v2226
        %v2258 = vmul.f32 %v2190, %v2226
        %v2259 = vmul.f32 %v2191, %v2226
        %v2260 = vmul.f32 %v2192, %v2226
        %v2261 = vmul.f32 %v2193, %v2226
        %v2262 = vmul.f32 %v2194, %v2226
        %v2263 = vmul.f32 %v2195, %v2226
        %v2264 = vmul.f32 %v2196, %v2226
        %v2265 = vmul.f32 %v2197, %v2226
        %v2266 = vmul.f32 %v2198, %v2226
        %v2267 = vmul.f32 %v2199, %v2226
        %v2268 = vmul.f32 %v2200, %v2226
        %v2269 = vmul.f32 %v2201, %v2226
        %v2270 = vmul.f32 %v2202, %v2226
        %v2271 = vmul.f32 %v2203, %v2226
        %v2272 = vmul.f32 %v2204, %v2226
        %v2273 = vmul.f32 %v2205, %v2226
        %v2274 = vmul.f32 %v2206, %v2226
        %v2275 = vmul.f32 %v2207, %v2226
        %v2276 = vmul.f32 %v2208, %v2226
        %v2277 = vmul.f32 %v2209, %v2226
        %v2278 = vmul.f32 %v2210, %v2226
        %v2279 = vmul.f32 %v2211, %v2226
        %v2280 = vmul.f32 %v2212, %v2226
        %v2281 = vmul.f32 %v2213, %v2226
        %v2282 = vmul.f32 %v2214, %v2226
        %v2283 = vmul.f32 %v2215, %v2226
        %v2284 = vmul.f32 %v2216, %v2226
        %v2285 = vmul.f32 %v2217, %v2226
        %v2286 = vmul.f32 %v2218, %v2226
        %v2287 = vmul.f32 %v2219, %v2226
        %v2288 = vmul.f32 %v2220, %v2226
        %v2289 = vmul.f32 %v2221, %v2226
        %v2290 = vmul.f32 %v2222, %v2226
        %v2291 = vlaneseq
        %v2292 = vshrl.u32 %v2291, 7
        %v2293 = vsub.s32 2, %v2292
        %v2294 = vrot.slane %v268, %v2293
        %v2295 = vadd.f32 %v2227, %v2294
        %v2296 = vadd.f32 %v2228, %v2294
        %v2297 = vadd.f32 %v2229, %v2294
        %v2298 = vadd.f32 %v2230, %v2294
        %v2299 = vadd.f32 %v2231, %v2294
        %v2300 = vadd.f32 %v2232, %v2294
        %v2301 = vadd.f32 %v2233, %v2294
        %v2302 = vadd.f32 %v2234, %v2294
        %v2303 = vadd.f32 %v2235, %v2294
        %v2304 = vadd.f32 %v2236, %v2294
        %v2305 = vadd.f32 %v2237, %v2294
        %v2306 = vadd.f32 %v2238, %v2294
        %v2307 = vadd.f32 %v2239, %v2294
        %v2308 = vadd.f32 %v2240, %v2294
        %v2309 = vadd.f32 %v2241, %v2294
        %v2310 = vadd.f32 %v2242, %v2294
        %v2311 = vadd.f32 %v2243, %v2294
        %v2312 = vadd.f32 %v2244, %v2294
        %v2313 = vadd.f32 %v2245, %v2294
        %v2314 = vadd.f32 %v2246, %v2294
        %v2315 = vadd.f32 %v2247, %v2294
        %v2316 = vadd.f32 %v2248, %v2294
        %v2317 = vadd.f32 %v2249, %v2294
        %v2318 = vadd.f32 %v2250, %v2294
        %v2319 = vadd.f32 %v2251, %v2294
        %v2320 = vadd.f32 %v2252, %v2294
        %v2321 = vadd.f32 %v2253, %v2294
        %v2322 = vadd.f32 %v2254, %v2294
        %v2323 = vadd.f32 %v2255, %v2294
        %v2324 = vadd.f32 %v2256, %v2294
        %v2325 = vadd.f32 %v2257, %v2294
        %v2326 = vadd.f32 %v2258, %v2294
        %v2327 = vadd.f32 %v2259, %v2294
        %v2328 = vadd.f32 %v2260, %v2294
        %v2329 = vadd.f32 %v2261, %v2294
        %v2330 = vadd.f32 %v2262, %v2294
        %v2331 = vadd.f32 %v2263, %v2294
        %v2332 = vadd.f32 %v2264, %v2294
        %v2333 = vadd.f32 %v2265, %v2294
        %v2334 = vadd.f32 %v2266, %v2294
        %v2335 = vadd.f32 %v2267, %v2294
        %v2336 = vadd.f32 %v2268, %v2294
        %v2337 = vadd.f32 %v2269, %v2294
        %v2338 = vadd.f32 %v2270, %v2294
        %v2339 = vadd.f32 %v2271, %v2294
        %v2340 = vadd.f32 %v2272, %v2294
        %v2341 = vadd.f32 %v2273, %v2294
        %v2342 = vadd.f32 %v2274, %v2294
        %v2343 = vadd.f32 %v2275, %v2294
        %v2344 = vadd.f32 %v2276, %v2294
        %v2345 = vadd.f32 %v2277, %v2294
        %v2346 = vadd.f32 %v2278, %v2294
        %v2347 = vadd.f32 %v2279, %v2294
        %v2348 = vadd.f32 %v2280, %v2294
        %v2349 = vadd.f32 %v2281, %v2294
        %v2350 = vadd.f32 %v2282, %v2294
        %v2351 = vadd.f32 %v2283, %v2294
        %v2352 = vadd.f32 %v2284, %v2294
        %v2353 = vadd.f32 %v2285, %v2294
        %v2354 = vadd.f32 %v2286, %v2294
        %v2355 = vadd.f32 %v2287, %v2294
        %v2356 = vadd.f32 %v2288, %v2294
        %v2357 = vadd.f32 %v2289, %v2294
        %v2358 = vadd.f32 %v2290, %v2294
        %v2359 = vmax.f32 %v2295, 0.0
        %v2360 = vmax.f32 %v2296, 0.0
        %v2361 = vmax.f32 %v2297, 0.0
        %v2362 = vmax.f32 %v2298, 0.0
        %v2363 = vmax.f32 %v2299, 0.0
        %v2364 = vmax.f32 %v2300, 0.0
        %v2365 = vmax.f32 %v2301, 0.0
        %v2366 = vmax.f32 %v2302, 0.0
        %v2367 = vmax.f32 %v2303, 0.0
        %v2368 = vmax.f32 %v2304, 0.0
        %v2369 = vmax.f32 %v2305, 0.0
        %v2370 = vmax.f32 %v2306, 0.0
        %v2371 = vmax.f32 %v2307, 0.0
        %v2372 = vmax.f32 %v2308, 0.0
        %v2373 = vmax.f32 %v2309, 0.0
        %v2374 = vmax.f32 %v2310, 0.0
        %v2375 = vmax.f32 %v2311, 0.0
        %v2376 = vmax.f32 %v2312, 0.0
        %v2377 = vmax.f32 %v2313, 0.0
        %v2378 = vmax.f32 %v2314, 0.0
        %v2379 = vmax.f32 %v2315, 0.0
        %v2380 = vmax.f32 %v2316, 0.0
        %v2381 = vmax.f32 %v2317, 0.0
        %v2382 = vmax.f32 %v2318, 0.0
        %v2383 = vmax.f32 %v2319, 0.0
        %v2384 = vmax.f32 %v2320, 0.0
        %v2385 = vmax.f32 %v2321, 0.0
        %v2386 = vmax.f32 %v2322, 0.0
        %v2387 = vmax.f32 %v2323, 0.0
        %v2388 = vmax.f32 %v2324, 0.0
        %v2389 = vmax.f32 %v2325, 0.0
        %v2390 = vmax.f32 %v2326, 0.0
        %v2391 = vmax.f32 %v2327, 0.0
        %v2392 = vmax.f32 %v2328, 0.0
        %v2393 = vmax.f32 %v2329, 0.0
        %v2394 = vmax.f32 %v2330, 0.0
        %v2395 = vmax.f32 %v2331, 0.0
        %v2396 = vmax.f32 %v2332, 0.0
        %v2397 = vmax.f32 %v2333, 0.0
        %v2398 = vmax.f32 %v2334, 0.0
        %v2399 = vmax.f32 %v2335, 0.0
        %v2400 = vmax.f32 %v2336, 0.0
        %v2401 = vmax.f32 %v2337, 0.0
        %v2402 = vmax.f32 %v2338, 0.0
        %v2403 = vmax.f32 %v2339, 0.0
        %v2404 = vmax.f32 %v2340, 0.0
        %v2405 = vmax.f32 %v2341, 0.0
        %v2406 = vmax.f32 %v2342, 0.0
        %v2407 = vmax.f32 %v2343, 0.0
        %v2408 = vmax.f32 %v2344, 0.0
        %v2409 = vmax.f32 %v2345, 0.0
        %v2410 = vmax.f32 %v2346, 0.0
        %v2411 = vmax.f32 %v2347, 0.0
        %v2412 = vmax.f32 %v2348, 0.0
        %v2413 = vmax.f32 %v2349, 0.0
        %v2414 = vmax.f32 %v2350, 0.0
        %v2415 = vmax.f32 %v2351, 0.0
        %v2416 = vmax.f32 %v2352, 0.0
        %v2417 = vmax.f32 %v2353, 0.0
        %v2418 = vmax.f32 %v2354, 0.0
        %v2419 = vmax.f32 %v2355, 0.0
        %v2420 = vmax.f32 %v2356, 0.0
        %v2421 = vmax.f32 %v2357, 0.0
        %v2422 = vmax.f32 %v2358, 0.0
        %2423 = vmatprep.subr.mxu0 0.0
        %2424 = vmatpush1.msra.mxu0 %v341
        %2425 = vmatprep.subr.mxu0 0.0
        %2426 = vmatpush1.msra.mxu0 %v342
        %2427 = vmatprep.subr.mxu0 0.0
        %2428 = vmatpush1.msra.mxu0 %v343
        %2429 = vmatprep.subr.mxu0 0.0
        %2430 = vmatpush1.msra.mxu0 %v344
        %2431 = vmatprep.subr.mxu0 0.0
        %2432 = vmatpush1.msra.mxu0 %v345
        %2433 = vmatprep.subr.mxu0 0.0
        %2434 = vmatpush1.msra.mxu0 %v346
        %2435 = vmatprep.subr.mxu0 0.0
        %2436 = vmatpush1.msra.mxu0 %v347
        %2437 = vmatprep.subr.mxu0 0.0
        %2438 = vmatpush1.msra.mxu0 %v348
        %2439 = vmatprep.subr.mxu0 0.0
        %2440 = vmatpush1.msra.mxu0 %v349
        %2441 = vmatprep.subr.mxu0 0.0
        %2442 = vmatpush1.msra.mxu0 %v350
        %2443 = vmatprep.subr.mxu0 0.0
        %2444 = vmatpush1.msra.mxu0 %v351
        %2445 = vmatprep.subr.mxu0 0.0
        %2446 = vmatpush1.msra.mxu0 %v352
        %2447 = vmatprep.subr.mxu0 0.0
        %2448 = vmatpush1.msra.mxu0 %v353
        %2449 = vmatprep.subr.mxu0 0.0
        %2450 = vmatpush1.msra.mxu0 %v354
        %2451 = vmatprep.subr.mxu0 0.0
        %2452 = vmatpush1.msra.mxu0 %v355
        %2453 = vmatprep.subr.mxu0 0.0
        %2454 = vmatpush1.msra.mxu0 %v356
        %2455 = vmatprep.subr.mxu0 0.0
        %2456 = vmatpush1.msra.mxu0 0.0
        %2457 = vmatprep.subr.mxu0 0.0
        %2458 = vmatpush1.msra.mxu0 0.0
        %2459 = vmatprep.subr.mxu0 0.0
        %2460 = vmatpush1.msra.mxu0 0.0
        %2461 = vmatprep.subr.mxu0 0.0
        %2462 = vmatpush1.msra.mxu0 0.0
        %2463 = vmatprep.subr.mxu0 0.0
        %2464 = vmatpush1.msra.mxu0 0.0
        %2465 = vmatprep.subr.mxu0 0.0
        %2466 = vmatpush1.msra.mxu0 0.0
        %2467 = vmatprep.subr.mxu0 0.0
        %2468 = vmatpush1.msra.mxu0 0.0
        %2469 = vmatprep.subr.mxu0 0.0
        %2470 = vmatpush1.msra.mxu0 0.0
        %2471 = vmatprep.subr.mxu0 0.0
        %2472 = vmatpush1.msra.mxu0 0.0
        %2473 = vmatprep.subr.mxu0 0.0
        %2474 = vmatpush1.msra.mxu0 0.0
        %2475 = vmatprep.subr.mxu0 0.0
        %2476 = vmatpush1.msra.mxu0 0.0
        %2477 = vmatprep.subr.mxu0 0.0
        %2478 = vmatpush1.msra.mxu0 0.0
        %2479 = vmatprep.subr.mxu0 0.0
        %2480 = vmatpush1.msra.mxu0 0.0
        %2481 = vmatprep.subr.mxu0 0.0
        %2482 = vmatpush1.msra.mxu0 0.0
        %2483 = vmatprep.subr.mxu0 0.0
        %2484 = vmatpush1.msra.mxu0 0.0
        %2485 = vmatprep.subr.mxu0 0.0
        %2486 = vmatpush1.msra.mxu0 0.0
        %2487 = vmatprep.mubr.f32.mxu0 0.0
        %2488 = vmatmul.mubr.f32.gmra.mrb[0].mxu0 %v2359
        %v2489 = vpop.f32.mrb[0].mxu0
        %v2490 = vadd.f32 0.0, %v2489
        %v2491 = vpop.f32.mrb[0].mxu0
        %2492 = vmatprep.mubr.f32.mxu0 0.0
        %2493 = vmatmul.mubr.f32.gmra.mrb[0].mxu0 %v2360
        %v2494 = vpop.f32.mrb[0].mxu0
        %v2495 = vadd.f32 0.0, %v2494
        %v2496 = vpop.f32.mrb[0].mxu0
        %2497 = vmatprep.mubr.f32.mxu0 0.0
        %2498 = vmatmul.mubr.f32.gmra.mrb[0].mxu0 %v2361
        %v2499 = vpop.f32.mrb[0].mxu0
        %v2500 = vadd.f32 0.0, %v2499
        %v2501 = vpop.f32.mrb[0].mxu0
        %2502 = vmatprep.mubr.f32.mxu0 0.0
        %2503 = vmatmul.mubr.f32.gmra.mrb[0].mxu0 %v2362
        %v2504 = vpop.f32.mrb[0].mxu0
        %v2505 = vadd.f32 0.0, %v2504
        %v2506 = vpop.f32.mrb[0].mxu0
        %2507 = vmatprep.mubr.f32.mxu0 0.0
        %2508 = vmatmul.mubr.f32.gmra.mrb[0].mxu0 %v2363
        %v2509 = vpop.f32.mrb[0].mxu0
        %v2510 = vadd.f32 0.0, %v2509
        %v2511 = vpop.f32.mrb[0].mxu0
        %2512 = vmatprep.mubr.f32.mxu0 0.0
        %2513 = vmatmul.mubr.f32.gmra.mrb[0].mxu0 %v2364
        %v2514 = vpop.f32.mrb[0].mxu0
        %v2515 = vadd.f32 0.0, %v2514
        %v2516 = vpop.f32.mrb[0].mxu0
        %2517 = vmatprep.mubr.f32.mxu0 0.0
        %2518 = vmatmul.mubr.f32.gmra.mrb[0].mxu0 %v2365
        %v2519 = vpop.f32.mrb[0].mxu0
        %v2520 = vadd.f32 0.0, %v2519
        %v2521 = vpop.f32.mrb[0].mxu0
        %2522 = vmatprep.mubr.f32.mxu0 0.0
        %2523 = vmatmul.mubr.f32.gmra.mrb[0].mxu0 %v2366
        %v2524 = vpop.f32.mrb[0].mxu0
        %v2525 = vadd.f32 0.0, %v2524
        %v2526 = vpop.f32.mrb[0].mxu0
        %2527 = vmatprep.mubr.f32.mxu0 0.0
        %2528 = vmatmul.mubr.f32.gmra.mrb[0].mxu0 %v2367
        %v2529 = vpop.f32.mrb[0].mxu0
        %v2530 = vadd.f32 0.0, %v2529
        %v2531 = vpop.f32.mrb[0].mxu0
        %2532 = vmatprep.mubr.f32.mxu0 0.0
        %2533 = vmatmul.mubr.f32.gmra.mrb[0].mxu0 %v2368
        %v2534 = vpop.f32.mrb[0].mxu0
        %v2535 = vadd.f32 0.0, %v2534
        %v2536 = vpop.f32.mrb[0].mxu0
        %2537 = vmatprep.mubr.f32.mxu0 0.0
        %2538 = vmatmul.mubr.f32.gmra.mrb[0].mxu0 %v2369
        %v2539 = vpop.f32.mrb[0].mxu0
        %v2540 = vadd.f32 0.0, %v2539
        %v2541 = vpop.f32.mrb[0].mxu0
        %2542 = vmatprep.mubr.f32.mxu0 0.0
        %2543 = vmatmul.mubr.f32.gmra.mrb[0].mxu0 %v2370
        %v2544 = vpop.f32.mrb[0].mxu0
        %v2545 = vadd.f32 0.0, %v2544
        %v2546 = vpop.f32.mrb[0].mxu0
        %2547 = vmatprep.mubr.f32.mxu0 0.0
        %2548 = vmatmul.mubr.f32.gmra.mrb[0].mxu0 %v2371
        %v2549 = vpop.f32.mrb[0].mxu0
        %v2550 = vadd.f32 0.0, %v2549
        %v2551 = vpop.f32.mrb[0].mxu0
        %2552 = vmatprep.mubr.f32.mxu0 0.0
        %2553 = vmatmul.mubr.f32.gmra.mrb[0].mxu0 %v2372
        %v2554 = vpop.f32.mrb[0].mxu0
        %v2555 = vadd.f32 0.0, %v2554
        %v2556 = vpop.f32.mrb[0].mxu0
        %2557 = vmatprep.mubr.f32.mxu0 0.0
        %2558 = vmatmul.mubr.f32.gmra.mrb[0].mxu0 %v2373
        %v2559 = vpop.f32.mrb[0].mxu0
        %v2560 = vadd.f32 0.0, %v2559
        %v2561 = vpop.f32.mrb[0].mxu0
        %2562 = vmatprep.mubr.f32.mxu0 0.0
        %2563 = vmatmul.mubr.f32.gmra.mrb[0].mxu0 %v2374
        %v2564 = vpop.f32.mrb[0].mxu0
        %v2565 = vadd.f32 0.0, %v2564
        %v2566 = vpop.f32.mrb[0].mxu0
        %2567 = vmatprep.mubr.f32.mxu0 0.0
        %2568 = vmatmul.mubr.f32.gmra.mrb[0].mxu0 %v2375
        %v2569 = vpop.f32.mrb[0].mxu0
        %v2570 = vadd.f32 0.0, %v2569
        %v2571 = vpop.f32.mrb[0].mxu0
        %2572 = vmatprep.mubr.f32.mxu0 0.0
        %2573 = vmatmul.mubr.f32.gmra.mrb[0].mxu0 %v2376
        %v2574 = vpop.f32.mrb[0].mxu0
        %v2575 = vadd.f32 0.0, %v2574
        %v2576 = vpop.f32.mrb[0].mxu0
        %2577 = vmatprep.mubr.f32.mxu0 0.0
        %2578 = vmatmul.mubr.f32.gmra.mrb[0].mxu0 %v2377
        %v2579 = vpop.f32.mrb[0].mxu0
        %v2580 = vadd.f32 0.0, %v2579
        %v2581 = vpop.f32.mrb[0].mxu0
        %2582 = vmatprep.mubr.f32.mxu0 0.0
        %2583 = vmatmul.mubr.f32.gmra.mrb[0].mxu0 %v2378
        %v2584 = vpop.f32.mrb[0].mxu0
        %v2585 = vadd.f32 0.0, %v2584
        %v2586 = vpop.f32.mrb[0].mxu0
        %2587 = vmatprep.mubr.f32.mxu0 0.0
        %2588 = vmatmul.mubr.f32.gmra.mrb[0].mxu0 %v2379
        %v2589 = vpop.f32.mrb[0].mxu0
        %v2590 = vadd.f32 0.0, %v2589
        %v2591 = vpop.f32.mrb[0].mxu0
        %2592 = vmatprep.mubr.f32.mxu0 0.0
        %2593 = vmatmul.mubr.f32.gmra.mrb[0].mxu0 %v2380
        %v2594 = vpop.f32.mrb[0].mxu0
        %v2595 = vadd.f32 0.0, %v2594
        %v2596 = vpop.f32.mrb[0].mxu0
        %2597 = vmatprep.mubr.f32.mxu0 0.0
        %2598 = vmatmul.mubr.f32.gmra.mrb[0].mxu0 %v2381
        %v2599 = vpop.f32.mrb[0].mxu0
        %v2600 = vadd.f32 0.0, %v2599
        %v2601 = vpop.f32.mrb[0].mxu0
        %2602 = vmatprep.mubr.f32.mxu0 0.0
        %2603 = vmatmul.mubr.f32.gmra.mrb[0].mxu0 %v2382
        %v2604 = vpop.f32.mrb[0].mxu0
        %v2605 = vadd.f32 0.0, %v2604
        %v2606 = vpop.f32.mrb[0].mxu0
        %2607 = vmatprep.mubr.f32.mxu0 0.0
        %2608 = vmatmul.mubr.f32.gmra.mrb[0].mxu0 %v2383
        %v2609 = vpop.f32.mrb[0].mxu0
        %v2610 = vadd.f32 0.0, %v2609
        %v2611 = vpop.f32.mrb[0].mxu0
        %2612 = vmatprep.mubr.f32.mxu0 0.0
        %2613 = vmatmul.mubr.f32.gmra.mrb[0].mxu0 %v2384
        %v2614 = vpop.f32.mrb[0].mxu0
        %v2615 = vadd.f32 0.0, %v2614
        %v2616 = vpop.f32.mrb[0].mxu0
        %2617 = vmatprep.mubr.f32.mxu0 0.0
        %2618 = vmatmul.mubr.f32.gmra.mrb[0].mxu0 %v2385
        %v2619 = vpop.f32.mrb[0].mxu0
        %v2620 = vadd.f32 0.0, %v2619
        %v2621 = vpop.f32.mrb[0].mxu0
        %2622 = vmatprep.mubr.f32.mxu0 0.0
        %2623 = vmatmul.mubr.f32.gmra.mrb[0].mxu0 %v2386
        %v2624 = vpop.f32.mrb[0].mxu0
        %v2625 = vadd.f32 0.0, %v2624
        %v2626 = vpop.f32.mrb[0].mxu0
        %2627 = vmatprep.mubr.f32.mxu0 0.0
        %2628 = vmatmul.mubr.f32.gmra.mrb[0].mxu0 %v2387
        %v2629 = vpop.f32.mrb[0].mxu0
        %v2630 = vadd.f32 0.0, %v2629
        %v2631 = vpop.f32.mrb[0].mxu0
        %2632 = vmatprep.mubr.f32.mxu0 0.0
        %2633 = vmatmul.mubr.f32.gmra.mrb[0].mxu0 %v2388
        %v2634 = vpop.f32.mrb[0].mxu0
        %v2635 = vadd.f32 0.0, %v2634
        %v2636 = vpop.f32.mrb[0].mxu0
        %2637 = vmatprep.mubr.f32.mxu0 0.0
        %2638 = vmatmul.mubr.f32.gmra.mrb[0].mxu0 %v2389
        %v2639 = vpop.f32.mrb[0].mxu0
        %v2640 = vadd.f32 0.0, %v2639
        %v2641 = vpop.f32.mrb[0].mxu0
        %2642 = vmatprep.mubr.f32.mxu0 0.0
        %2643 = vmatmul.mubr.f32.gmra.mrb[0].mxu0 %v2390
        %v2644 = vpop.f32.mrb[0].mxu0
        %v2645 = vadd.f32 0.0, %v2644
        %v2646 = vpop.f32.mrb[0].mxu0
        %2647 = vmatprep.mubr.f32.mxu0 0.0
        %2648 = vmatmul.mubr.f32.gmra.mrb[0].mxu0 %v2391
        %v2649 = vpop.f32.mrb[0].mxu0
        %v2650 = vadd.f32 0.0, %v2649
        %v2651 = vpop.f32.mrb[0].mxu0
        %2652 = vmatprep.mubr.f32.mxu0 0.0
        %2653 = vmatmul.mubr.f32.gmra.mrb[0].mxu0 %v2392
        %v2654 = vpop.f32.mrb[0].mxu0
        %v2655 = vadd.f32 0.0, %v2654
        %v2656 = vpop.f32.mrb[0].mxu0
        %2657 = vmatprep.mubr.f32.mxu0 0.0
        %2658 = vmatmul.mubr.f32.gmra.mrb[0].mxu0 %v2393
        %v2659 = vpop.f32.mrb[0].mxu0
        %v2660 = vadd.f32 0.0, %v2659
        %v2661 = vpop.f32.mrb[0].mxu0
        %2662 = vmatprep.mubr.f32.mxu0 0.0
        %2663 = vmatmul.mubr.f32.gmra.mrb[0].mxu0 %v2394
        %v2664 = vpop.f32.mrb[0].mxu0
        %v2665 = vadd.f32 0.0, %v2664
        %v2666 = vpop.f32.mrb[0].mxu0
        %2667 = vmatprep.mubr.f32.mxu0 0.0
        %2668 = vmatmul.mubr.f32.gmra.mrb[0].mxu0 %v2395
        %v2669 = vpop.f32.mrb[0].mxu0
        %v2670 = vadd.f32 0.0, %v2669
        %v2671 = vpop.f32.mrb[0].mxu0
        %2672 = vmatprep.mubr.f32.mxu0 0.0
        %2673 = vmatmul.mubr.f32.gmra.mrb[0].mxu0 %v2396
        %v2674 = vpop.f32.mrb[0].mxu0
        %v2675 = vadd.f32 0.0, %v2674
        %v2676 = vpop.f32.mrb[0].mxu0
        %2677 = vmatprep.mubr.f32.mxu0 0.0
        %2678 = vmatmul.mubr.f32.gmra.mrb[0].mxu0 %v2397
        %v2679 = vpop.f32.mrb[0].mxu0
        %v2680 = vadd.f32 0.0, %v2679
        %v2681 = vpop.f32.mrb[0].mxu0
        %2682 = vmatprep.mubr.f32.mxu0 0.0
        %2683 = vmatmul.mubr.f32.gmra.mrb[0].mxu0 %v2398
        %v2684 = vpop.f32.mrb[0].mxu0
        %v2685 = vadd.f32 0.0, %v2684
        %v2686 = vpop.f32.mrb[0].mxu0
        %2687 = vmatprep.mubr.f32.mxu0 0.0
        %2688 = vmatmul.mubr.f32.gmra.mrb[0].mxu0 %v2399
        %v2689 = vpop.f32.mrb[0].mxu0
        %v2690 = vadd.f32 0.0, %v2689
        %v2691 = vpop.f32.mrb[0].mxu0
        %2692 = vmatprep.mubr.f32.mxu0 0.0
        %2693 = vmatmul.mubr.f32.gmra.mrb[0].mxu0 %v2400
        %v2694 = vpop.f32.mrb[0].mxu0
        %v2695 = vadd.f32 0.0, %v2694
        %v2696 = vpop.f32.mrb[0].mxu0
        %2697 = vmatprep.mubr.f32.mxu0 0.0
        %2698 = vmatmul.mubr.f32.gmra.mrb[0].mxu0 %v2401
        %v2699 = vpop.f32.mrb[0].mxu0
        %v2700 = vadd.f32 0.0, %v2699
        %v2701 = vpop.f32.mrb[0].mxu0
        %2702 = vmatprep.mubr.f32.mxu0 0.0
        %2703 = vmatmul.mubr.f32.gmra.mrb[0].mxu0 %v2402
        %v2704 = vpop.f32.mrb[0].mxu0
        %v2705 = vadd.f32 0.0, %v2704
        %v2706 = vpop.f32.mrb[0].mxu0
        %2707 = vmatprep.mubr.f32.mxu0 0.0
        %2708 = vmatmul.mubr.f32.gmra.mrb[0].mxu0 %v2403
        %v2709 = vpop.f32.mrb[0].mxu0
        %v2710 = vadd.f32 0.0, %v2709
        %v2711 = vpop.f32.mrb[0].mxu0
        %2712 = vmatprep.mubr.f32.mxu0 0.0
        %2713 = vmatmul.mubr.f32.gmra.mrb[0].mxu0 %v2404
        %v2714 = vpop.f32.mrb[0].mxu0
        %v2715 = vadd.f32 0.0, %v2714
        %v2716 = vpop.f32.mrb[0].mxu0
        %2717 = vmatprep.mubr.f32.mxu0 0.0
        %2718 = vmatmul.mubr.f32.gmra.mrb[0].mxu0 %v2405
        %v2719 = vpop.f32.mrb[0].mxu0
        %v2720 = vadd.f32 0.0, %v2719
        %v2721 = vpop.f32.mrb[0].mxu0
        %2722 = vmatprep.mubr.f32.mxu0 0.0
        %2723 = vmatmul.mubr.f32.gmra.mrb[0].mxu0 %v2406
        %v2724 = vpop.f32.mrb[0].mxu0
        %v2725 = vadd.f32 0.0, %v2724
        %v2726 = vpop.f32.mrb[0].mxu0
        %2727 = vmatprep.mubr.f32.mxu0 0.0
        %2728 = vmatmul.mubr.f32.gmra.mrb[0].mxu0 %v2407
        %v2729 = vpop.f32.mrb[0].mxu0
        %v2730 = vadd.f32 0.0, %v2729
        %v2731 = vpop.f32.mrb[0].mxu0
        %2732 = vmatprep.mubr.f32.mxu0 0.0
        %2733 = vmatmul.mubr.f32.gmra.mrb[0].mxu0 %v2408
        %v2734 = vpop.f32.mrb[0].mxu0
        %v2735 = vadd.f32 0.0, %v2734
        %v2736 = vpop.f32.mrb[0].mxu0
        %2737 = vmatprep.mubr.f32.mxu0 0.0
        %2738 = vmatmul.mubr.f32.gmra.mrb[0].mxu0 %v2409
        %v2739 = vpop.f32.mrb[0].mxu0
        %v2740 = vadd.f32 0.0, %v2739
        %v2741 = vpop.f32.mrb[0].mxu0
        %2742 = vmatprep.mubr.f32.mxu0 0.0
        %2743 = vmatmul.mubr.f32.gmra.mrb[0].mxu0 %v2410
        %v2744 = vpop.f32.mrb[0].mxu0
        %v2745 = vadd.f32 0.0, %v2744
        %v2746 = vpop.f32.mrb[0].mxu0
        %2747 = vmatprep.mubr.f32.mxu0 0.0
        %2748 = vmatmul.mubr.f32.gmra.mrb[0].mxu0 %v2411
        %v2749 = vpop.f32.mrb[0].mxu0
        %v2750 = vadd.f32 0.0, %v2749
        %v2751 = vpop.f32.mrb[0].mxu0
        %2752 = vmatprep.mubr.f32.mxu0 0.0
        %2753 = vmatmul.mubr.f32.gmra.mrb[0].mxu0 %v2412
        %v2754 = vpop.f32.mrb[0].mxu0
        %v2755 = vadd.f32 0.0, %v2754
        %v2756 = vpop.f32.mrb[0].mxu0
        %2757 = vmatprep.mubr.f32.mxu0 0.0
        %2758 = vmatmul.mubr.f32.gmra.mrb[0].mxu0 %v2413
        %v2759 = vpop.f32.mrb[0].mxu0
        %v2760 = vadd.f32 0.0, %v2759
        %v2761 = vpop.f32.mrb[0].mxu0
        %2762 = vmatprep.mubr.f32.mxu0 0.0
        %2763 = vmatmul.mubr.f32.gmra.mrb[0].mxu0 %v2414
        %v2764 = vpop.f32.mrb[0].mxu0
        %v2765 = vadd.f32 0.0, %v2764
        %v2766 = vpop.f32.mrb[0].mxu0
        %2767 = vmatprep.mubr.f32.mxu0 0.0
        %2768 = vmatmul.mubr.f32.gmra.mrb[0].mxu0 %v2415
        %v2769 = vpop.f32.mrb[0].mxu0
        %v2770 = vadd.f32 0.0, %v2769
        %v2771 = vpop.f32.mrb[0].mxu0
        %2772 = vmatprep.mubr.f32.mxu0 0.0
        %2773 = vmatmul.mubr.f32.gmra.mrb[0].mxu0 %v2416
        %v2774 = vpop.f32.mrb[0].mxu0
        %v2775 = vadd.f32 0.0, %v2774
        %v2776 = vpop.f32.mrb[0].mxu0
        %2777 = vmatprep.mubr.f32.mxu0 0.0
        %2778 = vmatmul.mubr.f32.gmra.mrb[0].mxu0 %v2417
        %v2779 = vpop.f32.mrb[0].mxu0
        %v2780 = vadd.f32 0.0, %v2779
        %v2781 = vpop.f32.mrb[0].mxu0
        %2782 = vmatprep.mubr.f32.mxu0 0.0
        %2783 = vmatmul.mubr.f32.gmra.mrb[0].mxu0 %v2418
        %v2784 = vpop.f32.mrb[0].mxu0
        %v2785 = vadd.f32 0.0, %v2784
        %v2786 = vpop.f32.mrb[0].mxu0
        %2787 = vmatprep.mubr.f32.mxu0 0.0
        %2788 = vmatmul.mubr.f32.gmra.mrb[0].mxu0 %v2419
        %v2789 = vpop.f32.mrb[0].mxu0
        %v2790 = vadd.f32 0.0, %v2789
        %v2791 = vpop.f32.mrb[0].mxu0
        %2792 = vmatprep.mubr.f32.mxu0 0.0
        %2793 = vmatmul.mubr.f32.gmra.mrb[0].mxu0 %v2420
        %v2794 = vpop.f32.mrb[0].mxu0
        %v2795 = vadd.f32 0.0, %v2794
        %v2796 = vpop.f32.mrb[0].mxu0
        %2797 = vmatprep.mubr.f32.mxu0 0.0
        %2798 = vmatmul.mubr.f32.gmra.mrb[0].mxu0 %v2421
        %v2799 = vpop.f32.mrb[0].mxu0
        %v2800 = vadd.f32 0.0, %v2799
        %v2801 = vpop.f32.mrb[0].mxu0
        %2802 = vmatprep.mubr.f32.mxu0 0.0
        %2803 = vmatmul.mubr.f32.gmra.mrb[0].mxu0 %v2422
        %v2804 = vpop.f32.mrb[0].mxu0
        %v2805 = vadd.f32 0.0, %v2804
        %v2806 = vpop.f32.mrb[0].mxu0
        %2807 = vdwg.mxu0
        %2808 = vmatprep.subr.mxu0 0.0
        %2809 = vmatpush1.msra.mxu0 %v2490
        %2810 = vmatprep.subr.mxu0 0.0
        %2811 = vmatpush1.msra.mxu0 %v2495
        %2812 = vmatprep.subr.mxu0 0.0
        %2813 = vmatpush1.msra.mxu0 %v2500
        %2814 = vmatprep.subr.mxu0 0.0
        %2815 = vmatpush1.msra.mxu0 %v2505
        %2816 = vmatprep.subr.mxu0 0.0
        %2817 = vmatpush1.msra.mxu0 %v2510
        %2818 = vmatprep.subr.mxu0 0.0
        %2819 = vmatpush1.msra.mxu0 %v2515
        %2820 = vmatprep.subr.mxu0 0.0
        %2821 = vmatpush1.msra.mxu0 %v2520
        %2822 = vmatprep.subr.mxu0 0.0
        %2823 = vmatpush1.msra.mxu0 %v2525
        %2824 = vmatprep.subr.mxu0 0.0
        %2825 = vmatpush1.msra.mxu0 %v2530
        %2826 = vmatprep.subr.mxu0 0.0
        %2827 = vmatpush1.msra.mxu0 %v2535
        %2828 = vmatprep.subr.mxu0 0.0
        %2829 = vmatpush1.msra.mxu0 %v2540
        %2830 = vmatprep.subr.mxu0 0.0
        %2831 = vmatpush1.msra.mxu0 %v2545
        %2832 = vmatprep.subr.mxu0 0.0
        %2833 = vmatpush1.msra.mxu0 %v2550
        %2834 = vmatprep.subr.mxu0 0.0
        %2835 = vmatpush1.msra.mxu0 %v2555
        %2836 = vmatprep.subr.mxu0 0.0
        %2837 = vmatpush1.msra.mxu0 %v2560
        %2838 = vmatprep.subr.mxu0 0.0
        %2839 = vmatpush1.msra.mxu0 %v2565
        %2840 = vmatprep.subr.mxu0 0.0
        %2841 = vmatpush1.msra.mxu0 %v2570
        %2842 = vmatprep.subr.mxu0 0.0
        %2843 = vmatpush1.msra.mxu0 %v2575
        %2844 = vmatprep.subr.mxu0 0.0
        %2845 = vmatpush1.msra.mxu0 %v2580
        %2846 = vmatprep.subr.mxu0 0.0
        %2847 = vmatpush1.msra.mxu0 %v2585
        %2848 = vmatprep.subr.mxu0 0.0
        %2849 = vmatpush1.msra.mxu0 %v2590
        %2850 = vmatprep.subr.mxu0 0.0
        %2851 = vmatpush1.msra.mxu0 %v2595
        %2852 = vmatprep.subr.mxu0 0.0
        %2853 = vmatpush1.msra.mxu0 %v2600
        %2854 = vmatprep.subr.mxu0 0.0
        %2855 = vmatpush1.msra.mxu0 %v2605
        %2856 = vmatprep.subr.mxu0 0.0
        %2857 = vmatpush1.msra.mxu0 %v2610
        %2858 = vmatprep.subr.mxu0 0.0
        %2859 = vmatpush1.msra.mxu0 %v2615
        %2860 = vmatprep.subr.mxu0 0.0
        %2861 = vmatpush1.msra.mxu0 %v2620
        %2862 = vmatprep.subr.mxu0 0.0
        %2863 = vmatpush1.msra.mxu0 %v2625
        %2864 = vmatprep.subr.mxu0 0.0
        %2865 = vmatpush1.msra.mxu0 %v2630
        %2866 = vmatprep.subr.mxu0 0.0
        %2867 = vmatpush1.msra.mxu0 %v2635
        %2868 = vmatprep.subr.mxu0 0.0
        %2869 = vmatpush1.msra.mxu0 %v2640
        %2870 = vmatprep.subr.mxu0 0.0
        %2871 = vmatpush1.msra.mxu0 %v2645
        %2872 = vmatprep.mubr.f32.mxu0 %v358
        %2873 = vmatmul.mubr.f32.gmra.mrb[0].mxu0 %v357
        %v2874 = vpop.f32.mrb[0].mxu0
        %v2875 = vadd.f32 0.0, %v2874
        %v2876 = vpop.f32.mrb[0].mxu0
        %2877 = vmatprep.mubr.f32.mxu0 %v360
        %2878 = vmatmul.mubr.f32.gmra.mrb[0].mxu0 %v359
        %v2879 = vpop.f32.mrb[0].mxu0
        %v2880 = vadd.f32 0.0, %v2879
        %v2881 = vpop.f32.mrb[0].mxu0
        %2882 = vmatprep.mubr.f32.mxu0 %v362
        %2883 = vmatmul.mubr.f32.gmra.mrb[0].mxu0 %v361
        %v2884 = vpop.f32.mrb[0].mxu0
        %v2885 = vadd.f32 0.0, %v2884
        %v2886 = vpop.f32.mrb[0].mxu0
        %2887 = vmatprep.mubr.f32.mxu0 %v364
        %2888 = vmatmul.mubr.f32.gmra.mrb[0].mxu0 %v363
        %v2889 = vpop.f32.mrb[0].mxu0
        %v2890 = vadd.f32 0.0, %v2889
        %v2891 = vpop.f32.mrb[0].mxu0
        %2892 = vmatprep.mubr.f32.mxu0 %v366
        %2893 = vmatmul.mubr.f32.gmra.mrb[0].mxu0 %v365
        %v2894 = vpop.f32.mrb[0].mxu0
        %v2895 = vadd.f32 0.0, %v2894
        %v2896 = vpop.f32.mrb[0].mxu0
        %2897 = vmatprep.mubr.f32.mxu0 %v368
        %2898 = vmatmul.mubr.f32.gmra.mrb[0].mxu0 %v367
        %v2899 = vpop.f32.mrb[0].mxu0
        %v2900 = vadd.f32 0.0, %v2899
        %v2901 = vpop.f32.mrb[0].mxu0
        %2902 = vmatprep.mubr.f32.mxu0 %v370
        %2903 = vmatmul.mubr.f32.gmra.mrb[0].mxu0 %v369
        %v2904 = vpop.f32.mrb[0].mxu0
        %v2905 = vadd.f32 0.0, %v2904
        %v2906 = vpop.f32.mrb[0].mxu0
        %2907 = vmatprep.mubr.f32.mxu0 %v372
        %2908 = vmatmul.mubr.f32.gmra.mrb[0].mxu0 %v371
        %v2909 = vpop.f32.mrb[0].mxu0
        %v2910 = vadd.f32 0.0, %v2909
        %v2911 = vpop.f32.mrb[0].mxu0
        %2912 = vmatprep.mubr.f32.mxu0 %v374
        %2913 = vmatmul.mubr.f32.gmra.mrb[0].mxu0 %v373
        %v2914 = vpop.f32.mrb[0].mxu0
        %v2915 = vadd.f32 0.0, %v2914
        %v2916 = vpop.f32.mrb[0].mxu0
        %2917 = vmatprep.mubr.f32.mxu0 %v376
        %2918 = vmatmul.mubr.f32.gmra.mrb[0].mxu0 %v375
        %v2919 = vpop.f32.mrb[0].mxu0
        %v2920 = vadd.f32 0.0, %v2919
        %v2921 = vpop.f32.mrb[0].mxu0
        %2922 = vmatprep.mubr.f32.mxu0 %v378
        %2923 = vmatmul.mubr.f32.gmra.mrb[0].mxu0 %v377
        %v2924 = vpop.f32.mrb[0].mxu0
        %v2925 = vadd.f32 0.0, %v2924
        %v2926 = vpop.f32.mrb[0].mxu0
        %2927 = vmatprep.mubr.f32.mxu0 %v380
        %2928 = vmatmul.mubr.f32.gmra.mrb[0].mxu0 %v379
        %v2929 = vpop.f32.mrb[0].mxu0
        %v2930 = vadd.f32 0.0, %v2929
        %v2931 = vpop.f32.mrb[0].mxu0
        %2932 = vmatprep.mubr.f32.mxu0 %v382
        %2933 = vmatmul.mubr.f32.gmra.mrb[0].mxu0 %v381
        %v2934 = vpop.f32.mrb[0].mxu0
        %v2935 = vadd.f32 0.0, %v2934
        %v2936 = vpop.f32.mrb[0].mxu0
        %2937 = vmatprep.mubr.f32.mxu0 %v384
        %2938 = vmatmul.mubr.f32.gmra.mrb[0].mxu0 %v383
        %v2939 = vpop.f32.mrb[0].mxu0
        %v2940 = vadd.f32 0.0, %v2939
        %v2941 = vpop.f32.mrb[0].mxu0
        %2942 = vmatprep.mubr.f32.mxu0 %v386
        %2943 = vmatmul.mubr.f32.gmra.mrb[0].mxu0 %v385
        %v2944 = vpop.f32.mrb[0].mxu0
        %v2945 = vadd.f32 0.0, %v2944
        %v2946 = vpop.f32.mrb[0].mxu0
        %2947 = vmatprep.mubr.f32.mxu0 %v388
        %2948 = vmatmul.mubr.f32.gmra.mrb[0].mxu0 %v387
        %v2949 = vpop.f32.mrb[0].mxu0
        %v2950 = vadd.f32 0.0, %v2949
        %v2951 = vpop.f32.mrb[0].mxu0
        %2952 = vmatprep.mubr.f32.mxu0 %v390
        %2953 = vmatmul.mubr.f32.gmra.mrb[0].mxu0 %v389
        %v2954 = vpop.f32.mrb[0].mxu0
        %v2955 = vadd.f32 0.0, %v2954
        %v2956 = vpop.f32.mrb[0].mxu0
        %2957 = vmatprep.mubr.f32.mxu0 %v392
        %2958 = vmatmul.mubr.f32.gmra.mrb[0].mxu0 %v391
        %v2959 = vpop.f32.mrb[0].mxu0
        %v2960 = vadd.f32 0.0, %v2959
        %v2961 = vpop.f32.mrb[0].mxu0
        %2962 = vmatprep.mubr.f32.mxu0 %v394
        %2963 = vmatmul.mubr.f32.gmra.mrb[0].mxu0 %v393
        %v2964 = vpop.f32.mrb[0].mxu0
        %v2965 = vadd.f32 0.0, %v2964
        %v2966 = vpop.f32.mrb[0].mxu0
        %2967 = vmatprep.mubr.f32.mxu0 %v396
        %2968 = vmatmul.mubr.f32.gmra.mrb[0].mxu0 %v395
        %v2969 = vpop.f32.mrb[0].mxu0
        %v2970 = vadd.f32 0.0, %v2969
        %v2971 = vpop.f32.mrb[0].mxu0
        %2972 = vmatprep.mubr.f32.mxu0 %v398
        %2973 = vmatmul.mubr.f32.gmra.mrb[0].mxu0 %v397
        %v2974 = vpop.f32.mrb[0].mxu0
        %v2975 = vadd.f32 0.0, %v2974
        %v2976 = vpop.f32.mrb[0].mxu0
        %2977 = vmatprep.mubr.f32.mxu0 %v400
        %2978 = vmatmul.mubr.f32.gmra.mrb[0].mxu0 %v399
        %v2979 = vpop.f32.mrb[0].mxu0
        %v2980 = vadd.f32 0.0, %v2979
        %v2981 = vpop.f32.mrb[0].mxu0
        %2982 = vmatprep.mubr.f32.mxu0 %v402
        %2983 = vmatmul.mubr.f32.gmra.mrb[0].mxu0 %v401
        %v2984 = vpop.f32.mrb[0].mxu0
        %v2985 = vadd.f32 0.0, %v2984
        %v2986 = vpop.f32.mrb[0].mxu0
        %2987 = vmatprep.mubr.f32.mxu0 %v404
        %2988 = vmatmul.mubr.f32.gmra.mrb[0].mxu0 %v403
        %v2989 = vpop.f32.mrb[0].mxu0
        %v2990 = vadd.f32 0.0, %v2989
        %v2991 = vpop.f32.mrb[0].mxu0
        %2992 = vmatprep.mubr.f32.mxu0 %v406
        %2993 = vmatmul.mubr.f32.gmra.mrb[0].mxu0 %v405
        %v2994 = vpop.f32.mrb[0].mxu0
        %v2995 = vadd.f32 0.0, %v2994
        %v2996 = vpop.f32.mrb[0].mxu0
        %2997 = vmatprep.mubr.f32.mxu0 %v408
        %2998 = vmatmul.mubr.f32.gmra.mrb[0].mxu0 %v407
        %v2999 = vpop.f32.mrb[0].mxu0
        %v3000 = vadd.f32 0.0, %v2999
        %v3001 = vpop.f32.mrb[0].mxu0
        %3002 = vmatprep.mubr.f32.mxu0 %v410
        %3003 = vmatmul.mubr.f32.gmra.mrb[0].mxu0 %v409
        %v3004 = vpop.f32.mrb[0].mxu0
        %v3005 = vadd.f32 0.0, %v3004
        %v3006 = vpop.f32.mrb[0].mxu0
        %3007 = vmatprep.mubr.f32.mxu0 %v412
        %3008 = vmatmul.mubr.f32.gmra.mrb[0].mxu0 %v411
        %v3009 = vpop.f32.mrb[0].mxu0
        %v3010 = vadd.f32 0.0, %v3009
        %v3011 = vpop.f32.mrb[0].mxu0
        %3012 = vmatprep.mubr.f32.mxu0 %v414
        %3013 = vmatmul.mubr.f32.gmra.mrb[0].mxu0 %v413
        %v3014 = vpop.f32.mrb[0].mxu0
        %v3015 = vadd.f32 0.0, %v3014
        %v3016 = vpop.f32.mrb[0].mxu0
        %3017 = vmatprep.mubr.f32.mxu0 %v416
        %3018 = vmatmul.mubr.f32.gmra.mrb[0].mxu0 %v415
        %v3019 = vpop.f32.mrb[0].mxu0
        %v3020 = vadd.f32 0.0, %v3019
        %v3021 = vpop.f32.mrb[0].mxu0
        %3022 = vmatprep.mubr.f32.mxu0 %v418
        %3023 = vmatmul.mubr.f32.gmra.mrb[0].mxu0 %v417
        %v3024 = vpop.f32.mrb[0].mxu0
        %v3025 = vadd.f32 0.0, %v3024
        %v3026 = vpop.f32.mrb[0].mxu0
        %3027 = vmatprep.mubr.f32.mxu0 %v420
        %3028 = vmatmul.mubr.f32.gmra.mrb[0].mxu0 %v419
        %v3029 = vpop.f32.mrb[0].mxu0
        %v3030 = vadd.f32 0.0, %v3029
        %v3031 = vpop.f32.mrb[0].mxu0
        %3032 = vdwg.mxu0
        %3033 = vmatprep.subr.mxu0 0.0
        %3034 = vmatpush1.msra.mxu0 %v2650
        %3035 = vmatprep.subr.mxu0 0.0
        %3036 = vmatpush1.msra.mxu0 %v2655
        %3037 = vmatprep.subr.mxu0 0.0
        %3038 = vmatpush1.msra.mxu0 %v2660
        %3039 = vmatprep.subr.mxu0 0.0
        %3040 = vmatpush1.msra.mxu0 %v2665
        %3041 = vmatprep.subr.mxu0 0.0
        %3042 = vmatpush1.msra.mxu0 %v2670
        %3043 = vmatprep.subr.mxu0 0.0
        %3044 = vmatpush1.msra.mxu0 %v2675
        %3045 = vmatprep.subr.mxu0 0.0
        %3046 = vmatpush1.msra.mxu0 %v2680
        %3047 = vmatprep.subr.mxu0 0.0
        %3048 = vmatpush1.msra.mxu0 %v2685
        %3049 = vmatprep.subr.mxu0 0.0
        %3050 = vmatpush1.msra.mxu0 %v2690
        %3051 = vmatprep.subr.mxu0 0.0
        %3052 = vmatpush1.msra.mxu0 %v2695
        %3053 = vmatprep.subr.mxu0 0.0
        %3054 = vmatpush1.msra.mxu0 %v2700
        %3055 = vmatprep.subr.mxu0 0.0
        %3056 = vmatpush1.msra.mxu0 %v2705
        %3057 = vmatprep.subr.mxu0 0.0
        %3058 = vmatpush1.msra.mxu0 %v2710
        %3059 = vmatprep.subr.mxu0 0.0
        %3060 = vmatpush1.msra.mxu0 %v2715
        %3061 = vmatprep.subr.mxu0 0.0
        %3062 = vmatpush1.msra.mxu0 %v2720
        %3063 = vmatprep.subr.mxu0 0.0
        %3064 = vmatpush1.msra.mxu0 %v2725
        %3065 = vmatprep.subr.mxu0 0.0
        %3066 = vmatpush1.msra.mxu0 %v2730
        %3067 = vmatprep.subr.mxu0 0.0
        %3068 = vmatpush1.msra.mxu0 %v2735
        %3069 = vmatprep.subr.mxu0 0.0
        %3070 = vmatpush1.msra.mxu0 %v2740
        %3071 = vmatprep.subr.mxu0 0.0
        %3072 = vmatpush1.msra.mxu0 %v2745
        %3073 = vmatprep.subr.mxu0 0.0
        %3074 = vmatpush1.msra.mxu0 %v2750
        %3075 = vmatprep.subr.mxu0 0.0
        %3076 = vmatpush1.msra.mxu0 %v2755
        %3077 = vmatprep.subr.mxu0 0.0
        %3078 = vmatpush1.msra.mxu0 %v2760
        %3079 = vmatprep.subr.mxu0 0.0
        %3080 = vmatpush1.msra.mxu0 %v2765
        %3081 = vmatprep.subr.mxu0 0.0
        %3082 = vmatpush1.msra.mxu0 %v2770
        %3083 = vmatprep.subr.mxu0 0.0
        %3084 = vmatpush1.msra.mxu0 %v2775
        %3085 = vmatprep.subr.mxu0 0.0
        %3086 = vmatpush1.msra.mxu0 %v2780
        %3087 = vmatprep.subr.mxu0 0.0
        %3088 = vmatpush1.msra.mxu0 %v2785
        %3089 = vmatprep.subr.mxu0 0.0
        %3090 = vmatpush1.msra.mxu0 %v2790
        %3091 = vmatprep.subr.mxu0 0.0
        %3092 = vmatpush1.msra.mxu0 %v2795
        %3093 = vmatprep.subr.mxu0 0.0
        %3094 = vmatpush1.msra.mxu0 %v2800
        %3095 = vmatprep.subr.mxu0 0.0
        %3096 = vmatpush1.msra.mxu0 %v2805
        %3097 = vmatprep.mubr.f32.mxu0 %v648
        %3098 = vmatmul.mubr.f32.gmra.mrb[0].mxu0 %v647
        %v3099 = vpop.f32.mrb[0].mxu0
        %v3100 = vadd.f32 0.0, %v3099
        %v3101 = vpop.f32.mrb[0].mxu0
        %3102 = vmatprep.mubr.f32.mxu0 %v650
        %3103 = vmatmul.mubr.f32.gmra.mrb[0].mxu0 %v649
        %v3104 = vpop.f32.mrb[0].mxu0
        %v3105 = vadd.f32 0.0, %v3104
        %v3106 = vpop.f32.mrb[0].mxu0
        %3107 = vmatprep.mubr.f32.mxu0 %v652
        %3108 = vmatmul.mubr.f32.gmra.mrb[0].mxu0 %v651
        %v3109 = vpop.f32.mrb[0].mxu0
        %v3110 = vadd.f32 0.0, %v3109
        %v3111 = vpop.f32.mrb[0].mxu0
        %3112 = vmatprep.mubr.f32.mxu0 %v654
        %3113 = vmatmul.mubr.f32.gmra.mrb[0].mxu0 %v653
        %v3114 = vpop.f32.mrb[0].mxu0
        %v3115 = vadd.f32 0.0, %v3114
        %v3116 = vpop.f32.mrb[0].mxu0
        %3117 = vmatprep.mubr.f32.mxu0 %v656
        %3118 = vmatmul.mubr.f32.gmra.mrb[0].mxu0 %v655
        %v3119 = vpop.f32.mrb[0].mxu0
        %v3120 = vadd.f32 0.0, %v3119
        %v3121 = vpop.f32.mrb[0].mxu0
        %3122 = vmatprep.mubr.f32.mxu0 %v658
        %3123 = vmatmul.mubr.f32.gmra.mrb[0].mxu0 %v657
        %v3124 = vpop.f32.mrb[0].mxu0
        %v3125 = vadd.f32 0.0, %v3124
        %v3126 = vpop.f32.mrb[0].mxu0
        %3127 = vmatprep.mubr.f32.mxu0 %v660
        %3128 = vmatmul.mubr.f32.gmra.mrb[0].mxu0 %v659
        %v3129 = vpop.f32.mrb[0].mxu0
        %v3130 = vadd.f32 0.0, %v3129
        %v3131 = vpop.f32.mrb[0].mxu0
        %3132 = vmatprep.mubr.f32.mxu0 %v662
        %3133 = vmatmul.mubr.f32.gmra.mrb[0].mxu0 %v661
        %v3134 = vpop.f32.mrb[0].mxu0
        %v3135 = vadd.f32 0.0, %v3134
        %v3136 = vpop.f32.mrb[0].mxu0
        %3137 = vmatprep.mubr.f32.mxu0 %v664
        %3138 = vmatmul.mubr.f32.gmra.mrb[0].mxu0 %v663
        %v3139 = vpop.f32.mrb[0].mxu0
        %v3140 = vadd.f32 0.0, %v3139
        %v3141 = vpop.f32.mrb[0].mxu0
        %3142 = vmatprep.mubr.f32.mxu0 %v666
        %3143 = vmatmul.mubr.f32.gmra.mrb[0].mxu0 %v665
        %v3144 = vpop.f32.mrb[0].mxu0
        %v3145 = vadd.f32 0.0, %v3144
        %v3146 = vpop.f32.mrb[0].mxu0
        %3147 = vmatprep.mubr.f32.mxu0 %v668
        %3148 = vmatmul.mubr.f32.gmra.mrb[0].mxu0 %v667
        %v3149 = vpop.f32.mrb[0].mxu0
        %v3150 = vadd.f32 0.0, %v3149
        %v3151 = vpop.f32.mrb[0].mxu0
        %3152 = vmatprep.mubr.f32.mxu0 %v670
        %3153 = vmatmul.mubr.f32.gmra.mrb[0].mxu0 %v669
        %v3154 = vpop.f32.mrb[0].mxu0
        %v3155 = vadd.f32 0.0, %v3154
        %v3156 = vpop.f32.mrb[0].mxu0
        %3157 = vmatprep.mubr.f32.mxu0 %v672
        %3158 = vmatmul.mubr.f32.gmra.mrb[0].mxu0 %v671
        %v3159 = vpop.f32.mrb[0].mxu0
        %v3160 = vadd.f32 0.0, %v3159
        %v3161 = vpop.f32.mrb[0].mxu0
        %3162 = vmatprep.mubr.f32.mxu0 %v674
        %3163 = vmatmul.mubr.f32.gmra.mrb[0].mxu0 %v673
        %v3164 = vpop.f32.mrb[0].mxu0
        %v3165 = vadd.f32 0.0, %v3164
        %v3166 = vpop.f32.mrb[0].mxu0
        %3167 = vmatprep.mubr.f32.mxu0 %v676
        %3168 = vmatmul.mubr.f32.gmra.mrb[0].mxu0 %v675
        %v3169 = vpop.f32.mrb[0].mxu0
        %v3170 = vadd.f32 0.0, %v3169
        %v3171 = vpop.f32.mrb[0].mxu0
        %3172 = vmatprep.mubr.f32.mxu0 %v678
        %3173 = vmatmul.mubr.f32.gmra.mrb[0].mxu0 %v677
        %v3174 = vpop.f32.mrb[0].mxu0
        %v3175 = vadd.f32 0.0, %v3174
        %v3176 = vpop.f32.mrb[0].mxu0
        %3177 = vmatprep.mubr.f32.mxu0 %v680
        %3178 = vmatmul.mubr.f32.gmra.mrb[0].mxu0 %v679
        %v3179 = vpop.f32.mrb[0].mxu0
        %v3180 = vadd.f32 0.0, %v3179
        %v3181 = vpop.f32.mrb[0].mxu0
        %3182 = vmatprep.mubr.f32.mxu0 %v682
        %3183 = vmatmul.mubr.f32.gmra.mrb[0].mxu0 %v681
        %v3184 = vpop.f32.mrb[0].mxu0
        %v3185 = vadd.f32 0.0, %v3184
        %v3186 = vpop.f32.mrb[0].mxu0
        %3187 = vmatprep.mubr.f32.mxu0 %v684
        %3188 = vmatmul.mubr.f32.gmra.mrb[0].mxu0 %v683
        %v3189 = vpop.f32.mrb[0].mxu0
        %v3190 = vadd.f32 0.0, %v3189
        %v3191 = vpop.f32.mrb[0].mxu0
        %3192 = vmatprep.mubr.f32.mxu0 %v686
        %3193 = vmatmul.mubr.f32.gmra.mrb[0].mxu0 %v685
        %v3194 = vpop.f32.mrb[0].mxu0
        %v3195 = vadd.f32 0.0, %v3194
        %v3196 = vpop.f32.mrb[0].mxu0
        %3197 = vmatprep.mubr.f32.mxu0 %v688
        %3198 = vmatmul.mubr.f32.gmra.mrb[0].mxu0 %v687
        %v3199 = vpop.f32.mrb[0].mxu0
        %v3200 = vadd.f32 0.0, %v3199
        %v3201 = vpop.f32.mrb[0].mxu0
        %3202 = vmatprep.mubr.f32.mxu0 %v690
        %3203 = vmatmul.mubr.f32.gmra.mrb[0].mxu0 %v689
        %v3204 = vpop.f32.mrb[0].mxu0
        %v3205 = vadd.f32 0.0, %v3204
        %v3206 = vpop.f32.mrb[0].mxu0
        %3207 = vmatprep.mubr.f32.mxu0 %v692
        %3208 = vmatmul.mubr.f32.gmra.mrb[0].mxu0 %v691
        %v3209 = vpop.f32.mrb[0].mxu0
        %v3210 = vadd.f32 0.0, %v3209
        %v3211 = vpop.f32.mrb[0].mxu0
        %3212 = vmatprep.mubr.f32.mxu0 %v694
        %3213 = vmatmul.mubr.f32.gmra.mrb[0].mxu0 %v693
        %v3214 = vpop.f32.mrb[0].mxu0
        %v3215 = vadd.f32 0.0, %v3214
        %v3216 = vpop.f32.mrb[0].mxu0
        %3217 = vmatprep.mubr.f32.mxu0 %v696
        %3218 = vmatmul.mubr.f32.gmra.mrb[0].mxu0 %v695
        %v3219 = vpop.f32.mrb[0].mxu0
        %v3220 = vadd.f32 0.0, %v3219
        %v3221 = vpop.f32.mrb[0].mxu0
        %3222 = vmatprep.mubr.f32.mxu0 %v698
        %3223 = vmatmul.mubr.f32.gmra.mrb[0].mxu0 %v697
        %v3224 = vpop.f32.mrb[0].mxu0
        %v3225 = vadd.f32 0.0, %v3224
        %v3226 = vpop.f32.mrb[0].mxu0
        %3227 = vmatprep.mubr.f32.mxu0 %v700
        %3228 = vmatmul.mubr.f32.gmra.mrb[0].mxu0 %v699
        %v3229 = vpop.f32.mrb[0].mxu0
        %v3230 = vadd.f32 0.0, %v3229
        %v3231 = vpop.f32.mrb[0].mxu0
        %3232 = vmatprep.mubr.f32.mxu0 %v702
        %3233 = vmatmul.mubr.f32.gmra.mrb[0].mxu0 %v701
        %v3234 = vpop.f32.mrb[0].mxu0
        %v3235 = vadd.f32 0.0, %v3234
        %v3236 = vpop.f32.mrb[0].mxu0
        %3237 = vmatprep.mubr.f32.mxu0 %v704
        %3238 = vmatmul.mubr.f32.gmra.mrb[0].mxu0 %v703
        %v3239 = vpop.f32.mrb[0].mxu0
        %v3240 = vadd.f32 0.0, %v3239
        %v3241 = vpop.f32.mrb[0].mxu0
        %3242 = vmatprep.mubr.f32.mxu0 %v706
        %3243 = vmatmul.mubr.f32.gmra.mrb[0].mxu0 %v705
        %v3244 = vpop.f32.mrb[0].mxu0
        %v3245 = vadd.f32 0.0, %v3244
        %v3246 = vpop.f32.mrb[0].mxu0
        %3247 = vmatprep.mubr.f32.mxu0 %v708
        %3248 = vmatmul.mubr.f32.gmra.mrb[0].mxu0 %v707
        %v3249 = vpop.f32.mrb[0].mxu0
        %v3250 = vadd.f32 0.0, %v3249
        %v3251 = vpop.f32.mrb[0].mxu0
        %3252 = vmatprep.mubr.f32.mxu0 %v710
        %3253 = vmatmul.mubr.f32.gmra.mrb[0].mxu0 %v709
        %v3254 = vpop.f32.mrb[0].mxu0
        %v3255 = vadd.f32 0.0, %v3254
        %v3256 = vpop.f32.mrb[0].mxu0
        %3257 = vdwg.mxu0
        %v3258 = vlaneseq
        %v3259 = vshrl.u32 %v3258, 7
        %v3260 = vsub.s32 3, %v3259
        %v3261 = vrot.slane %v268, %v3260
        %v3262 = vadd.f32 %v2875, %v3261
        %v3263 = vadd.f32 %v2880, %v3261
        %v3264 = vadd.f32 %v2885, %v3261
        %v3265 = vadd.f32 %v2890, %v3261
        %v3266 = vadd.f32 %v2895, %v3261
        %v3267 = vadd.f32 %v2900, %v3261
        %v3268 = vadd.f32 %v2905, %v3261
        %v3269 = vadd.f32 %v2910, %v3261
        %v3270 = vadd.f32 %v2915, %v3261
        %v3271 = vadd.f32 %v2920, %v3261
        %v3272 = vadd.f32 %v2925, %v3261
        %v3273 = vadd.f32 %v2930, %v3261
        %v3274 = vadd.f32 %v2935, %v3261
        %v3275 = vadd.f32 %v2940, %v3261
        %v3276 = vadd.f32 %v2945, %v3261
        %v3277 = vadd.f32 %v2950, %v3261
        %v3278 = vadd.f32 %v2955, %v3261
        %v3279 = vadd.f32 %v2960, %v3261
        %v3280 = vadd.f32 %v2965, %v3261
        %v3281 = vadd.f32 %v2970, %v3261
        %v3282 = vadd.f32 %v2975, %v3261
        %v3283 = vadd.f32 %v2980, %v3261
        %v3284 = vadd.f32 %v2985, %v3261
        %v3285 = vadd.f32 %v2990, %v3261
        %v3286 = vadd.f32 %v2995, %v3261
        %v3287 = vadd.f32 %v3000, %v3261
        %v3288 = vadd.f32 %v3005, %v3261
        %v3289 = vadd.f32 %v3010, %v3261
        %v3290 = vadd.f32 %v3015, %v3261
        %v3291 = vadd.f32 %v3020, %v3261
        %v3292 = vadd.f32 %v3025, %v3261
        %v3293 = vadd.f32 %v3030, %v3261
        %v3294 = vadd.f32 %v3100, %v3261
        %v3295 = vadd.f32 %v3105, %v3261
        %v3296 = vadd.f32 %v3110, %v3261
        %v3297 = vadd.f32 %v3115, %v3261
        %v3298 = vadd.f32 %v3120, %v3261
        %v3299 = vadd.f32 %v3125, %v3261
        %v3300 = vadd.f32 %v3130, %v3261
        %v3301 = vadd.f32 %v3135, %v3261
        %v3302 = vadd.f32 %v3140, %v3261
        %v3303 = vadd.f32 %v3145, %v3261
        %v3304 = vadd.f32 %v3150, %v3261
        %v3305 = vadd.f32 %v3155, %v3261
        %v3306 = vadd.f32 %v3160, %v3261
        %v3307 = vadd.f32 %v3165, %v3261
        %v3308 = vadd.f32 %v3170, %v3261
        %v3309 = vadd.f32 %v3175, %v3261
        %v3310 = vadd.f32 %v3180, %v3261
        %v3311 = vadd.f32 %v3185, %v3261
        %v3312 = vadd.f32 %v3190, %v3261
        %v3313 = vadd.f32 %v3195, %v3261
        %v3314 = vadd.f32 %v3200, %v3261
        %v3315 = vadd.f32 %v3205, %v3261
        %v3316 = vadd.f32 %v3210, %v3261
        %v3317 = vadd.f32 %v3215, %v3261
        %v3318 = vadd.f32 %v3220, %v3261
        %v3319 = vadd.f32 %v3225, %v3261
        %v3320 = vadd.f32 %v3230, %v3261
        %v3321 = vadd.f32 %v3235, %v3261
        %v3322 = vadd.f32 %v3240, %v3261
        %v3323 = vadd.f32 %v3245, %v3261
        %v3324 = vadd.f32 %v3250, %v3261
        %v3325 = vadd.f32 %v3255, %v3261
        %3326 = vadd.xlane.f32.xlu0 %v3262
        %v3327 = vpop.xlane.xlu0 %3326
        %3328 = vadd.xlane.f32.xlu0 %v3263
        %v3329 = vpop.xlane.xlu0 %3328
        %3330 = vadd.xlane.f32.xlu0 %v3264
        %v3331 = vpop.xlane.xlu0 %3330
        %3332 = vadd.xlane.f32.xlu0 %v3265
        %v3333 = vpop.xlane.xlu0 %3332
        %3334 = vadd.xlane.f32.xlu0 %v3266
        %v3335 = vpop.xlane.xlu0 %3334
        %3336 = vadd.xlane.f32.xlu0 %v3267
        %v3337 = vpop.xlane.xlu0 %3336
        %3338 = vadd.xlane.f32.xlu0 %v3268
        %v3339 = vpop.xlane.xlu0 %3338
        %3340 = vadd.xlane.f32.xlu0 %v3269
        %v3341 = vpop.xlane.xlu0 %3340
        %3342 = vadd.xlane.f32.xlu0 %v3270
        %v3343 = vpop.xlane.xlu0 %3342
        %3344 = vadd.xlane.f32.xlu0 %v3271
        %v3345 = vpop.xlane.xlu0 %3344
        %3346 = vadd.xlane.f32.xlu0 %v3272
        %v3347 = vpop.xlane.xlu0 %3346
        %3348 = vadd.xlane.f32.xlu0 %v3273
        %v3349 = vpop.xlane.xlu0 %3348
        %3350 = vadd.xlane.f32.xlu0 %v3274
        %v3351 = vpop.xlane.xlu0 %3350
        %3352 = vadd.xlane.f32.xlu0 %v3275
        %v3353 = vpop.xlane.xlu0 %3352
        %3354 = vadd.xlane.f32.xlu0 %v3276
        %v3355 = vpop.xlane.xlu0 %3354
        %3356 = vadd.xlane.f32.xlu0 %v3277
        %v3357 = vpop.xlane.xlu0 %3356
        %3358 = vadd.xlane.f32.xlu0 %v3278
        %v3359 = vpop.xlane.xlu0 %3358
        %3360 = vadd.xlane.f32.xlu0 %v3279
        %v3361 = vpop.xlane.xlu0 %3360
        %3362 = vadd.xlane.f32.xlu0 %v3280
        %v3363 = vpop.xlane.xlu0 %3362
        %3364 = vadd.xlane.f32.xlu0 %v3281
        %v3365 = vpop.xlane.xlu0 %3364
        %3366 = vadd.xlane.f32.xlu0 %v3282
        %v3367 = vpop.xlane.xlu0 %3366
        %3368 = vadd.xlane.f32.xlu0 %v3283
        %v3369 = vpop.xlane.xlu0 %3368
        %3370 = vadd.xlane.f32.xlu0 %v3284
        %v3371 = vpop.xlane.xlu0 %3370
        %3372 = vadd.xlane.f32.xlu0 %v3285
        %v3373 = vpop.xlane.xlu0 %3372
        %3374 = vadd.xlane.f32.xlu0 %v3286
        %v3375 = vpop.xlane.xlu0 %3374
        %3376 = vadd.xlane.f32.xlu0 %v3287
        %v3377 = vpop.xlane.xlu0 %3376
        %3378 = vadd.xlane.f32.xlu0 %v3288
        %v3379 = vpop.xlane.xlu0 %3378
        %3380 = vadd.xlane.f32.xlu0 %v3289
        %v3381 = vpop.xlane.xlu0 %3380
        %3382 = vadd.xlane.f32.xlu0 %v3290
        %v3383 = vpop.xlane.xlu0 %3382
        %3384 = vadd.xlane.f32.xlu0 %v3291
        %v3385 = vpop.xlane.xlu0 %3384
        %3386 = vadd.xlane.f32.xlu0 %v3292
        %v3387 = vpop.xlane.xlu0 %3386
        %3388 = vadd.xlane.f32.xlu0 %v3293
        %v3389 = vpop.xlane.xlu0 %3388
        %3390 = vadd.xlane.f32.xlu0 %v3294
        %v3391 = vpop.xlane.xlu0 %3390
        %3392 = vadd.xlane.f32.xlu0 %v3295
        %v3393 = vpop.xlane.xlu0 %3392
        %3394 = vadd.xlane.f32.xlu0 %v3296
        %v3395 = vpop.xlane.xlu0 %3394
        %3396 = vadd.xlane.f32.xlu0 %v3297
        %v3397 = vpop.xlane.xlu0 %3396
        %3398 = vadd.xlane.f32.xlu0 %v3298
        %v3399 = vpop.xlane.xlu0 %3398
        %3400 = vadd.xlane.f32.xlu0 %v3299
        %v3401 = vpop.xlane.xlu0 %3400
        %3402 = vadd.xlane.f32.xlu0 %v3300
        %v3403 = vpop.xlane.xlu0 %3402
        %3404 = vadd.xlane.f32.xlu0 %v3301
        %v3405 = vpop.xlane.xlu0 %3404
        %3406 = vadd.xlane.f32.xlu0 %v3302
        %v3407 = vpop.xlane.xlu0 %3406
        %3408 = vadd.xlane.f32.xlu0 %v3303
        %v3409 = vpop.xlane.xlu0 %3408
        %3410 = vadd.xlane.f32.xlu0 %v3304
        %v3411 = vpop.xlane.xlu0 %3410
        %3412 = vadd.xlane.f32.xlu0 %v3305
        %v3413 = vpop.xlane.xlu0 %3412
        %3414 = vadd.xlane.f32.xlu0 %v3306
        %v3415 = vpop.xlane.xlu0 %3414
        %3416 = vadd.xlane.f32.xlu0 %v3307
        %v3417 = vpop.xlane.xlu0 %3416
        %3418 = vadd.xlane.f32.xlu0 %v3308
        %v3419 = vpop.xlane.xlu0 %3418
        %3420 = vadd.xlane.f32.xlu0 %v3309
        %v3421 = vpop.xlane.xlu0 %3420
        %3422 = vadd.xlane.f32.xlu0 %v3310
        %v3423 = vpop.xlane.xlu0 %3422
        %3424 = vadd.xlane.f32.xlu0 %v3311
        %v3425 = vpop.xlane.xlu0 %3424
        %3426 = vadd.xlane.f32.xlu0 %v3312
        %v3427 = vpop.xlane.xlu0 %3426
        %3428 = vadd.xlane.f32.xlu0 %v3313
        %v3429 = vpop.xlane.xlu0 %3428
        %3430 = vadd.xlane.f32.xlu0 %v3314
        %v3431 = vpop.xlane.xlu0 %3430
        %3432 = vadd.xlane.f32.xlu0 %v3315
        %v3433 = vpop.xlane.xlu0 %3432
        %3434 = vadd.xlane.f32.xlu0 %v3316
        %v3435 = vpop.xlane.xlu0 %3434
        %3436 = vadd.xlane.f32.xlu0 %v3317
        %v3437 = vpop.xlane.xlu0 %3436
        %3438 = vadd.xlane.f32.xlu0 %v3318
        %v3439 = vpop.xlane.xlu0 %3438
        %3440 = vadd.xlane.f32.xlu0 %v3319
        %v3441 = vpop.xlane.xlu0 %3440
        %3442 = vadd.xlane.f32.xlu0 %v3320
        %v3443 = vpop.xlane.xlu0 %3442
        %3444 = vadd.xlane.f32.xlu0 %v3321
        %v3445 = vpop.xlane.xlu0 %3444
        %3446 = vadd.xlane.f32.xlu0 %v3322
        %v3447 = vpop.xlane.xlu0 %3446
        %3448 = vadd.xlane.f32.xlu0 %v3323
        %v3449 = vpop.xlane.xlu0 %3448
        %3450 = vadd.xlane.f32.xlu0 %v3324
        %v3451 = vpop.xlane.xlu0 %3450
        %3452 = vadd.xlane.f32.xlu0 %v3325
        %v3453 = vpop.xlane.xlu0 %3452
        %v3454 = vmul.f32 %v3327, %v1646
        %v3455 = vmul.f32 %v3329, %v1646
        %v3456 = vmul.f32 %v3331, %v1646
        %v3457 = vmul.f32 %v3333, %v1646
        %v3458 = vmul.f32 %v3335, %v1646
        %v3459 = vmul.f32 %v3337, %v1646
        %v3460 = vmul.f32 %v3339, %v1646
        %v3461 = vmul.f32 %v3341, %v1646
        %v3462 = vmul.f32 %v3343, %v1646
        %v3463 = vmul.f32 %v3345, %v1646
        %v3464 = vmul.f32 %v3347, %v1646
        %v3465 = vmul.f32 %v3349, %v1646
        %v3466 = vmul.f32 %v3351, %v1646
        %v3467 = vmul.f32 %v3353, %v1646
        %v3468 = vmul.f32 %v3355, %v1646
        %v3469 = vmul.f32 %v3357, %v1646
        %v3470 = vmul.f32 %v3359, %v1646
        %v3471 = vmul.f32 %v3361, %v1646
        %v3472 = vmul.f32 %v3363, %v1646
        %v3473 = vmul.f32 %v3365, %v1646
        %v3474 = vmul.f32 %v3367, %v1646
        %v3475 = vmul.f32 %v3369, %v1646
        %v3476 = vmul.f32 %v3371, %v1646
        %v3477 = vmul.f32 %v3373, %v1646
        %v3478 = vmul.f32 %v3375, %v1646
        %v3479 = vmul.f32 %v3377, %v1646
        %v3480 = vmul.f32 %v3379, %v1646
        %v3481 = vmul.f32 %v3381, %v1646
        %v3482 = vmul.f32 %v3383, %v1646
        %v3483 = vmul.f32 %v3385, %v1646
        %v3484 = vmul.f32 %v3387, %v1646
        %v3485 = vmul.f32 %v3389, %v1646
        %v3486 = vmul.f32 %v3391, %v1646
        %v3487 = vmul.f32 %v3393, %v1646
        %v3488 = vmul.f32 %v3395, %v1646
        %v3489 = vmul.f32 %v3397, %v1646
        %v3490 = vmul.f32 %v3399, %v1646
        %v3491 = vmul.f32 %v3401, %v1646
        %v3492 = vmul.f32 %v3403, %v1646
        %v3493 = vmul.f32 %v3405, %v1646
        %v3494 = vmul.f32 %v3407, %v1646
        %v3495 = vmul.f32 %v3409, %v1646
        %v3496 = vmul.f32 %v3411, %v1646
        %v3497 = vmul.f32 %v3413, %v1646
        %v3498 = vmul.f32 %v3415, %v1646
        %v3499 = vmul.f32 %v3417, %v1646
        %v3500 = vmul.f32 %v3419, %v1646
        %v3501 = vmul.f32 %v3421, %v1646
        %v3502 = vmul.f32 %v3423, %v1646
        %v3503 = vmul.f32 %v3425, %v1646
        %v3504 = vmul.f32 %v3427, %v1646
        %v3505 = vmul.f32 %v3429, %v1646
        %v3506 = vmul.f32 %v3431, %v1646
        %v3507 = vmul.f32 %v3433, %v1646
        %v3508 = vmul.f32 %v3435, %v1646
        %v3509 = vmul.f32 %v3437, %v1646
        %v3510 = vmul.f32 %v3439, %v1646
        %v3511 = vmul.f32 %v3441, %v1646
        %v3512 = vmul.f32 %v3443, %v1646
        %v3513 = vmul.f32 %v3445, %v1646
        %v3514 = vmul.f32 %v3447, %v1646
        %v3515 = vmul.f32 %v3449, %v1646
        %v3516 = vmul.f32 %v3451, %v1646
        %v3517 = vmul.f32 %v3453, %v1646
        %v3518 = vsub.f32 %v3262, %v3454
        %v3519 = vsub.f32 %v3263, %v3455
        %v3520 = vsub.f32 %v3264, %v3456
        %v3521 = vsub.f32 %v3265, %v3457
        %v3522 = vsub.f32 %v3266, %v3458
        %v3523 = vsub.f32 %v3267, %v3459
        %v3524 = vsub.f32 %v3268, %v3460
        %v3525 = vsub.f32 %v3269, %v3461
        %v3526 = vsub.f32 %v3270, %v3462
        %v3527 = vsub.f32 %v3271, %v3463
        %v3528 = vsub.f32 %v3272, %v3464
        %v3529 = vsub.f32 %v3273, %v3465
        %v3530 = vsub.f32 %v3274, %v3466
        %v3531 = vsub.f32 %v3275, %v3467
        %v3532 = vsub.f32 %v3276, %v3468
        %v3533 = vsub.f32 %v3277, %v3469
        %v3534 = vsub.f32 %v3278, %v3470
        %v3535 = vsub.f32 %v3279, %v3471
        %v3536 = vsub.f32 %v3280, %v3472
        %v3537 = vsub.f32 %v3281, %v3473
        %v3538 = vsub.f32 %v3282, %v3474
        %v3539 = vsub.f32 %v3283, %v3475
        %v3540 = vsub.f32 %v3284, %v3476
        %v3541 = vsub.f32 %v3285, %v3477
        %v3542 = vsub.f32 %v3286, %v3478
        %v3543 = vsub.f32 %v3287, %v3479
        %v3544 = vsub.f32 %v3288, %v3480
        %v3545 = vsub.f32 %v3289, %v3481
        %v3546 = vsub.f32 %v3290, %v3482
        %v3547 = vsub.f32 %v3291, %v3483
        %v3548 = vsub.f32 %v3292, %v3484
        %v3549 = vsub.f32 %v3293, %v3485
        %v3550 = vsub.f32 %v3294, %v3486
        %v3551 = vsub.f32 %v3295, %v3487
        %v3552 = vsub.f32 %v3296, %v3488
        %v3553 = vsub.f32 %v3297, %v3489
        %v3554 = vsub.f32 %v3298, %v3490
        %v3555 = vsub.f32 %v3299, %v3491
        %v3556 = vsub.f32 %v3300, %v3492
        %v3557 = vsub.f32 %v3301, %v3493
        %v3558 = vsub.f32 %v3302, %v3494
        %v3559 = vsub.f32 %v3303, %v3495
        %v3560 = vsub.f32 %v3304, %v3496
        %v3561 = vsub.f32 %v3305, %v3497
        %v3562 = vsub.f32 %v3306, %v3498
        %v3563 = vsub.f32 %v3307, %v3499
        %v3564 = vsub.f32 %v3308, %v3500
        %v3565 = vsub.f32 %v3309, %v3501
        %v3566 = vsub.f32 %v3310, %v3502
        %v3567 = vsub.f32 %v3311, %v3503
        %v3568 = vsub.f32 %v3312, %v3504
        %v3569 = vsub.f32 %v3313, %v3505
        %v3570 = vsub.f32 %v3314, %v3506
        %v3571 = vsub.f32 %v3315, %v3507
        %v3572 = vsub.f32 %v3316, %v3508
        %v3573 = vsub.f32 %v3317, %v3509
        %v3574 = vsub.f32 %v3318, %v3510
        %v3575 = vsub.f32 %v3319, %v3511
        %v3576 = vsub.f32 %v3320, %v3512
        %v3577 = vsub.f32 %v3321, %v3513
        %v3578 = vsub.f32 %v3322, %v3514
        %v3579 = vsub.f32 %v3323, %v3515
        %v3580 = vsub.f32 %v3324, %v3516
        %v3581 = vsub.f32 %v3325, %v3517
        %v3582 = vmul.f32 %v3518, %v3518
        %v3583 = vmul.f32 %v3519, %v3519
        %v3584 = vmul.f32 %v3520, %v3520
        %v3585 = vmul.f32 %v3521, %v3521
        %v3586 = vmul.f32 %v3522, %v3522
        %v3587 = vmul.f32 %v3523, %v3523
        %v3588 = vmul.f32 %v3524, %v3524
        %v3589 = vmul.f32 %v3525, %v3525
        %v3590 = vmul.f32 %v3526, %v3526
        %v3591 = vmul.f32 %v3527, %v3527
        %v3592 = vmul.f32 %v3528, %v3528
        %v3593 = vmul.f32 %v3529, %v3529
        %v3594 = vmul.f32 %v3530, %v3530
        %v3595 = vmul.f32 %v3531, %v3531
        %v3596 = vmul.f32 %v3532, %v3532
        %v3597 = vmul.f32 %v3533, %v3533
        %v3598 = vmul.f32 %v3534, %v3534
        %v3599 = vmul.f32 %v3535, %v3535
        %v3600 = vmul.f32 %v3536, %v3536
        %v3601 = vmul.f32 %v3537, %v3537
        %v3602 = vmul.f32 %v3538, %v3538
        %v3603 = vmul.f32 %v3539, %v3539
        %v3604 = vmul.f32 %v3540, %v3540
        %v3605 = vmul.f32 %v3541, %v3541
        %v3606 = vmul.f32 %v3542, %v3542
        %v3607 = vmul.f32 %v3543, %v3543
        %v3608 = vmul.f32 %v3544, %v3544
        %v3609 = vmul.f32 %v3545, %v3545
        %v3610 = vmul.f32 %v3546, %v3546
        %v3611 = vmul.f32 %v3547, %v3547
        %v3612 = vmul.f32 %v3548, %v3548
        %v3613 = vmul.f32 %v3549, %v3549
        %v3614 = vmul.f32 %v3550, %v3550
        %v3615 = vmul.f32 %v3551, %v3551
        %v3616 = vmul.f32 %v3552, %v3552
        %v3617 = vmul.f32 %v3553, %v3553
        %v3618 = vmul.f32 %v3554, %v3554
        %v3619 = vmul.f32 %v3555, %v3555
        %v3620 = vmul.f32 %v3556, %v3556
        %v3621 = vmul.f32 %v3557, %v3557
        %v3622 = vmul.f32 %v3558, %v3558
        %v3623 = vmul.f32 %v3559, %v3559
        %v3624 = vmul.f32 %v3560, %v3560
        %v3625 = vmul.f32 %v3561, %v3561
        %v3626 = vmul.f32 %v3562, %v3562
        %v3627 = vmul.f32 %v3563, %v3563
        %v3628 = vmul.f32 %v3564, %v3564
        %v3629 = vmul.f32 %v3565, %v3565
        %v3630 = vmul.f32 %v3566, %v3566
        %v3631 = vmul.f32 %v3567, %v3567
        %v3632 = vmul.f32 %v3568, %v3568
        %v3633 = vmul.f32 %v3569, %v3569
        %v3634 = vmul.f32 %v3570, %v3570
        %v3635 = vmul.f32 %v3571, %v3571
        %v3636 = vmul.f32 %v3572, %v3572
        %v3637 = vmul.f32 %v3573, %v3573
        %v3638 = vmul.f32 %v3574, %v3574
        %v3639 = vmul.f32 %v3575, %v3575
        %v3640 = vmul.f32 %v3576, %v3576
        %v3641 = vmul.f32 %v3577, %v3577
        %v3642 = vmul.f32 %v3578, %v3578
        %v3643 = vmul.f32 %v3579, %v3579
        %v3644 = vmul.f32 %v3580, %v3580
        %v3645 = vmul.f32 %v3581, %v3581
        %3646 = vadd.xlane.f32.xlu0 %v3582
        %v3647 = vpop.xlane.xlu0 %3646
        %3648 = vadd.xlane.f32.xlu0 %v3583
        %v3649 = vpop.xlane.xlu0 %3648
        %3650 = vadd.xlane.f32.xlu0 %v3584
        %v3651 = vpop.xlane.xlu0 %3650
        %3652 = vadd.xlane.f32.xlu0 %v3585
        %v3653 = vpop.xlane.xlu0 %3652
        %3654 = vadd.xlane.f32.xlu0 %v3586
        %v3655 = vpop.xlane.xlu0 %3654
        %3656 = vadd.xlane.f32.xlu0 %v3587
        %v3657 = vpop.xlane.xlu0 %3656
        %3658 = vadd.xlane.f32.xlu0 %v3588
        %v3659 = vpop.xlane.xlu0 %3658
        %3660 = vadd.xlane.f32.xlu0 %v3589
        %v3661 = vpop.xlane.xlu0 %3660
        %3662 = vadd.xlane.f32.xlu0 %v3590
        %v3663 = vpop.xlane.xlu0 %3662
        %3664 = vadd.xlane.f32.xlu0 %v3591
        %v3665 = vpop.xlane.xlu0 %3664
        %3666 = vadd.xlane.f32.xlu0 %v3592
        %v3667 = vpop.xlane.xlu0 %3666
        %3668 = vadd.xlane.f32.xlu0 %v3593
        %v3669 = vpop.xlane.xlu0 %3668
        %3670 = vadd.xlane.f32.xlu0 %v3594
        %v3671 = vpop.xlane.xlu0 %3670
        %3672 = vadd.xlane.f32.xlu0 %v3595
        %v3673 = vpop.xlane.xlu0 %3672
        %3674 = vadd.xlane.f32.xlu0 %v3596
        %v3675 = vpop.xlane.xlu0 %3674
        %3676 = vadd.xlane.f32.xlu0 %v3597
        %v3677 = vpop.xlane.xlu0 %3676
        %3678 = vadd.xlane.f32.xlu0 %v3598
        %v3679 = vpop.xlane.xlu0 %3678
        %3680 = vadd.xlane.f32.xlu0 %v3599
        %v3681 = vpop.xlane.xlu0 %3680
        %3682 = vadd.xlane.f32.xlu0 %v3600
        %v3683 = vpop.xlane.xlu0 %3682
        %3684 = vadd.xlane.f32.xlu0 %v3601
        %v3685 = vpop.xlane.xlu0 %3684
        %3686 = vadd.xlane.f32.xlu0 %v3602
        %v3687 = vpop.xlane.xlu0 %3686
        %3688 = vadd.xlane.f32.xlu0 %v3603
        %v3689 = vpop.xlane.xlu0 %3688
        %3690 = vadd.xlane.f32.xlu0 %v3604
        %v3691 = vpop.xlane.xlu0 %3690
        %3692 = vadd.xlane.f32.xlu0 %v3605
        %v3693 = vpop.xlane.xlu0 %3692
        %3694 = vadd.xlane.f32.xlu0 %v3606
        %v3695 = vpop.xlane.xlu0 %3694
        %3696 = vadd.xlane.f32.xlu0 %v3607
        %v3697 = vpop.xlane.xlu0 %3696
        %3698 = vadd.xlane.f32.xlu0 %v3608
        %v3699 = vpop.xlane.xlu0 %3698
        %3700 = vadd.xlane.f32.xlu0 %v3609
        %v3701 = vpop.xlane.xlu0 %3700
        %3702 = vadd.xlane.f32.xlu0 %v3610
        %v3703 = vpop.xlane.xlu0 %3702
        %3704 = vadd.xlane.f32.xlu0 %v3611
        %v3705 = vpop.xlane.xlu0 %3704
        %3706 = vadd.xlane.f32.xlu0 %v3612
        %v3707 = vpop.xlane.xlu0 %3706
        %3708 = vadd.xlane.f32.xlu0 %v3613
        %v3709 = vpop.xlane.xlu0 %3708
        %3710 = vadd.xlane.f32.xlu0 %v3614
        %v3711 = vpop.xlane.xlu0 %3710
        %3712 = vadd.xlane.f32.xlu0 %v3615
        %v3713 = vpop.xlane.xlu0 %3712
        %3714 = vadd.xlane.f32.xlu0 %v3616
        %v3715 = vpop.xlane.xlu0 %3714
        %3716 = vadd.xlane.f32.xlu0 %v3617
        %v3717 = vpop.xlane.xlu0 %3716
        %3718 = vadd.xlane.f32.xlu0 %v3618
        %v3719 = vpop.xlane.xlu0 %3718
        %3720 = vadd.xlane.f32.xlu0 %v3619
        %v3721 = vpop.xlane.xlu0 %3720
        %3722 = vadd.xlane.f32.xlu0 %v3620
        %v3723 = vpop.xlane.xlu0 %3722
        %3724 = vadd.xlane.f32.xlu0 %v3621
        %v3725 = vpop.xlane.xlu0 %3724
        %3726 = vadd.xlane.f32.xlu0 %v3622
        %v3727 = vpop.xlane.xlu0 %3726
        %3728 = vadd.xlane.f32.xlu0 %v3623
        %v3729 = vpop.xlane.xlu0 %3728
        %3730 = vadd.xlane.f32.xlu0 %v3624
        %v3731 = vpop.xlane.xlu0 %3730
        %3732 = vadd.xlane.f32.xlu0 %v3625
        %v3733 = vpop.xlane.xlu0 %3732
        %3734 = vadd.xlane.f32.xlu0 %v3626
        %v3735 = vpop.xlane.xlu0 %3734
        %3736 = vadd.xlane.f32.xlu0 %v3627
        %v3737 = vpop.xlane.xlu0 %3736
        %3738 = vadd.xlane.f32.xlu0 %v3628
        %v3739 = vpop.xlane.xlu0 %3738
        %3740 = vadd.xlane.f32.xlu0 %v3629
        %v3741 = vpop.xlane.xlu0 %3740
        %3742 = vadd.xlane.f32.xlu0 %v3630
        %v3743 = vpop.xlane.xlu0 %3742
        %3744 = vadd.xlane.f32.xlu0 %v3631
        %v3745 = vpop.xlane.xlu0 %3744
        %3746 = vadd.xlane.f32.xlu0 %v3632
        %v3747 = vpop.xlane.xlu0 %3746
        %3748 = vadd.xlane.f32.xlu0 %v3633
        %v3749 = vpop.xlane.xlu0 %3748
        %3750 = vadd.xlane.f32.xlu0 %v3634
        %v3751 = vpop.xlane.xlu0 %3750
        %3752 = vadd.xlane.f32.xlu0 %v3635
        %v3753 = vpop.xlane.xlu0 %3752
        %3754 = vadd.xlane.f32.xlu0 %v3636
        %v3755 = vpop.xlane.xlu0 %3754
        %3756 = vadd.xlane.f32.xlu0 %v3637
        %v3757 = vpop.xlane.xlu0 %3756
        %3758 = vadd.xlane.f32.xlu0 %v3638
        %v3759 = vpop.xlane.xlu0 %3758
        %3760 = vadd.xlane.f32.xlu0 %v3639
        %v3761 = vpop.xlane.xlu0 %3760
        %3762 = vadd.xlane.f32.xlu0 %v3640
        %v3763 = vpop.xlane.xlu0 %3762
        %3764 = vadd.xlane.f32.xlu0 %v3641
        %v3765 = vpop.xlane.xlu0 %3764
        %3766 = vadd.xlane.f32.xlu0 %v3642
        %v3767 = vpop.xlane.xlu0 %3766
        %3768 = vadd.xlane.f32.xlu0 %v3643
        %v3769 = vpop.xlane.xlu0 %3768
        %3770 = vadd.xlane.f32.xlu0 %v3644
        %v3771 = vpop.xlane.xlu0 %3770
        %3772 = vadd.xlane.f32.xlu0 %v3645
        %v3773 = vpop.xlane.xlu0 %3772
        %v3774 = vmul.f32 %v3647, %v1646
        %v3775 = vmul.f32 %v3649, %v1646
        %v3776 = vmul.f32 %v3651, %v1646
        %v3777 = vmul.f32 %v3653, %v1646
        %v3778 = vmul.f32 %v3655, %v1646
        %v3779 = vmul.f32 %v3657, %v1646
        %v3780 = vmul.f32 %v3659, %v1646
        %v3781 = vmul.f32 %v3661, %v1646
        %v3782 = vmul.f32 %v3663, %v1646
        %v3783 = vmul.f32 %v3665, %v1646
        %v3784 = vmul.f32 %v3667, %v1646
        %v3785 = vmul.f32 %v3669, %v1646
        %v3786 = vmul.f32 %v3671, %v1646
        %v3787 = vmul.f32 %v3673, %v1646
        %v3788 = vmul.f32 %v3675, %v1646
        %v3789 = vmul.f32 %v3677, %v1646
        %v3790 = vmul.f32 %v3679, %v1646
        %v3791 = vmul.f32 %v3681, %v1646
        %v3792 = vmul.f32 %v3683, %v1646
        %v3793 = vmul.f32 %v3685, %v1646
        %v3794 = vmul.f32 %v3687, %v1646
        %v3795 = vmul.f32 %v3689, %v1646
        %v3796 = vmul.f32 %v3691, %v1646
        %v3797 = vmul.f32 %v3693, %v1646
        %v3798 = vmul.f32 %v3695, %v1646
        %v3799 = vmul.f32 %v3697, %v1646
        %v3800 = vmul.f32 %v3699, %v1646
        %v3801 = vmul.f32 %v3701, %v1646
        %v3802 = vmul.f32 %v3703, %v1646
        %v3803 = vmul.f32 %v3705, %v1646
        %v3804 = vmul.f32 %v3707, %v1646
        %v3805 = vmul.f32 %v3709, %v1646
        %v3806 = vmul.f32 %v3711, %v1646
        %v3807 = vmul.f32 %v3713, %v1646
        %v3808 = vmul.f32 %v3715, %v1646
        %v3809 = vmul.f32 %v3717, %v1646
        %v3810 = vmul.f32 %v3719, %v1646
        %v3811 = vmul.f32 %v3721, %v1646
        %v3812 = vmul.f32 %v3723, %v1646
        %v3813 = vmul.f32 %v3725, %v1646
        %v3814 = vmul.f32 %v3727, %v1646
        %v3815 = vmul.f32 %v3729, %v1646
        %v3816 = vmul.f32 %v3731, %v1646
        %v3817 = vmul.f32 %v3733, %v1646
        %v3818 = vmul.f32 %v3735, %v1646
        %v3819 = vmul.f32 %v3737, %v1646
        %v3820 = vmul.f32 %v3739, %v1646
        %v3821 = vmul.f32 %v3741, %v1646
        %v3822 = vmul.f32 %v3743, %v1646
        %v3823 = vmul.f32 %v3745, %v1646
        %v3824 = vmul.f32 %v3747, %v1646
        %v3825 = vmul.f32 %v3749, %v1646
        %v3826 = vmul.f32 %v3751, %v1646
        %v3827 = vmul.f32 %v3753, %v1646
        %v3828 = vmul.f32 %v3755, %v1646
        %v3829 = vmul.f32 %v3757, %v1646
        %v3830 = vmul.f32 %v3759, %v1646
        %v3831 = vmul.f32 %v3761, %v1646
        %v3832 = vmul.f32 %v3763, %v1646
        %v3833 = vmul.f32 %v3765, %v1646
        %v3834 = vmul.f32 %v3767, %v1646
        %v3835 = vmul.f32 %v3769, %v1646
        %v3836 = vmul.f32 %v3771, %v1646
        %v3837 = vmul.f32 %v3773, %v1646
        %v3838 = vadd.f32 %v3774, 1e-05
        %v3839 = vadd.f32 %v3775, 1e-05
        %v3840 = vadd.f32 %v3776, 1e-05
        %v3841 = vadd.f32 %v3777, 1e-05
        %v3842 = vadd.f32 %v3778, 1e-05
        %v3843 = vadd.f32 %v3779, 1e-05
        %v3844 = vadd.f32 %v3780, 1e-05
        %v3845 = vadd.f32 %v3781, 1e-05
        %v3846 = vadd.f32 %v3782, 1e-05
        %v3847 = vadd.f32 %v3783, 1e-05
        %v3848 = vadd.f32 %v3784, 1e-05
        %v3849 = vadd.f32 %v3785, 1e-05
        %v3850 = vadd.f32 %v3786, 1e-05
        %v3851 = vadd.f32 %v3787, 1e-05
        %v3852 = vadd.f32 %v3788, 1e-05
        %v3853 = vadd.f32 %v3789, 1e-05
        %v3854 = vadd.f32 %v3790, 1e-05
        %v3855 = vadd.f32 %v3791, 1e-05
        %v3856 = vadd.f32 %v3792, 1e-05
        %v3857 = vadd.f32 %v3793, 1e-05
        %v3858 = vadd.f32 %v3794, 1e-05
        %v3859 = vadd.f32 %v3795, 1e-05
        %v3860 = vadd.f32 %v3796, 1e-05
        %v3861 = vadd.f32 %v3797, 1e-05
        %v3862 = vadd.f32 %v3798, 1e-05
        %v3863 = vadd.f32 %v3799, 1e-05
        %v3864 = vadd.f32 %v3800, 1e-05
        %v3865 = vadd.f32 %v3801, 1e-05
        %v3866 = vadd.f32 %v3802, 1e-05
        %v3867 = vadd.f32 %v3803, 1e-05
        %v3868 = vadd.f32 %v3804, 1e-05
        %v3869 = vadd.f32 %v3805, 1e-05
        %v3870 = vadd.f32 %v3806, 1e-05
        %v3871 = vadd.f32 %v3807, 1e-05
        %v3872 = vadd.f32 %v3808, 1e-05
        %v3873 = vadd.f32 %v3809, 1e-05
        %v3874 = vadd.f32 %v3810, 1e-05
        %v3875 = vadd.f32 %v3811, 1e-05
        %v3876 = vadd.f32 %v3812, 1e-05
        %v3877 = vadd.f32 %v3813, 1e-05
        %v3878 = vadd.f32 %v3814, 1e-05
        %v3879 = vadd.f32 %v3815, 1e-05
        %v3880 = vadd.f32 %v3816, 1e-05
        %v3881 = vadd.f32 %v3817, 1e-05
        %v3882 = vadd.f32 %v3818, 1e-05
        %v3883 = vadd.f32 %v3819, 1e-05
        %v3884 = vadd.f32 %v3820, 1e-05
        %v3885 = vadd.f32 %v3821, 1e-05
        %v3886 = vadd.f32 %v3822, 1e-05
        %v3887 = vadd.f32 %v3823, 1e-05
        %v3888 = vadd.f32 %v3824, 1e-05
        %v3889 = vadd.f32 %v3825, 1e-05
        %v3890 = vadd.f32 %v3826, 1e-05
        %v3891 = vadd.f32 %v3827, 1e-05
        %v3892 = vadd.f32 %v3828, 1e-05
        %v3893 = vadd.f32 %v3829, 1e-05
        %v3894 = vadd.f32 %v3830, 1e-05
        %v3895 = vadd.f32 %v3831, 1e-05
        %v3896 = vadd.f32 %v3832, 1e-05
        %v3897 = vadd.f32 %v3833, 1e-05
        %v3898 = vadd.f32 %v3834, 1e-05
        %v3899 = vadd.f32 %v3835, 1e-05
        %v3900 = vadd.f32 %v3836, 1e-05
        %v3901 = vadd.f32 %v3837, 1e-05
        %v3902 = vrsqrt.pop %v3838
        %v3903 = vrsqrt.pop %v3839
        %v3904 = vrsqrt.pop %v3840
        %v3905 = vrsqrt.pop %v3841
        %v3906 = vrsqrt.pop %v3842
        %v3907 = vrsqrt.pop %v3843
        %v3908 = vrsqrt.pop %v3844
        %v3909 = vrsqrt.pop %v3845
        %v3910 = vrsqrt.pop %v3846
        %v3911 = vrsqrt.pop %v3847
        %v3912 = vrsqrt.pop %v3848
        %v3913 = vrsqrt.pop %v3849
        %v3914 = vrsqrt.pop %v3850
        %v3915 = vrsqrt.pop %v3851
        %v3916 = vrsqrt.pop %v3852
        %v3917 = vrsqrt.pop %v3853
        %v3918 = vrsqrt.pop %v3854
        %v3919 = vrsqrt.pop %v3855
        %v3920 = vrsqrt.pop %v3856
        %v3921 = vrsqrt.pop %v3857
        %v3922 = vrsqrt.pop %v3858
        %v3923 = vrsqrt.pop %v3859
        %v3924 = vrsqrt.pop %v3860
        %v3925 = vrsqrt.pop %v3861
        %v3926 = vrsqrt.pop %v3862
        %v3927 = vrsqrt.pop %v3863
        %v3928 = vrsqrt.pop %v3864
        %v3929 = vrsqrt.pop %v3865
        %v3930 = vrsqrt.pop %v3866
        %v3931 = vrsqrt.pop %v3867
        %v3932 = vrsqrt.pop %v3868
        %v3933 = vrsqrt.pop %v3869
        %v3934 = vrsqrt.pop %v3870
        %v3935 = vrsqrt.pop %v3871
        %v3936 = vrsqrt.pop %v3872
        %v3937 = vrsqrt.pop %v3873
        %v3938 = vrsqrt.pop %v3874
        %v3939 = vrsqrt.pop %v3875
        %v3940 = vrsqrt.pop %v3876
        %v3941 = vrsqrt.pop %v3877
        %v3942 = vrsqrt.pop %v3878
        %v3943 = vrsqrt.pop %v3879
        %v3944 = vrsqrt.pop %v3880
        %v3945 = vrsqrt.pop %v3881
        %v3946 = vrsqrt.pop %v3882
        %v3947 = vrsqrt.pop %v3883
        %v3948 = vrsqrt.pop %v3884
        %v3949 = vrsqrt.pop %v3885
        %v3950 = vrsqrt.pop %v3886
        %v3951 = vrsqrt.pop %v3887
        %v3952 = vrsqrt.pop %v3888
        %v3953 = vrsqrt.pop %v3889
        %v3954 = vrsqrt.pop %v3890
        %v3955 = vrsqrt.pop %v3891
        %v3956 = vrsqrt.pop %v3892
        %v3957 = vrsqrt.pop %v3893
        %v3958 = vrsqrt.pop %v3894
        %v3959 = vrsqrt.pop %v3895
        %v3960 = vrsqrt.pop %v3896
        %v3961 = vrsqrt.pop %v3897
        %v3962 = vrsqrt.pop %v3898
        %v3963 = vrsqrt.pop %v3899
        %v3964 = vrsqrt.pop %v3900
        %v3965 = vrsqrt.pop %v3901
        %v3966 = vmul.f32 %v3518, %v3902
        %v3967 = vmul.f32 %v3519, %v3903
        %v3968 = vmul.f32 %v3520, %v3904
        %v3969 = vmul.f32 %v3521, %v3905
        %v3970 = vmul.f32 %v3522, %v3906
        %v3971 = vmul.f32 %v3523, %v3907
        %v3972 = vmul.f32 %v3524, %v3908
        %v3973 = vmul.f32 %v3525, %v3909
        %v3974 = vmul.f32 %v3526, %v3910
        %v3975 = vmul.f32 %v3527, %v3911
        %v3976 = vmul.f32 %v3528, %v3912
        %v3977 = vmul.f32 %v3529, %v3913
        %v3978 = vmul.f32 %v3530, %v3914
        %v3979 = vmul.f32 %v3531, %v3915
        %v3980 = vmul.f32 %v3532, %v3916
        %v3981 = vmul.f32 %v3533, %v3917
        %v3982 = vmul.f32 %v3534, %v3918
        %v3983 = vmul.f32 %v3535, %v3919
        %v3984 = vmul.f32 %v3536, %v3920
        %v3985 = vmul.f32 %v3537, %v3921
        %v3986 = vmul.f32 %v3538, %v3922
        %v3987 = vmul.f32 %v3539, %v3923
        %v3988 = vmul.f32 %v3540, %v3924
        %v3989 = vmul.f32 %v3541, %v3925
        %v3990 = vmul.f32 %v3542, %v3926
        %v3991 = vmul.f32 %v3543, %v3927
        %v3992 = vmul.f32 %v3544, %v3928
        %v3993 = vmul.f32 %v3545, %v3929
        %v3994 = vmul.f32 %v3546, %v3930
        %v3995 = vmul.f32 %v3547, %v3931
        %v3996 = vmul.f32 %v3548, %v3932
        %v3997 = vmul.f32 %v3549, %v3933
        %v3998 = vmul.f32 %v3550, %v3934
        %v3999 = vmul.f32 %v3551, %v3935
        %v4000 = vmul.f32 %v3552, %v3936
        %v4001 = vmul.f32 %v3553, %v3937
        %v4002 = vmul.f32 %v3554, %v3938
        %v4003 = vmul.f32 %v3555, %v3939
        %v4004 = vmul.f32 %v3556, %v3940
        %v4005 = vmul.f32 %v3557, %v3941
        %v4006 = vmul.f32 %v3558, %v3942
        %v4007 = vmul.f32 %v3559, %v3943
        %v4008 = vmul.f32 %v3560, %v3944
        %v4009 = vmul.f32 %v3561, %v3945
        %v4010 = vmul.f32 %v3562, %v3946
        %v4011 = vmul.f32 %v3563, %v3947
        %v4012 = vmul.f32 %v3564, %v3948
        %v4013 = vmul.f32 %v3565, %v3949
        %v4014 = vmul.f32 %v3566, %v3950
        %v4015 = vmul.f32 %v3567, %v3951
        %v4016 = vmul.f32 %v3568, %v3952
        %v4017 = vmul.f32 %v3569, %v3953
        %v4018 = vmul.f32 %v3570, %v3954
        %v4019 = vmul.f32 %v3571, %v3955
        %v4020 = vmul.f32 %v3572, %v3956
        %v4021 = vmul.f32 %v3573, %v3957
        %v4022 = vmul.f32 %v3574, %v3958
        %v4023 = vmul.f32 %v3575, %v3959
        %v4024 = vmul.f32 %v3576, %v3960
        %v4025 = vmul.f32 %v3577, %v3961
        %v4026 = vmul.f32 %v3578, %v3962
        %v4027 = vmul.f32 %v3579, %v3963
        %v4028 = vmul.f32 %v3580, %v3964
        %v4029 = vmul.f32 %v3581, %v3965
        %v4030 = vrot.slane %v3966, 4
        %v4031 = vadd.f32 %v3966, %v4030
        %v4032 = vrot.slane %v4031, 2
        %v4033 = vadd.f32 %v4031, %v4032
        %v4034 = vrot.slane %v4033, 1
        %v4035 = vadd.f32 %v4033, %v4034
        %v4036 = vrot.slane %v3967, 4
        %v4037 = vadd.f32 %v3967, %v4036
        %v4038 = vrot.slane %v4037, 2
        %v4039 = vadd.f32 %v4037, %v4038
        %v4040 = vrot.slane %v4039, 1
        %v4041 = vadd.f32 %v4039, %v4040
        %v4042 = vrot.slane %v3968, 4
        %v4043 = vadd.f32 %v3968, %v4042
        %v4044 = vrot.slane %v4043, 2
        %v4045 = vadd.f32 %v4043, %v4044
        %v4046 = vrot.slane %v4045, 1
        %v4047 = vadd.f32 %v4045, %v4046
        %v4048 = vrot.slane %v3969, 4
        %v4049 = vadd.f32 %v3969, %v4048
        %v4050 = vrot.slane %v4049, 2
        %v4051 = vadd.f32 %v4049, %v4050
        %v4052 = vrot.slane %v4051, 1
        %v4053 = vadd.f32 %v4051, %v4052
        %v4054 = vrot.slane %v3970, 4
        %v4055 = vadd.f32 %v3970, %v4054
        %v4056 = vrot.slane %v4055, 2
        %v4057 = vadd.f32 %v4055, %v4056
        %v4058 = vrot.slane %v4057, 1
        %v4059 = vadd.f32 %v4057, %v4058
        %v4060 = vrot.slane %v3971, 4
        %v4061 = vadd.f32 %v3971, %v4060
        %v4062 = vrot.slane %v4061, 2
        %v4063 = vadd.f32 %v4061, %v4062
        %v4064 = vrot.slane %v4063, 1
        %v4065 = vadd.f32 %v4063, %v4064
        %v4066 = vrot.slane %v3972, 4
        %v4067 = vadd.f32 %v3972, %v4066
        %v4068 = vrot.slane %v4067, 2
        %v4069 = vadd.f32 %v4067, %v4068
        %v4070 = vrot.slane %v4069, 1
        %v4071 = vadd.f32 %v4069, %v4070
        %v4072 = vrot.slane %v3973, 4
        %v4073 = vadd.f32 %v3973, %v4072
        %v4074 = vrot.slane %v4073, 2
        %v4075 = vadd.f32 %v4073, %v4074
        %v4076 = vrot.slane %v4075, 1
        %v4077 = vadd.f32 %v4075, %v4076
        %v4078 = vrot.slane %v3974, 4
        %v4079 = vadd.f32 %v3974, %v4078
        %v4080 = vrot.slane %v4079, 2
        %v4081 = vadd.f32 %v4079, %v4080
        %v4082 = vrot.slane %v4081, 1
        %v4083 = vadd.f32 %v4081, %v4082
        %v4084 = vrot.slane %v3975, 4
        %v4085 = vadd.f32 %v3975, %v4084
        %v4086 = vrot.slane %v4085, 2
        %v4087 = vadd.f32 %v4085, %v4086
        %v4088 = vrot.slane %v4087, 1
        %v4089 = vadd.f32 %v4087, %v4088
        %v4090 = vrot.slane %v3976, 4
        %v4091 = vadd.f32 %v3976, %v4090
        %v4092 = vrot.slane %v4091, 2
        %v4093 = vadd.f32 %v4091, %v4092
        %v4094 = vrot.slane %v4093, 1
        %v4095 = vadd.f32 %v4093, %v4094
        %v4096 = vrot.slane %v3977, 4
        %v4097 = vadd.f32 %v3977, %v4096
        %v4098 = vrot.slane %v4097, 2
        %v4099 = vadd.f32 %v4097, %v4098
        %v4100 = vrot.slane %v4099, 1
        %v4101 = vadd.f32 %v4099, %v4100
        %v4102 = vrot.slane %v3978, 4
        %v4103 = vadd.f32 %v3978, %v4102
        %v4104 = vrot.slane %v4103, 2
        %v4105 = vadd.f32 %v4103, %v4104
        %v4106 = vrot.slane %v4105, 1
        %v4107 = vadd.f32 %v4105, %v4106
        %v4108 = vrot.slane %v3979, 4
        %v4109 = vadd.f32 %v3979, %v4108
        %v4110 = vrot.slane %v4109, 2
        %v4111 = vadd.f32 %v4109, %v4110
        %v4112 = vrot.slane %v4111, 1
        %v4113 = vadd.f32 %v4111, %v4112
        %v4114 = vrot.slane %v3980, 4
        %v4115 = vadd.f32 %v3980, %v4114
        %v4116 = vrot.slane %v4115, 2
        %v4117 = vadd.f32 %v4115, %v4116
        %v4118 = vrot.slane %v4117, 1
        %v4119 = vadd.f32 %v4117, %v4118
        %v4120 = vrot.slane %v3981, 4
        %v4121 = vadd.f32 %v3981, %v4120
        %v4122 = vrot.slane %v4121, 2
        %v4123 = vadd.f32 %v4121, %v4122
        %v4124 = vrot.slane %v4123, 1
        %v4125 = vadd.f32 %v4123, %v4124
        %v4126 = vrot.slane %v3982, 4
        %v4127 = vadd.f32 %v3982, %v4126
        %v4128 = vrot.slane %v4127, 2
        %v4129 = vadd.f32 %v4127, %v4128
        %v4130 = vrot.slane %v4129, 1
        %v4131 = vadd.f32 %v4129, %v4130
        %v4132 = vrot.slane %v3983, 4
        %v4133 = vadd.f32 %v3983, %v4132
        %v4134 = vrot.slane %v4133, 2
        %v4135 = vadd.f32 %v4133, %v4134
        %v4136 = vrot.slane %v4135, 1
        %v4137 = vadd.f32 %v4135, %v4136
        %v4138 = vrot.slane %v3984, 4
        %v4139 = vadd.f32 %v3984, %v4138
        %v4140 = vrot.slane %v4139, 2
        %v4141 = vadd.f32 %v4139, %v4140
        %v4142 = vrot.slane %v4141, 1
        %v4143 = vadd.f32 %v4141, %v4142
        %v4144 = vrot.slane %v3985, 4
        %v4145 = vadd.f32 %v3985, %v4144
        %v4146 = vrot.slane %v4145, 2
        %v4147 = vadd.f32 %v4145, %v4146
        %v4148 = vrot.slane %v4147, 1
        %v4149 = vadd.f32 %v4147, %v4148
        %v4150 = vrot.slane %v3986, 4
        %v4151 = vadd.f32 %v3986, %v4150
        %v4152 = vrot.slane %v4151, 2
        %v4153 = vadd.f32 %v4151, %v4152
        %v4154 = vrot.slane %v4153, 1
        %v4155 = vadd.f32 %v4153, %v4154
        %v4156 = vrot.slane %v3987, 4
        %v4157 = vadd.f32 %v3987, %v4156
        %v4158 = vrot.slane %v4157, 2
        %v4159 = vadd.f32 %v4157, %v4158
        %v4160 = vrot.slane %v4159, 1
        %v4161 = vadd.f32 %v4159, %v4160
        %v4162 = vrot.slane %v3988, 4
        %v4163 = vadd.f32 %v3988, %v4162
        %v4164 = vrot.slane %v4163, 2
        %v4165 = vadd.f32 %v4163, %v4164
        %v4166 = vrot.slane %v4165, 1
        %v4167 = vadd.f32 %v4165, %v4166
        %v4168 = vrot.slane %v3989, 4
        %v4169 = vadd.f32 %v3989, %v4168
        %v4170 = vrot.slane %v4169, 2
        %v4171 = vadd.f32 %v4169, %v4170
        %v4172 = vrot.slane %v4171, 1
        %v4173 = vadd.f32 %v4171, %v4172
        %v4174 = vrot.slane %v3990, 4
        %v4175 = vadd.f32 %v3990, %v4174
        %v4176 = vrot.slane %v4175, 2
        %v4177 = vadd.f32 %v4175, %v4176
        %v4178 = vrot.slane %v4177, 1
        %v4179 = vadd.f32 %v4177, %v4178
        %v4180 = vrot.slane %v3991, 4
        %v4181 = vadd.f32 %v3991, %v4180
        %v4182 = vrot.slane %v4181, 2
        %v4183 = vadd.f32 %v4181, %v4182
        %v4184 = vrot.slane %v4183, 1
        %v4185 = vadd.f32 %v4183, %v4184
        %v4186 = vrot.slane %v3992, 4
        %v4187 = vadd.f32 %v3992, %v4186
        %v4188 = vrot.slane %v4187, 2
        %v4189 = vadd.f32 %v4187, %v4188
        %v4190 = vrot.slane %v4189, 1
        %v4191 = vadd.f32 %v4189, %v4190
        %v4192 = vrot.slane %v3993, 4
        %v4193 = vadd.f32 %v3993, %v4192
        %v4194 = vrot.slane %v4193, 2
        %v4195 = vadd.f32 %v4193, %v4194
        %v4196 = vrot.slane %v4195, 1
        %v4197 = vadd.f32 %v4195, %v4196
        %v4198 = vrot.slane %v3994, 4
        %v4199 = vadd.f32 %v3994, %v4198
        %v4200 = vrot.slane %v4199, 2
        %v4201 = vadd.f32 %v4199, %v4200
        %v4202 = vrot.slane %v4201, 1
        %v4203 = vadd.f32 %v4201, %v4202
        %v4204 = vrot.slane %v3995, 4
        %v4205 = vadd.f32 %v3995, %v4204
        %v4206 = vrot.slane %v4205, 2
        %v4207 = vadd.f32 %v4205, %v4206
        %v4208 = vrot.slane %v4207, 1
        %v4209 = vadd.f32 %v4207, %v4208
        %v4210 = vrot.slane %v3996, 4
        %v4211 = vadd.f32 %v3996, %v4210
        %v4212 = vrot.slane %v4211, 2
        %v4213 = vadd.f32 %v4211, %v4212
        %v4214 = vrot.slane %v4213, 1
        %v4215 = vadd.f32 %v4213, %v4214
        %v4216 = vrot.slane %v3997, 4
        %v4217 = vadd.f32 %v3997, %v4216
        %v4218 = vrot.slane %v4217, 2
        %v4219 = vadd.f32 %v4217, %v4218
        %v4220 = vrot.slane %v4219, 1
        %v4221 = vadd.f32 %v4219, %v4220
        %v4222 = vrot.slane %v3998, 4
        %v4223 = vadd.f32 %v3998, %v4222
        %v4224 = vrot.slane %v4223, 2
        %v4225 = vadd.f32 %v4223, %v4224
        %v4226 = vrot.slane %v4225, 1
        %v4227 = vadd.f32 %v4225, %v4226
        %v4228 = vrot.slane %v3999, 4
        %v4229 = vadd.f32 %v3999, %v4228
        %v4230 = vrot.slane %v4229, 2
        %v4231 = vadd.f32 %v4229, %v4230
        %v4232 = vrot.slane %v4231, 1
        %v4233 = vadd.f32 %v4231, %v4232
        %v4234 = vrot.slane %v4000, 4
        %v4235 = vadd.f32 %v4000, %v4234
        %v4236 = vrot.slane %v4235, 2
        %v4237 = vadd.f32 %v4235, %v4236
        %v4238 = vrot.slane %v4237, 1
        %v4239 = vadd.f32 %v4237, %v4238
        %v4240 = vrot.slane %v4001, 4
        %v4241 = vadd.f32 %v4001, %v4240
        %v4242 = vrot.slane %v4241, 2
        %v4243 = vadd.f32 %v4241, %v4242
        %v4244 = vrot.slane %v4243, 1
        %v4245 = vadd.f32 %v4243, %v4244
        %v4246 = vrot.slane %v4002, 4
        %v4247 = vadd.f32 %v4002, %v4246
        %v4248 = vrot.slane %v4247, 2
        %v4249 = vadd.f32 %v4247, %v4248
        %v4250 = vrot.slane %v4249, 1
        %v4251 = vadd.f32 %v4249, %v4250
        %v4252 = vrot.slane %v4003, 4
        %v4253 = vadd.f32 %v4003, %v4252
        %v4254 = vrot.slane %v4253, 2
        %v4255 = vadd.f32 %v4253, %v4254
        %v4256 = vrot.slane %v4255, 1
        %v4257 = vadd.f32 %v4255, %v4256
        %v4258 = vrot.slane %v4004, 4
        %v4259 = vadd.f32 %v4004, %v4258
        %v4260 = vrot.slane %v4259, 2
        %v4261 = vadd.f32 %v4259, %v4260
        %v4262 = vrot.slane %v4261, 1
        %v4263 = vadd.f32 %v4261, %v4262
        %v4264 = vrot.slane %v4005, 4
        %v4265 = vadd.f32 %v4005, %v4264
        %v4266 = vrot.slane %v4265, 2
        %v4267 = vadd.f32 %v4265, %v4266
        %v4268 = vrot.slane %v4267, 1
        %v4269 = vadd.f32 %v4267, %v4268
        %v4270 = vrot.slane %v4006, 4
        %v4271 = vadd.f32 %v4006, %v4270
        %v4272 = vrot.slane %v4271, 2
        %v4273 = vadd.f32 %v4271, %v4272
        %v4274 = vrot.slane %v4273, 1
        %v4275 = vadd.f32 %v4273, %v4274
        %v4276 = vrot.slane %v4007, 4
        %v4277 = vadd.f32 %v4007, %v4276
        %v4278 = vrot.slane %v4277, 2
        %v4279 = vadd.f32 %v4277, %v4278
        %v4280 = vrot.slane %v4279, 1
        %v4281 = vadd.f32 %v4279, %v4280
        %v4282 = vrot.slane %v4008, 4
        %v4283 = vadd.f32 %v4008, %v4282
        %v4284 = vrot.slane %v4283, 2
        %v4285 = vadd.f32 %v4283, %v4284
        %v4286 = vrot.slane %v4285, 1
        %v4287 = vadd.f32 %v4285, %v4286
        %v4288 = vrot.slane %v4009, 4
        %v4289 = vadd.f32 %v4009, %v4288
        %v4290 = vrot.slane %v4289, 2
        %v4291 = vadd.f32 %v4289, %v4290
        %v4292 = vrot.slane %v4291, 1
        %v4293 = vadd.f32 %v4291, %v4292
        %v4294 = vrot.slane %v4010, 4
        %v4295 = vadd.f32 %v4010, %v4294
        %v4296 = vrot.slane %v4295, 2
        %v4297 = vadd.f32 %v4295, %v4296
        %v4298 = vrot.slane %v4297, 1
        %v4299 = vadd.f32 %v4297, %v4298
        %v4300 = vrot.slane %v4011, 4
        %v4301 = vadd.f32 %v4011, %v4300
        %v4302 = vrot.slane %v4301, 2
        %v4303 = vadd.f32 %v4301, %v4302
        %v4304 = vrot.slane %v4303, 1
        %v4305 = vadd.f32 %v4303, %v4304
        %v4306 = vrot.slane %v4012, 4
        %v4307 = vadd.f32 %v4012, %v4306
        %v4308 = vrot.slane %v4307, 2
        %v4309 = vadd.f32 %v4307, %v4308
        %v4310 = vrot.slane %v4309, 1
        %v4311 = vadd.f32 %v4309, %v4310
        %v4312 = vrot.slane %v4013, 4
        %v4313 = vadd.f32 %v4013, %v4312
        %v4314 = vrot.slane %v4313, 2
        %v4315 = vadd.f32 %v4313, %v4314
        %v4316 = vrot.slane %v4315, 1
        %v4317 = vadd.f32 %v4315, %v4316
        %v4318 = vrot.slane %v4014, 4
        %v4319 = vadd.f32 %v4014, %v4318
        %v4320 = vrot.slane %v4319, 2
        %v4321 = vadd.f32 %v4319, %v4320
        %v4322 = vrot.slane %v4321, 1
        %v4323 = vadd.f32 %v4321, %v4322
        %v4324 = vrot.slane %v4015, 4
        %v4325 = vadd.f32 %v4015, %v4324
        %v4326 = vrot.slane %v4325, 2
        %v4327 = vadd.f32 %v4325, %v4326
        %v4328 = vrot.slane %v4327, 1
        %v4329 = vadd.f32 %v4327, %v4328
        %v4330 = vrot.slane %v4016, 4
        %v4331 = vadd.f32 %v4016, %v4330
        %v4332 = vrot.slane %v4331, 2
        %v4333 = vadd.f32 %v4331, %v4332
        %v4334 = vrot.slane %v4333, 1
        %v4335 = vadd.f32 %v4333, %v4334
        %v4336 = vrot.slane %v4017, 4
        %v4337 = vadd.f32 %v4017, %v4336
        %v4338 = vrot.slane %v4337, 2
        %v4339 = vadd.f32 %v4337, %v4338
        %v4340 = vrot.slane %v4339, 1
        %v4341 = vadd.f32 %v4339, %v4340
        %v4342 = vrot.slane %v4018, 4
        %v4343 = vadd.f32 %v4018, %v4342
        %v4344 = vrot.slane %v4343, 2
        %v4345 = vadd.f32 %v4343, %v4344
        %v4346 = vrot.slane %v4345, 1
        %v4347 = vadd.f32 %v4345, %v4346
        %v4348 = vrot.slane %v4019, 4
        %v4349 = vadd.f32 %v4019, %v4348
        %v4350 = vrot.slane %v4349, 2
        %v4351 = vadd.f32 %v4349, %v4350
        %v4352 = vrot.slane %v4351, 1
        %v4353 = vadd.f32 %v4351, %v4352
        %v4354 = vrot.slane %v4020, 4
        %v4355 = vadd.f32 %v4020, %v4354
        %v4356 = vrot.slane %v4355, 2
        %v4357 = vadd.f32 %v4355, %v4356
        %v4358 = vrot.slane %v4357, 1
        %v4359 = vadd.f32 %v4357, %v4358
        %v4360 = vrot.slane %v4021, 4
        %v4361 = vadd.f32 %v4021, %v4360
        %v4362 = vrot.slane %v4361, 2
        %v4363 = vadd.f32 %v4361, %v4362
        %v4364 = vrot.slane %v4363, 1
        %v4365 = vadd.f32 %v4363, %v4364
        %v4366 = vrot.slane %v4022, 4
        %v4367 = vadd.f32 %v4022, %v4366
        %v4368 = vrot.slane %v4367, 2
        %v4369 = vadd.f32 %v4367, %v4368
        %v4370 = vrot.slane %v4369, 1
        %v4371 = vadd.f32 %v4369, %v4370
        %v4372 = vrot.slane %v4023, 4
        %v4373 = vadd.f32 %v4023, %v4372
        %v4374 = vrot.slane %v4373, 2
        %v4375 = vadd.f32 %v4373, %v4374
        %v4376 = vrot.slane %v4375, 1
        %v4377 = vadd.f32 %v4375, %v4376
        %v4378 = vrot.slane %v4024, 4
        %v4379 = vadd.f32 %v4024, %v4378
        %v4380 = vrot.slane %v4379, 2
        %v4381 = vadd.f32 %v4379, %v4380
        %v4382 = vrot.slane %v4381, 1
        %v4383 = vadd.f32 %v4381, %v4382
        %v4384 = vrot.slane %v4025, 4
        %v4385 = vadd.f32 %v4025, %v4384
        %v4386 = vrot.slane %v4385, 2
        %v4387 = vadd.f32 %v4385, %v4386
        %v4388 = vrot.slane %v4387, 1
        %v4389 = vadd.f32 %v4387, %v4388
        %v4390 = vrot.slane %v4026, 4
        %v4391 = vadd.f32 %v4026, %v4390
        %v4392 = vrot.slane %v4391, 2
        %v4393 = vadd.f32 %v4391, %v4392
        %v4394 = vrot.slane %v4393, 1
        %v4395 = vadd.f32 %v4393, %v4394
        %v4396 = vrot.slane %v4027, 4
        %v4397 = vadd.f32 %v4027, %v4396
        %v4398 = vrot.slane %v4397, 2
        %v4399 = vadd.f32 %v4397, %v4398
        %v4400 = vrot.slane %v4399, 1
        %v4401 = vadd.f32 %v4399, %v4400
        %v4402 = vrot.slane %v4028, 4
        %v4403 = vadd.f32 %v4028, %v4402
        %v4404 = vrot.slane %v4403, 2
        %v4405 = vadd.f32 %v4403, %v4404
        %v4406 = vrot.slane %v4405, 1
        %v4407 = vadd.f32 %v4405, %v4406
        %v4408 = vrot.slane %v4029, 4
        %v4409 = vadd.f32 %v4029, %v4408
        %v4410 = vrot.slane %v4409, 2
        %v4411 = vadd.f32 %v4409, %v4410
        %v4412 = vrot.slane %v4411, 1
        %v4413 = vadd.f32 %v4411, %v4412
        %v4414 = vrcp.pop 8.0
        %v4415 = vmul.f32 %v4035, %v4414
        %v4416 = vmul.f32 %v4041, %v4414
        %v4417 = vmul.f32 %v4047, %v4414
        %v4418 = vmul.f32 %v4053, %v4414
        %v4419 = vmul.f32 %v4059, %v4414
        %v4420 = vmul.f32 %v4065, %v4414
        %v4421 = vmul.f32 %v4071, %v4414
        %v4422 = vmul.f32 %v4077, %v4414
        %v4423 = vmul.f32 %v4083, %v4414
        %v4424 = vmul.f32 %v4089, %v4414
        %v4425 = vmul.f32 %v4095, %v4414
        %v4426 = vmul.f32 %v4101, %v4414
        %v4427 = vmul.f32 %v4107, %v4414
        %v4428 = vmul.f32 %v4113, %v4414
        %v4429 = vmul.f32 %v4119, %v4414
        %v4430 = vmul.f32 %v4125, %v4414
        %v4431 = vmul.f32 %v4131, %v4414
        %v4432 = vmul.f32 %v4137, %v4414
        %v4433 = vmul.f32 %v4143, %v4414
        %v4434 = vmul.f32 %v4149, %v4414
        %v4435 = vmul.f32 %v4155, %v4414
        %v4436 = vmul.f32 %v4161, %v4414
        %v4437 = vmul.f32 %v4167, %v4414
        %v4438 = vmul.f32 %v4173, %v4414
        %v4439 = vmul.f32 %v4179, %v4414
        %v4440 = vmul.f32 %v4185, %v4414
        %v4441 = vmul.f32 %v4191, %v4414
        %v4442 = vmul.f32 %v4197, %v4414
        %v4443 = vmul.f32 %v4203, %v4414
        %v4444 = vmul.f32 %v4209, %v4414
        %v4445 = vmul.f32 %v4215, %v4414
        %v4446 = vmul.f32 %v4221, %v4414
        %v4447 = vmul.f32 %v4227, %v4414
        %v4448 = vmul.f32 %v4233, %v4414
        %v4449 = vmul.f32 %v4239, %v4414
        %v4450 = vmul.f32 %v4245, %v4414
        %v4451 = vmul.f32 %v4251, %v4414
        %v4452 = vmul.f32 %v4257, %v4414
        %v4453 = vmul.f32 %v4263, %v4414
        %v4454 = vmul.f32 %v4269, %v4414
        %v4455 = vmul.f32 %v4275, %v4414
        %v4456 = vmul.f32 %v4281, %v4414
        %v4457 = vmul.f32 %v4287, %v4414
        %v4458 = vmul.f32 %v4293, %v4414
        %v4459 = vmul.f32 %v4299, %v4414
        %v4460 = vmul.f32 %v4305, %v4414
        %v4461 = vmul.f32 %v4311, %v4414
        %v4462 = vmul.f32 %v4317, %v4414
        %v4463 = vmul.f32 %v4323, %v4414
        %v4464 = vmul.f32 %v4329, %v4414
        %v4465 = vmul.f32 %v4335, %v4414
        %v4466 = vmul.f32 %v4341, %v4414
        %v4467 = vmul.f32 %v4347, %v4414
        %v4468 = vmul.f32 %v4353, %v4414
        %v4469 = vmul.f32 %v4359, %v4414
        %v4470 = vmul.f32 %v4365, %v4414
        %v4471 = vmul.f32 %v4371, %v4414
        %v4472 = vmul.f32 %v4377, %v4414
        %v4473 = vmul.f32 %v4383, %v4414
        %v4474 = vmul.f32 %v4389, %v4414
        %v4475 = vmul.f32 %v4395, %v4414
        %v4476 = vmul.f32 %v4401, %v4414
        %v4477 = vmul.f32 %v4407, %v4414
        %v4478 = vmul.f32 %v4413, %v4414
        %v4479 = vlaneseq
        %v4480 = vshrl.u32 %v4479, 7
        %v4481 = vsub.s32 4, %v4480
        %v4482 = vrot.slane %v268, %v4481
        %v4483 = vmul.f32 %v4415, %v4482
        %v4484 = vmul.f32 %v4416, %v4482
        %v4485 = vmul.f32 %v4417, %v4482
        %v4486 = vmul.f32 %v4418, %v4482
        %v4487 = vmul.f32 %v4419, %v4482
        %v4488 = vmul.f32 %v4420, %v4482
        %v4489 = vmul.f32 %v4421, %v4482
        %v4490 = vmul.f32 %v4422, %v4482
        %v4491 = vmul.f32 %v4423, %v4482
        %v4492 = vmul.f32 %v4424, %v4482
        %v4493 = vmul.f32 %v4425, %v4482
        %v4494 = vmul.f32 %v4426, %v4482
        %v4495 = vmul.f32 %v4427, %v4482
        %v4496 = vmul.f32 %v4428, %v4482
        %v4497 = vmul.f32 %v4429, %v4482
        %v4498 = vmul.f32 %v4430, %v4482
        %v4499 = vmul.f32 %v4431, %v4482
        %v4500 = vmul.f32 %v4432, %v4482
        %v4501 = vmul.f32 %v4433, %v4482
        %v4502 = vmul.f32 %v4434, %v4482
        %v4503 = vmul.f32 %v4435, %v4482
        %v4504 = vmul.f32 %v4436, %v4482
        %v4505 = vmul.f32 %v4437, %v4482
        %v4506 = vmul.f32 %v4438, %v4482
        %v4507 = vmul.f32 %v4439, %v4482
        %v4508 = vmul.f32 %v4440, %v4482
        %v4509 = vmul.f32 %v4441, %v4482
        %v4510 = vmul.f32 %v4442, %v4482
        %v4511 = vmul.f32 %v4443, %v4482
        %v4512 = vmul.f32 %v4444, %v4482
        %v4513 = vmul.f32 %v4445, %v4482
        %v4514 = vmul.f32 %v4446, %v4482
        %v4515 = vmul.f32 %v4447, %v4482
        %v4516 = vmul.f32 %v4448, %v4482
        %v4517 = vmul.f32 %v4449, %v4482
        %v4518 = vmul.f32 %v4450, %v4482
        %v4519 = vmul.f32 %v4451, %v4482
        %v4520 = vmul.f32 %v4452, %v4482
        %v4521 = vmul.f32 %v4453, %v4482
        %v4522 = vmul.f32 %v4454, %v4482
        %v4523 = vmul.f32 %v4455, %v4482
        %v4524 = vmul.f32 %v4456, %v4482
        %v4525 = vmul.f32 %v4457, %v4482
        %v4526 = vmul.f32 %v4458, %v4482
        %v4527 = vmul.f32 %v4459, %v4482
        %v4528 = vmul.f32 %v4460, %v4482
        %v4529 = vmul.f32 %v4461, %v4482
        %v4530 = vmul.f32 %v4462, %v4482
        %v4531 = vmul.f32 %v4463, %v4482
        %v4532 = vmul.f32 %v4464, %v4482
        %v4533 = vmul.f32 %v4465, %v4482
        %v4534 = vmul.f32 %v4466, %v4482
        %v4535 = vmul.f32 %v4467, %v4482
        %v4536 = vmul.f32 %v4468, %v4482
        %v4537 = vmul.f32 %v4469, %v4482
        %v4538 = vmul.f32 %v4470, %v4482
        %v4539 = vmul.f32 %v4471, %v4482
        %v4540 = vmul.f32 %v4472, %v4482
        %v4541 = vmul.f32 %v4473, %v4482
        %v4542 = vmul.f32 %v4474, %v4482
        %v4543 = vmul.f32 %v4475, %v4482
        %v4544 = vmul.f32 %v4476, %v4482
        %v4545 = vmul.f32 %v4477, %v4482
        %v4546 = vmul.f32 %v4478, %v4482
        %v4547 = vlaneseq
        %v4548 = vshrl.u32 %v4547, 7
        %v4549 = vsub.s32 5, %v4548
        %v4550 = vrot.slane %v268, %v4549
        %v4551 = vadd.f32 %v4483, %v4550
        %v4552 = vadd.f32 %v4484, %v4550
        %v4553 = vadd.f32 %v4485, %v4550
        %v4554 = vadd.f32 %v4486, %v4550
        %v4555 = vadd.f32 %v4487, %v4550
        %v4556 = vadd.f32 %v4488, %v4550
        %v4557 = vadd.f32 %v4489, %v4550
        %v4558 = vadd.f32 %v4490, %v4550
        %v4559 = vadd.f32 %v4491, %v4550
        %v4560 = vadd.f32 %v4492, %v4550
        %v4561 = vadd.f32 %v4493, %v4550
        %v4562 = vadd.f32 %v4494, %v4550
        %v4563 = vadd.f32 %v4495, %v4550
        %v4564 = vadd.f32 %v4496, %v4550
        %v4565 = vadd.f32 %v4497, %v4550
        %v4566 = vadd.f32 %v4498, %v4550
        %v4567 = vadd.f32 %v4499, %v4550
        %v4568 = vadd.f32 %v4500, %v4550
        %v4569 = vadd.f32 %v4501, %v4550
        %v4570 = vadd.f32 %v4502, %v4550
        %v4571 = vadd.f32 %v4503, %v4550
        %v4572 = vadd.f32 %v4504, %v4550
        %v4573 = vadd.f32 %v4505, %v4550
        %v4574 = vadd.f32 %v4506, %v4550
        %v4575 = vadd.f32 %v4507, %v4550
        %v4576 = vadd.f32 %v4508, %v4550
        %v4577 = vadd.f32 %v4509, %v4550
        %v4578 = vadd.f32 %v4510, %v4550
        %v4579 = vadd.f32 %v4511, %v4550
        %v4580 = vadd.f32 %v4512, %v4550
        %v4581 = vadd.f32 %v4513, %v4550
        %v4582 = vadd.f32 %v4514, %v4550
        %v4583 = vadd.f32 %v4515, %v4550
        %v4584 = vadd.f32 %v4516, %v4550
        %v4585 = vadd.f32 %v4517, %v4550
        %v4586 = vadd.f32 %v4518, %v4550
        %v4587 = vadd.f32 %v4519, %v4550
        %v4588 = vadd.f32 %v4520, %v4550
        %v4589 = vadd.f32 %v4521, %v4550
        %v4590 = vadd.f32 %v4522, %v4550
        %v4591 = vadd.f32 %v4523, %v4550
        %v4592 = vadd.f32 %v4524, %v4550
        %v4593 = vadd.f32 %v4525, %v4550
        %v4594 = vadd.f32 %v4526, %v4550
        %v4595 = vadd.f32 %v4527, %v4550
        %v4596 = vadd.f32 %v4528, %v4550
        %v4597 = vadd.f32 %v4529, %v4550
        %v4598 = vadd.f32 %v4530, %v4550
        %v4599 = vadd.f32 %v4531, %v4550
        %v4600 = vadd.f32 %v4532, %v4550
        %v4601 = vadd.f32 %v4533, %v4550
        %v4602 = vadd.f32 %v4534, %v4550
        %v4603 = vadd.f32 %v4535, %v4550
        %v4604 = vadd.f32 %v4536, %v4550
        %v4605 = vadd.f32 %v4537, %v4550
        %v4606 = vadd.f32 %v4538, %v4550
        %v4607 = vadd.f32 %v4539, %v4550
        %v4608 = vadd.f32 %v4540, %v4550
        %v4609 = vadd.f32 %v4541, %v4550
        %v4610 = vadd.f32 %v4542, %v4550
        %v4611 = vadd.f32 %v4543, %v4550
        %v4612 = vadd.f32 %v4544, %v4550
        %v4613 = vadd.f32 %v4545, %v4550
        %v4614 = vadd.f32 %v4546, %v4550
        %v4679 = vrot.slane %v4552, 7
        %vm4680 = vcmask 1041409
        %v4681 = vsel %vm4680, %v4679, %v4551
        %v4682 = vrot.slane %v4553, 6
        %vm4683 = vcmask 1042434
        %v4684 = vsel %vm4683, %v4682, %v4681
        %v4685 = vrot.slane %v4554, 5
        %vm4686 = vcmask 1043459
        %v4687 = vsel %vm4686, %v4685, %v4684
        %v4688 = vrot.slane %v4555, 4
        %vm4689 = vcmask 1044484
        %v4690 = vsel %vm4689, %v4688, %v4687
        %v4691 = vrot.slane %v4556, 3
        %vm4692 = vcmask 1045509
        %v4693 = vsel %vm4692, %v4691, %v4690
        %v4694 = vrot.slane %v4557, 2
        %vm4695 = vcmask 1046534
        %v4696 = vsel %vm4695, %v4694, %v4693
        %v4697 = vrot.slane %v4558, 1
        %vm4698 = vcmask 1047559
        %v4699 = vsel %vm4698, %v4697, %v4696
        %v4700 = vrot.slane %v4560, 7
        %v4701 = vsel %vm4680, %v4700, %v4559
        %v4702 = vrot.slane %v4561, 6
        %v4703 = vsel %vm4683, %v4702, %v4701
        %v4704 = vrot.slane %v4562, 5
        %v4705 = vsel %vm4686, %v4704, %v4703
        %v4706 = vrot.slane %v4563, 4
        %v4707 = vsel %vm4689, %v4706, %v4705
        %v4708 = vrot.slane %v4564, 3
        %v4709 = vsel %vm4692, %v4708, %v4707
        %v4710 = vrot.slane %v4565, 2
        %v4711 = vsel %vm4695, %v4710, %v4709
        %v4712 = vrot.slane %v4566, 1
        %v4713 = vsel %vm4698, %v4712, %v4711
        %v4714 = vrot.slane %v4568, 7
        %v4715 = vsel %vm4680, %v4714, %v4567
        %v4716 = vrot.slane %v4569, 6
        %v4717 = vsel %vm4683, %v4716, %v4715
        %v4718 = vrot.slane %v4570, 5
        %v4719 = vsel %vm4686, %v4718, %v4717
        %v4720 = vrot.slane %v4571, 4
        %v4721 = vsel %vm4689, %v4720, %v4719
        %v4722 = vrot.slane %v4572, 3
        %v4723 = vsel %vm4692, %v4722, %v4721
        %v4724 = vrot.slane %v4573, 2
        %v4725 = vsel %vm4695, %v4724, %v4723
        %v4726 = vrot.slane %v4574, 1
        %v4727 = vsel %vm4698, %v4726, %v4725
        %v4728 = vrot.slane %v4576, 7
        %v4729 = vsel %vm4680, %v4728, %v4575
        %v4730 = vrot.slane %v4577, 6
        %v4731 = vsel %vm4683, %v4730, %v4729
        %v4732 = vrot.slane %v4578, 5
        %v4733 = vsel %vm4686, %v4732, %v4731
        %v4734 = vrot.slane %v4579, 4
        %v4735 = vsel %vm4689, %v4734, %v4733
        %v4736 = vrot.slane %v4580, 3
        %v4737 = vsel %vm4692, %v4736, %v4735
        %v4738 = vrot.slane %v4581, 2
        %v4739 = vsel %vm4695, %v4738, %v4737
        %v4740 = vrot.slane %v4582, 1
        %v4741 = vsel %vm4698, %v4740, %v4739
        %v4742 = vrot.slane %v4584, 7
        %v4743 = vsel %vm4680, %v4742, %v4583
        %v4744 = vrot.slane %v4585, 6
        %v4745 = vsel %vm4683, %v4744, %v4743
        %v4746 = vrot.slane %v4586, 5
        %v4747 = vsel %vm4686, %v4746, %v4745
        %v4748 = vrot.slane %v4587, 4
        %v4749 = vsel %vm4689, %v4748, %v4747
        %v4750 = vrot.slane %v4588, 3
        %v4751 = vsel %vm4692, %v4750, %v4749
        %v4752 = vrot.slane %v4589, 2
        %v4753 = vsel %vm4695, %v4752, %v4751
        %v4754 = vrot.slane %v4590, 1
        %v4755 = vsel %vm4698, %v4754, %v4753
        %v4756 = vrot.slane %v4592, 7
        %v4757 = vsel %vm4680, %v4756, %v4591
        %v4758 = vrot.slane %v4593, 6
        %v4759 = vsel %vm4683, %v4758, %v4757
        %v4760 = vrot.slane %v4594, 5
        %v4761 = vsel %vm4686, %v4760, %v4759
        %v4762 = vrot.slane %v4595, 4
        %v4763 = vsel %vm4689, %v4762, %v4761
        %v4764 = vrot.slane %v4596, 3
        %v4765 = vsel %vm4692, %v4764, %v4763
        %v4766 = vrot.slane %v4597, 2
        %v4767 = vsel %vm4695, %v4766, %v4765
        %v4768 = vrot.slane %v4598, 1
        %v4769 = vsel %vm4698, %v4768, %v4767
        %v4770 = vrot.slane %v4600, 7
        %v4771 = vsel %vm4680, %v4770, %v4599
        %v4772 = vrot.slane %v4601, 6
        %v4773 = vsel %vm4683, %v4772, %v4771
        %v4774 = vrot.slane %v4602, 5
        %v4775 = vsel %vm4686, %v4774, %v4773
        %v4776 = vrot.slane %v4603, 4
        %v4777 = vsel %vm4689, %v4776, %v4775
        %v4778 = vrot.slane %v4604, 3
        %v4779 = vsel %vm4692, %v4778, %v4777
        %v4780 = vrot.slane %v4605, 2
        %v4781 = vsel %vm4695, %v4780, %v4779
        %v4782 = vrot.slane %v4606, 1
        %v4783 = vsel %vm4698, %v4782, %v4781
        %v4784 = vrot.slane %v4608, 7
        %v4785 = vsel %vm4680, %v4784, %v4607
        %v4786 = vrot.slane %v4609, 6
        %v4787 = vsel %vm4683, %v4786, %v4785
        %v4788 = vrot.slane %v4610, 5
        %v4789 = vsel %vm4686, %v4788, %v4787
        %v4790 = vrot.slane %v4611, 4
        %v4791 = vsel %vm4689, %v4790, %v4789
        %v4792 = vrot.slane %v4612, 3
        %v4793 = vsel %vm4692, %v4792, %v4791
        %v4794 = vrot.slane %v4613, 2
        %v4795 = vsel %vm4695, %v4794, %v4793
        %v4796 = vrot.slane %v4614, 1
        %v4797 = vsel %vm4698, %v4796, %v4795
        %4806 = vst [vmem:[%s259] sm:$0xff] %v4699
        %4807 = vst [vmem:[%s259 + $0x8] sm:$0xff] %v4713
        %4808 = vst [vmem:[%s259 + $0x10] sm:$0xff] %v4727
        %4809 = vst [vmem:[%s259 + $0x18] sm:$0xff] %v4741
        %4810 = vst [vmem:[%s259 + $0x20] sm:$0xff] %v4755
        %4811 = vst [vmem:[%s259 + $0x28] sm:$0xff] %v4769
        %4812 = vst [vmem:[%s259 + $0x30] sm:$0xff] %v4783
        %4813 = vst [vmem:[%s259 + $0x38] sm:$0xff] %v4797
        %s4814 = sand.u32 %s145, 1
        %s4815 = scalar_lea.sflag [#allocation4], %s4814
        %s4816 = sand.u32 %s145, 1
        %s4817 = smul.addr %s4816, 64
        %s4818 = scalar_lea.vmem [#allocation5], %s4817
        // Predicated region
        $region45: #{tpu_custom_call.1} parent=39 // pred_check
          %p4819 = pneg %p155
        $region46: #{tpu_custom_call.1} parent=39 // pred_check_branch
          %4821 = sbr.rel (%p4819) target = $region48
        $region47: #{tpu_custom_call.1} parent=39 // pred_region
          %s4822 = smul.u32 8, %s22
          %s4824 = ssub.s32 1024, 1024
          %4825 = vsyncadd %s4815, %s4824
          %s4826 = smul.addr %s4822, 128
          %s4827 = scalar_lea.hbm %s5, %s4826
          %s4828 = sshll.u32 %s4818, 4
          %s4829 = int_to_ptr.vmem [resolvable:$true] %s4828
          %4834 = dma.vmem_to_hbm [thread:$0]  %s4829, 1024, %s4827, %s4815, 128, 128, 8
        $region48: #{tpu_custom_call.1} parent=39 // pred_fallthru
          _
      $region40: #{tpu_custom_call.1} parent=5 // pred_fallthru
        _
      %p4835 = scmp.le.s32.totalorder 2, %s17
      // Predicated region
      $region49: #{tpu_custom_call.1} parent=5 // pred_check
        %p4836 = pneg %p4835
      $region50: #{tpu_custom_call.1} parent=5 // pred_check_branch
        %4838 = sbr.rel (%p4836) target = $region52
      $region51: #{tpu_custom_call.1} parent=5 // pred_region
        %s4839 = ssub.s32 %s17, 2
        // Predicated region
        $region53: #{tpu_custom_call.1} parent=51 // pred_check
          %p4840 = pneg %p161
        $region54: #{tpu_custom_call.1} parent=51 // pred_check_branch
          %4842 = sbr.rel (%p4840) target = $region56
        $region55: #{tpu_custom_call.1} parent=51 // pred_region
          %s4843 = sand.u32 %s146, 1
          %s4844 = scalar_lea.sflag [#allocation4], %s4843
          %s4845 = sand.u32 %s146, 1
          %s4846 = smul.addr %s4845, 64
          %s4847 = scalar_lea.vmem [#allocation5], %s4846
          %4848 = dma.done %s4844, 1024
        $region56: #{tpu_custom_call.1} parent=51 // pred_fallthru
          _
      $region52: #{tpu_custom_call.1} parent=5 // pred_fallthru
        _
    $region6: #{tpu_custom_call.1} parent=1 // loop_footer
      %s21 = sadd.s32 1, %s17
    $region7: #{tpu_custom_call.1} parent=1 // loop_footer_branch
      %16 = sbr.rel target = $region3
    $region8: #{tpu_custom_call.1} parent=1 // loop_exit
      _
    %4849 = vsyncpa [#allocation3], 1
    %s4850 = scalar_lea.sflag [#allocation3], 1
    %4851 = vsyncpa %s4850, 1
    %4852 = vsyncpa [#allocation4], 1
    %s4853 = scalar_lea.sflag [#allocation4], 1
    %4854 = vsyncpa %s4853, 1

</llo_original>
